<compile_context>
chip_gen: v6e
topology: v6e:2x2x1
jax: 0.10.0
libtpu: 0.0.40
codegen_flags: <defaults>
</compile_context>

<pallas_src>
import functools

import jax
import jax.numpy as jnp
import numpy as np
from jax.experimental import pallas as pl
from jax.experimental.pallas import tpu as pltpu


def _dft_matrices_ortho(n: int):
    """Ortho-normalized DFT matrix: real, imag, and (real+imag) parts in bf16."""
    k = np.arange(n)
    ang = -2.0 * np.pi * np.outer(k, k) / n
    scale = 1.0 / np.sqrt(n)
    fr = np.cos(ang) * scale
    fi = np.sin(ang) * scale
    return (jnp.asarray(fr, dtype=jnp.bfloat16),
            jnp.asarray(fi, dtype=jnp.bfloat16),
            jnp.asarray(fr + fi, dtype=jnp.bfloat16))


def _dc_kernel(fhr_ref, fhi_ref, fhs_ref, fwr_ref, fwi_ref, fws_ref,
               xr_ref, xi_ref, kur_ref, kui_ref, mr_ref, mi_ref,
               or_ref, oi_ref,
               gr_ref, gi_ref, *, n_img, w):
    bf16 = jnp.bfloat16
    dot = lambda a, b: jnp.dot(a, b, preferred_element_type=jnp.float32)

    fhr = fhr_ref[...]
    fhi = fhi_ref[...]
    fhs = fhs_ref[...]
    fwr = fwr_ref[...]
    fwi = fwi_ref[...]
    fws = fws_ref[...]

    xr = xr_ref[0]
    xi = xi_ref[0]
    kur = kur_ref[0]
    kui = kui_ref[0]
    mr = mr_ref[0]
    mi = mi_ref[0]

    # ---- H-axis forward FFT on the whole (H, B*W) slab:
    #      (Fr + i Fi) @ (xr + i xi) as 3 real matmuls (Karatsuba).
    t1 = dot(fhr, xr.astype(bf16))
    t2 = dot(fhi, xi.astype(bf16))
    t3 = dot(fhs, (xr + xi).astype(bf16))
    tr = t1 - t2
    ti = t3 - t1 - t2

    # ---- Per image block: W-axis FFT, data consistency, W-axis inverse FFT.
    for b in range(n_img):
        c = slice(b * w, (b + 1) * w)
        ar = tr[:, c]
        ai = ti[:, c]
        # (ar + i ai) @ (Fr + i Fi)
        u1 = dot(ar.astype(bf16), fwr)
        u2 = dot(ai.astype(bf16), fwi)
        u3 = dot((ar + ai).astype(bf16), fws)
        kr = u1 - u2
        ki = u3 - u1 - u2
        # data consistency (noise_lvl=None branch), kept in f32
        kor = kr + (kur[:, c] - kr) * mr[:, c]
        koi = ki + (kui[:, c] - ki) * mi[:, c]
        # (kor + i koi) @ conj(Fw) = (kor + i koi) @ (Fr - i Fi)
        p1 = dot(kor.astype(bf16), fwr)
        p2 = dot(koi.astype(bf16), fwi)
        p3 = dot((koi - kor).astype(bf16), fws)
        gr_ref[:, c] = p1 + p2
        gi_ref[:, c] = p3 + p1 - p2

    # ---- H-axis inverse FFT on the whole slab: conj(Fh) @ (gr + i gi)
    gr = gr_ref[...]
    gi = gi_ref[...]
    q1 = dot(fhr, gr.astype(bf16))
    q2 = dot(fhi, gi.astype(bf16))
    q3 = dot(fhs, (gi - gr).astype(bf16))
    or_ref[0] = q1 + q2
    oi_ref[0] = q3 + q1 - q2


def _pick_batch(h: int, w: int) -> int:
    """Images per grid step: make the slab lane-dense (B*W >= 128) and batch
    >= 4 images to amortise per-step overhead, capped by a ~24 MiB VMEM
    working-set budget (safe on v7x's 64 MiB as well as v5e/v6e)."""
    budget = 24 * 1024 * 1024
    per_image = 28 * h * w * 4      # rough: dbl-buffered slabs + scratch + live temps
    b_vmem = max(1, budget // per_image)
    b_lane = -(-128 // w)           # ceil(128 / w)
    b = max(b_lane, 4)
    return int(max(1, min(b, b_vmem, 16)))


def dc_layer(x_rec, k_un, mask):
    """x_rec, k_un, mask: (N, 2, H, W) float32 -> (N, 2, H, W) float32."""
    N, C, H, W = x_rec.shape
    assert C == 2

    B = _pick_batch(H, W)
    G = -(-N // B)                  # grid steps (prefer even on v7x when N allows)
    Np = G * B
    BW = B * W

    fhr, fhi, fhs = _dft_matrices_ortho(H)
    fwr, fwi, fws = _dft_matrices_ortho(W)

    def to_slab(p):                 # (N, H, W) -> (G, H, B*W), images along lanes
        if Np != N:
            p = jnp.pad(p, ((0, Np - N), (0, 0), (0, 0)))
        return p.reshape(G, B, H, W).transpose(0, 2, 1, 3).reshape(G, H, BW)

    def from_slab(s):               # (G, H, B*W) -> (N, H, W)
        s = s.reshape(G, H, B, W).transpose(0, 2, 1, 3).reshape(Np, H, W)
        return s[:N]

    slabs = [to_slab(a[:, ch].astype(jnp.float32))
             for a in (x_rec, k_un, mask) for ch in (0, 1)]
    # order: xr, xi, kur, kui, mr, mi

    mat_h = pl.BlockSpec((H, H), lambda g: (0, 0))
    mat_w = pl.BlockSpec((W, W), lambda g: (0, 0))
    slab = pl.BlockSpec((1, H, BW), lambda g: (g, 0, 0))

    out_r, out_i = pl.pallas_call(
        functools.partial(_dc_kernel, n_img=B, w=W),
        out_shape=(jax.ShapeDtypeStruct((G, H, BW), jnp.float32),
                   jax.ShapeDtypeStruct((G, H, BW), jnp.float32)),
        grid=(G,),
        in_specs=[mat_h, mat_h, mat_h, mat_w, mat_w, mat_w,
                  slab, slab, slab, slab, slab, slab],
        out_specs=[slab, slab],
        scratch_shapes=[pltpu.VMEM((H, BW), jnp.float32),
                        pltpu.VMEM((H, BW), jnp.float32)],
        compiler_params=pltpu.CompilerParams(
            dimension_semantics=("parallel",),
            vmem_limit_bytes=48 * 1024 * 1024),
    )(fhr, fhi, fhs, fwr, fwi, fws, *slabs)

    return jnp.stack([from_slab(out_r), from_slab(out_i)], axis=1)


def _reference(x_rec, k_un, mask):
    """Pure-JAX reference mirroring the PyTorch DCLayer (noise_lvl=None)."""
    xc = x_rec[:, 0] + 1j * x_rec[:, 1]
    k_rec = jnp.fft.fft2(xc, norm="ortho")
    kr, ki = jnp.real(k_rec), jnp.imag(k_rec)
    kor = kr + (k_un[:, 0] - kr) * mask[:, 0]
    koi = ki + (k_un[:, 1] - ki) * mask[:, 1]
    xo = jnp.fft.ifft2(kor + 1j * koi, norm="ortho")
    return jnp.stack([jnp.real(xo), jnp.imag(xo)], axis=1)


if __name__ == "__main__":
    N, C, H, W = 2, 2, 16, 16
    key = jax.random.PRNGKey(0)
    k1, k2, k3 = jax.random.split(key, 3)

    x_rec = jax.random.normal(k1, (N, C, H, W), dtype=jnp.float32)
    k_un = jax.random.normal(k2, (N, C, H, W), dtype=jnp.float32)
    # Binary undersampling mask, identical over real/imag channels (typical).
    m2d = (jax.random.uniform(k3, (N, 1, H, W)) > 0.5).astype(jnp.float32)
    mask = jnp.broadcast_to(m2d, (N, C, H, W))

    out = dc_layer(x_rec, k_un, mask)
    out = jax.block_until_ready(out)

    ref = _reference(x_rec, k_un, mask)
    err = float(jnp.max(jnp.abs(out - ref)))
    assert out.shape == (N, C, H, W)
    assert err < 1e-1, f"max abs error too large: {err}"

    print("KERNEL_OK")
</pallas_src>

<mosaic_0001>
module attributes {stable_mosaic.version = 11 : i64} {
  func.func @_dc_kernel(%arg0: i32, %arg1: memref<16x16xbf16, #tpu.memory_space<vmem>>, %arg2: memref<16x16xbf16, #tpu.memory_space<vmem>>, %arg3: memref<16x16xbf16, #tpu.memory_space<vmem>>, %arg4: memref<16x16xbf16, #tpu.memory_space<vmem>>, %arg5: memref<16x16xbf16, #tpu.memory_space<vmem>>, %arg6: memref<16x16xbf16, #tpu.memory_space<vmem>>, %arg7: memref<1x16x128xf32, #tpu.memory_space<vmem>>, %arg8: memref<1x16x128xf32, #tpu.memory_space<vmem>>, %arg9: memref<1x16x128xf32, #tpu.memory_space<vmem>>, %arg10: memref<1x16x128xf32, #tpu.memory_space<vmem>>, %arg11: memref<1x16x128xf32, #tpu.memory_space<vmem>>, %arg12: memref<1x16x128xf32, #tpu.memory_space<vmem>>, %arg13: memref<1x16x128xf32, #tpu.memory_space<vmem>>, %arg14: memref<1x16x128xf32, #tpu.memory_space<vmem>>, %arg15: memref<16x128xf32, #tpu.memory_space<vmem>>, %arg16: memref<16x128xf32, #tpu.memory_space<vmem>>) attributes {dimension_semantics = [#tpu.dimension_semantics<parallel>], iteration_bounds = array<i64: 1>, scalar_prefetch = 0 : i64, scratch_operands = 2 : i64, tpu.core_type = #tpu.core_type<tc>, window_params = [{pipeline_mode = #tpu.pipeline_mode<synchronous>, transform_indices = @transform_0, window_bounds = array<i64: 16, 16>}, {pipeline_mode = #tpu.pipeline_mode<synchronous>, transform_indices = @transform_1, window_bounds = array<i64: 16, 16>}, {pipeline_mode = #tpu.pipeline_mode<synchronous>, transform_indices = @transform_2, window_bounds = array<i64: 16, 16>}, {pipeline_mode = #tpu.pipeline_mode<synchronous>, transform_indices = @transform_3, window_bounds = array<i64: 16, 16>}, {pipeline_mode = #tpu.pipeline_mode<synchronous>, transform_indices = @transform_4, window_bounds = array<i64: 16, 16>}, {pipeline_mode = #tpu.pipeline_mode<synchronous>, transform_indices = @transform_5, window_bounds = array<i64: 16, 16>}, {transform_indices = @transform_6, window_bounds = array<i64: 1, 16, 128>}, {transform_indices = @transform_7, window_bounds = array<i64: 1, 16, 128>}, {transform_indices = @transform_8, window_bounds = array<i64: 1, 16, 128>}, {transform_indices = @transform_9, window_bounds = array<i64: 1, 16, 128>}, {transform_indices = @transform_10, window_bounds = array<i64: 1, 16, 128>}, {transform_indices = @transform_11, window_bounds = array<i64: 1, 16, 128>}, {transform_indices = @transform_12, window_bounds = array<i64: 1, 16, 128>}, {transform_indices = @transform_13, window_bounds = array<i64: 1, 16, 128>}]} {
    %c0 = arith.constant 0 : index
    %c0_0 = arith.constant 0 : index
    %0 = vector.load %arg1[%c0, %c0_0] : memref<16x16xbf16, #tpu.memory_space<vmem>>, vector<16x16xbf16>
    %c0_1 = arith.constant 0 : index
    %c0_2 = arith.constant 0 : index
    %1 = vector.load %arg2[%c0_1, %c0_2] : memref<16x16xbf16, #tpu.memory_space<vmem>>, vector<16x16xbf16>
    %c0_3 = arith.constant 0 : index
    %c0_4 = arith.constant 0 : index
    %2 = vector.load %arg3[%c0_3, %c0_4] : memref<16x16xbf16, #tpu.memory_space<vmem>>, vector<16x16xbf16>
    %c0_5 = arith.constant 0 : index
    %c0_6 = arith.constant 0 : index
    %3 = vector.load %arg4[%c0_5, %c0_6] : memref<16x16xbf16, #tpu.memory_space<vmem>>, vector<16x16xbf16>
    %c0_7 = arith.constant 0 : index
    %c0_8 = arith.constant 0 : index
    %4 = vector.load %arg5[%c0_7, %c0_8] : memref<16x16xbf16, #tpu.memory_space<vmem>>, vector<16x16xbf16>
    %c0_9 = arith.constant 0 : index
    %c0_10 = arith.constant 0 : index
    %5 = vector.load %arg6[%c0_9, %c0_10] : memref<16x16xbf16, #tpu.memory_space<vmem>>, vector<16x16xbf16>
    %c0_11 = arith.constant 0 : index
    %c0_12 = arith.constant 0 : index
    %c0_13 = arith.constant 0 : index
    %6 = vector.load %arg7[%c0_11, %c0_12, %c0_13] : memref<1x16x128xf32, #tpu.memory_space<vmem>>, vector<1x16x128xf32>
    %7 = vector.shape_cast %6 : vector<1x16x128xf32> to vector<16x128xf32>
    %c0_14 = arith.constant 0 : index
    %c0_15 = arith.constant 0 : index
    %c0_16 = arith.constant 0 : index
    %8 = vector.load %arg8[%c0_14, %c0_15, %c0_16] : memref<1x16x128xf32, #tpu.memory_space<vmem>>, vector<1x16x128xf32>
    %9 = vector.shape_cast %8 : vector<1x16x128xf32> to vector<16x128xf32>
    %c0_17 = arith.constant 0 : index
    %c0_18 = arith.constant 0 : index
    %c0_19 = arith.constant 0 : index
    %10 = vector.load %arg9[%c0_17, %c0_18, %c0_19] : memref<1x16x128xf32, #tpu.memory_space<vmem>>, vector<1x16x128xf32>
    %11 = vector.shape_cast %10 : vector<1x16x128xf32> to vector<16x128xf32>
    %c0_20 = arith.constant 0 : index
    %c0_21 = arith.constant 0 : index
    %c0_22 = arith.constant 0 : index
    %12 = vector.load %arg10[%c0_20, %c0_21, %c0_22] : memref<1x16x128xf32, #tpu.memory_space<vmem>>, vector<1x16x128xf32>
    %13 = vector.shape_cast %12 : vector<1x16x128xf32> to vector<16x128xf32>
    %c0_23 = arith.constant 0 : index
    %c0_24 = arith.constant 0 : index
    %c0_25 = arith.constant 0 : index
    %14 = vector.load %arg11[%c0_23, %c0_24, %c0_25] : memref<1x16x128xf32, #tpu.memory_space<vmem>>, vector<1x16x128xf32>
    %15 = vector.shape_cast %14 : vector<1x16x128xf32> to vector<16x128xf32>
    %c0_26 = arith.constant 0 : index
    %c0_27 = arith.constant 0 : index
    %c0_28 = arith.constant 0 : index
    %16 = vector.load %arg12[%c0_26, %c0_27, %c0_28] : memref<1x16x128xf32, #tpu.memory_space<vmem>>, vector<1x16x128xf32>
    %17 = vector.shape_cast %16 : vector<1x16x128xf32> to vector<16x128xf32>
    %18 = arith.truncf %7 : vector<16x128xf32> to vector<16x128xbf16>
    %cst = arith.constant dense<0.000000e+00> : vector<16x128xf32>
    %19 = tpu.matmul %0, %18, %cst {dimension_numbers = #tpu.dot_dimension_numbers<[1], [0], [0], [1], [0, 0, 1, 1], [], []>} : vector<16x16xbf16>, vector<16x128xbf16>, vector<16x128xf32> -> vector<16x128xf32>
    %20 = arith.truncf %9 : vector<16x128xf32> to vector<16x128xbf16>
    %cst_29 = arith.constant dense<0.000000e+00> : vector<16x128xf32>
    %21 = tpu.matmul %1, %20, %cst_29 {dimension_numbers = #tpu.dot_dimension_numbers<[1], [0], [0], [1], [0, 0, 1, 1], [], []>} : vector<16x16xbf16>, vector<16x128xbf16>, vector<16x128xf32> -> vector<16x128xf32>
    %22 = arith.addf %7, %9 : vector<16x128xf32>
    %23 = arith.truncf %22 : vector<16x128xf32> to vector<16x128xbf16>
    %cst_30 = arith.constant dense<0.000000e+00> : vector<16x128xf32>
    %24 = tpu.matmul %2, %23, %cst_30 {dimension_numbers = #tpu.dot_dimension_numbers<[1], [0], [0], [1], [0, 0, 1, 1], [], []>} : vector<16x16xbf16>, vector<16x128xbf16>, vector<16x128xf32> -> vector<16x128xf32>
    %25 = arith.subf %19, %21 : vector<16x128xf32>
    %26 = arith.subf %24, %19 : vector<16x128xf32>
    %27 = arith.subf %26, %21 : vector<16x128xf32>
    %28 = vector.extract_strided_slice %25 {offsets = [0, 0], sizes = [16, 16], strides = [1, 1]} : vector<16x128xf32> to vector<16x16xf32>
    %29 = vector.extract_strided_slice %27 {offsets = [0, 0], sizes = [16, 16], strides = [1, 1]} : vector<16x128xf32> to vector<16x16xf32>
    %30 = arith.truncf %28 : vector<16x16xf32> to vector<16x16xbf16>
    %cst_31 = arith.constant dense<0.000000e+00> : vector<16x16xf32>
    %31 = tpu.matmul %30, %3, %cst_31 {dimension_numbers = #tpu.dot_dimension_numbers<[1], [0], [0], [1], [0, 0, 1, 1], [], []>} : vector<16x16xbf16>, vector<16x16xbf16>, vector<16x16xf32> -> vector<16x16xf32>
    %32 = arith.truncf %29 : vector<16x16xf32> to vector<16x16xbf16>
    %cst_32 = arith.constant dense<0.000000e+00> : vector<16x16xf32>
    %33 = tpu.matmul %32, %4, %cst_32 {dimension_numbers = #tpu.dot_dimension_numbers<[1], [0], [0], [1], [0, 0, 1, 1], [], []>} : vector<16x16xbf16>, vector<16x16xbf16>, vector<16x16xf32> -> vector<16x16xf32>
    %34 = arith.addf %28, %29 : vector<16x16xf32>
    %35 = arith.truncf %34 : vector<16x16xf32> to vector<16x16xbf16>
    %cst_33 = arith.constant dense<0.000000e+00> : vector<16x16xf32>
    %36 = tpu.matmul %35, %5, %cst_33 {dimension_numbers = #tpu.dot_dimension_numbers<[1], [0], [0], [1], [0, 0, 1, 1], [], []>} : vector<16x16xbf16>, vector<16x16xbf16>, vector<16x16xf32> -> vector<16x16xf32>
    %37 = arith.subf %31, %33 : vector<16x16xf32>
    %38 = arith.subf %36, %31 : vector<16x16xf32>
    %39 = arith.subf %38, %33 : vector<16x16xf32>
    %40 = vector.extract_strided_slice %11 {offsets = [0, 0], sizes = [16, 16], strides = [1, 1]} : vector<16x128xf32> to vector<16x16xf32>
    %41 = arith.subf %40, %37 : vector<16x16xf32>
    %42 = vector.extract_strided_slice %15 {offsets = [0, 0], sizes = [16, 16], strides = [1, 1]} : vector<16x128xf32> to vector<16x16xf32>
    %43 = arith.mulf %41, %42 : vector<16x16xf32>
    %44 = arith.addf %37, %43 : vector<16x16xf32>
    %45 = vector.extract_strided_slice %13 {offsets = [0, 0], sizes = [16, 16], strides = [1, 1]} : vector<16x128xf32> to vector<16x16xf32>
    %46 = arith.subf %45, %39 : vector<16x16xf32>
    %47 = vector.extract_strided_slice %17 {offsets = [0, 0], sizes = [16, 16], strides = [1, 1]} : vector<16x128xf32> to vector<16x16xf32>
    %48 = arith.mulf %46, %47 : vector<16x16xf32>
    %49 = arith.addf %39, %48 : vector<16x16xf32>
    %50 = arith.truncf %44 : vector<16x16xf32> to vector<16x16xbf16>
    %cst_34 = arith.constant dense<0.000000e+00> : vector<16x16xf32>
    %51 = tpu.matmul %50, %3, %cst_34 {dimension_numbers = #tpu.dot_dimension_numbers<[1], [0], [0], [1], [0, 0, 1, 1], [], []>} : vector<16x16xbf16>, vector<16x16xbf16>, vector<16x16xf32> -> vector<16x16xf32>
    %52 = arith.truncf %49 : vector<16x16xf32> to vector<16x16xbf16>
    %cst_35 = arith.constant dense<0.000000e+00> : vector<16x16xf32>
    %53 = tpu.matmul %52, %4, %cst_35 {dimension_numbers = #tpu.dot_dimension_numbers<[1], [0], [0], [1], [0, 0, 1, 1], [], []>} : vector<16x16xbf16>, vector<16x16xbf16>, vector<16x16xf32> -> vector<16x16xf32>
    %54 = arith.subf %49, %44 : vector<16x16xf32>
    %55 = arith.truncf %54 : vector<16x16xf32> to vector<16x16xbf16>
    %cst_36 = arith.constant dense<0.000000e+00> : vector<16x16xf32>
    %56 = tpu.matmul %55, %5, %cst_36 {dimension_numbers = #tpu.dot_dimension_numbers<[1], [0], [0], [1], [0, 0, 1, 1], [], []>} : vector<16x16xbf16>, vector<16x16xbf16>, vector<16x16xf32> -> vector<16x16xf32>
    %57 = arith.addf %51, %53 : vector<16x16xf32>
    %c0_37 = arith.constant 0 : index
    %c0_38 = arith.constant 0 : index
    %58 = vector.load %arg15[%c0_37, %c0_38] : memref<16x128xf32, #tpu.memory_space<vmem>>, vector<16x16xf32>
    tpu.vector_store %arg15[%c0_37, %c0_38], %57 {strides = array<i32>} : memref<16x128xf32, #tpu.memory_space<vmem>>, vector<16x16xf32>,
    %59 = arith.addf %56, %51 : vector<16x16xf32>
    %60 = arith.subf %59, %53 : vector<16x16xf32>
    %c0_39 = arith.constant 0 : index
    %c0_40 = arith.constant 0 : index
    %61 = vector.load %arg16[%c0_39, %c0_40] : memref<16x128xf32, #tpu.memory_space<vmem>>, vector<16x16xf32>
    tpu.vector_store %arg16[%c0_39, %c0_40], %60 {strides = array<i32>} : memref<16x128xf32, #tpu.memory_space<vmem>>, vector<16x16xf32>,
    %62 = vector.extract_strided_slice %25 {offsets = [0, 16], sizes = [16, 16], strides = [1, 1]} : vector<16x128xf32> to vector<16x16xf32>
    %63 = vector.extract_strided_slice %27 {offsets = [0, 16], sizes = [16, 16], strides = [1, 1]} : vector<16x128xf32> to vector<16x16xf32>
    %64 = arith.truncf %62 : vector<16x16xf32> to vector<16x16xbf16>
    %cst_41 = arith.constant dense<0.000000e+00> : vector<16x16xf32>
    %65 = tpu.matmul %64, %3, %cst_41 {dimension_numbers = #tpu.dot_dimension_numbers<[1], [0], [0], [1], [0, 0, 1, 1], [], []>} : vector<16x16xbf16>, vector<16x16xbf16>, vector<16x16xf32> -> vector<16x16xf32>
    %66 = arith.truncf %63 : vector<16x16xf32> to vector<16x16xbf16>
    %cst_42 = arith.constant dense<0.000000e+00> : vector<16x16xf32>
    %67 = tpu.matmul %66, %4, %cst_42 {dimension_numbers = #tpu.dot_dimension_numbers<[1], [0], [0], [1], [0, 0, 1, 1], [], []>} : vector<16x16xbf16>, vector<16x16xbf16>, vector<16x16xf32> -> vector<16x16xf32>
    %68 = arith.addf %62, %63 : vector<16x16xf32>
    %69 = arith.truncf %68 : vector<16x16xf32> to vector<16x16xbf16>
    %cst_43 = arith.constant dense<0.000000e+00> : vector<16x16xf32>
    %70 = tpu.matmul %69, %5, %cst_43 {dimension_numbers = #tpu.dot_dimension_numbers<[1], [0], [0], [1], [0, 0, 1, 1], [], []>} : vector<16x16xbf16>, vector<16x16xbf16>, vector<16x16xf32> -> vector<16x16xf32>
    %71 = arith.subf %65, %67 : vector<16x16xf32>
    %72 = arith.subf %70, %65 : vector<16x16xf32>
    %73 = arith.subf %72, %67 : vector<16x16xf32>
    %74 = vector.extract_strided_slice %11 {offsets = [0, 16], sizes = [16, 16], strides = [1, 1]} : vector<16x128xf32> to vector<16x16xf32>
    %75 = arith.subf %74, %71 : vector<16x16xf32>
    %76 = vector.extract_strided_slice %15 {offsets = [0, 16], sizes = [16, 16], strides = [1, 1]} : vector<16x128xf32> to vector<16x16xf32>
    %77 = arith.mulf %75, %76 : vector<16x16xf32>
    %78 = arith.addf %71, %77 : vector<16x16xf32>
    %79 = vector.extract_strided_slice %13 {offsets = [0, 16], sizes = [16, 16], strides = [1, 1]} : vector<16x128xf32> to vector<16x16xf32>
    %80 = arith.subf %79, %73 : vector<16x16xf32>
    %81 = vector.extract_strided_slice %17 {offsets = [0, 16], sizes = [16, 16], strides = [1, 1]} : vector<16x128xf32> to vector<16x16xf32>
    %82 = arith.mulf %80, %81 : vector<16x16xf32>
    %83 = arith.addf %73, %82 : vector<16x16xf32>
    %84 = arith.truncf %78 : vector<16x16xf32> to vector<16x16xbf16>
    %cst_44 = arith.constant dense<0.000000e+00> : vector<16x16xf32>
    %85 = tpu.matmul %84, %3, %cst_44 {dimension_numbers = #tpu.dot_dimension_numbers<[1], [0], [0], [1], [0, 0, 1, 1], [], []>} : vector<16x16xbf16>, vector<16x16xbf16>, vector<16x16xf32> -> vector<16x16xf32>
    %86 = arith.truncf %83 : vector<16x16xf32> to vector<16x16xbf16>
    %cst_45 = arith.constant dense<0.000000e+00> : vector<16x16xf32>
    %87 = tpu.matmul %86, %4, %cst_45 {dimension_numbers = #tpu.dot_dimension_numbers<[1], [0], [0], [1], [0, 0, 1, 1], [], []>} : vector<16x16xbf16>, vector<16x16xbf16>, vector<16x16xf32> -> vector<16x16xf32>
    %88 = arith.subf %83, %78 : vector<16x16xf32>
    %89 = arith.truncf %88 : vector<16x16xf32> to vector<16x16xbf16>
    %cst_46 = arith.constant dense<0.000000e+00> : vector<16x16xf32>
    %90 = tpu.matmul %89, %5, %cst_46 {dimension_numbers = #tpu.dot_dimension_numbers<[1], [0], [0], [1], [0, 0, 1, 1], [], []>} : vector<16x16xbf16>, vector<16x16xbf16>, vector<16x16xf32> -> vector<16x16xf32>
    %91 = arith.addf %85, %87 : vector<16x16xf32>
    %c0_47 = arith.constant 0 : index
    %c16 = arith.constant 16 : index
    %92 = vector.load %arg15[%c0_47, %c16] : memref<16x128xf32, #tpu.memory_space<vmem>>, vector<16x16xf32>
    tpu.vector_store %arg15[%c0_47, %c16], %91 {strides = array<i32>} : memref<16x128xf32, #tpu.memory_space<vmem>>, vector<16x16xf32>,
    %93 = arith.addf %90, %85 : vector<16x16xf32>
    %94 = arith.subf %93, %87 : vector<16x16xf32>
    %c0_48 = arith.constant 0 : index
    %c16_49 = arith.constant 16 : index
    %95 = vector.load %arg16[%c0_48, %c16_49] : memref<16x128xf32, #tpu.memory_space<vmem>>, vector<16x16xf32>
    tpu.vector_store %arg16[%c0_48, %c16_49], %94 {strides = array<i32>} : memref<16x128xf32, #tpu.memory_space<vmem>>, vector<16x16xf32>,
    %96 = vector.extract_strided_slice %25 {offsets = [0, 32], sizes = [16, 16], strides = [1, 1]} : vector<16x128xf32> to vector<16x16xf32>
    %97 = vector.extract_strided_slice %27 {offsets = [0, 32], sizes = [16, 16], strides = [1, 1]} : vector<16x128xf32> to vector<16x16xf32>
    %98 = arith.truncf %96 : vector<16x16xf32> to vector<16x16xbf16>
    %cst_50 = arith.constant dense<0.000000e+00> : vector<16x16xf32>
    %99 = tpu.matmul %98, %3, %cst_50 {dimension_numbers = #tpu.dot_dimension_numbers<[1], [0], [0], [1], [0, 0, 1, 1], [], []>} : vector<16x16xbf16>, vector<16x16xbf16>, vector<16x16xf32> -> vector<16x16xf32>
    %100 = arith.truncf %97 : vector<16x16xf32> to vector<16x16xbf16>
    %cst_51 = arith.constant dense<0.000000e+00> : vector<16x16xf32>
    %101 = tpu.matmul %100, %4, %cst_51 {dimension_numbers = #tpu.dot_dimension_numbers<[1], [0], [0], [1], [0, 0, 1, 1], [], []>} : vector<16x16xbf16>, vector<16x16xbf16>, vector<16x16xf32> -> vector<16x16xf32>
    %102 = arith.addf %96, %97 : vector<16x16xf32>
    %103 = arith.truncf %102 : vector<16x16xf32> to vector<16x16xbf16>
    %cst_52 = arith.constant dense<0.000000e+00> : vector<16x16xf32>
    %104 = tpu.matmul %103, %5, %cst_52 {dimension_numbers = #tpu.dot_dimension_numbers<[1], [0], [0], [1], [0, 0, 1, 1], [], []>} : vector<16x16xbf16>, vector<16x16xbf16>, vector<16x16xf32> -> vector<16x16xf32>
    %105 = arith.subf %99, %101 : vector<16x16xf32>
    %106 = arith.subf %104, %99 : vector<16x16xf32>
    %107 = arith.subf %106, %101 : vector<16x16xf32>
    %108 = vector.extract_strided_slice %11 {offsets = [0, 32], sizes = [16, 16], strides = [1, 1]} : vector<16x128xf32> to vector<16x16xf32>
    %109 = arith.subf %108, %105 : vector<16x16xf32>
    %110 = vector.extract_strided_slice %15 {offsets = [0, 32], sizes = [16, 16], strides = [1, 1]} : vector<16x128xf32> to vector<16x16xf32>
    %111 = arith.mulf %109, %110 : vector<16x16xf32>
    %112 = arith.addf %105, %111 : vector<16x16xf32>
    %113 = vector.extract_strided_slice %13 {offsets = [0, 32], sizes = [16, 16], strides = [1, 1]} : vector<16x128xf32> to vector<16x16xf32>
    %114 = arith.subf %113, %107 : vector<16x16xf32>
    %115 = vector.extract_strided_slice %17 {offsets = [0, 32], sizes = [16, 16], strides = [1, 1]} : vector<16x128xf32> to vector<16x16xf32>
    %116 = arith.mulf %114, %115 : vector<16x16xf32>
    %117 = arith.addf %107, %116 : vector<16x16xf32>
    %118 = arith.truncf %112 : vector<16x16xf32> to vector<16x16xbf16>
    %cst_53 = arith.constant dense<0.000000e+00> : vector<16x16xf32>
    %119 = tpu.matmul %118, %3, %cst_53 {dimension_numbers = #tpu.dot_dimension_numbers<[1], [0], [0], [1], [0, 0, 1, 1], [], []>} : vector<16x16xbf16>, vector<16x16xbf16>, vector<16x16xf32> -> vector<16x16xf32>
    %120 = arith.truncf %117 : vector<16x16xf32> to vector<16x16xbf16>
    %cst_54 = arith.constant dense<0.000000e+00> : vector<16x16xf32>
    %121 = tpu.matmul %120, %4, %cst_54 {dimension_numbers = #tpu.dot_dimension_numbers<[1], [0], [0], [1], [0, 0, 1, 1], [], []>} : vector<16x16xbf16>, vector<16x16xbf16>, vector<16x16xf32> -> vector<16x16xf32>
    %122 = arith.subf %117, %112 : vector<16x16xf32>
    %123 = arith.truncf %122 : vector<16x16xf32> to vector<16x16xbf16>
    %cst_55 = arith.constant dense<0.000000e+00> : vector<16x16xf32>
    %124 = tpu.matmul %123, %5, %cst_55 {dimension_numbers = #tpu.dot_dimension_numbers<[1], [0], [0], [1], [0, 0, 1, 1], [], []>} : vector<16x16xbf16>, vector<16x16xbf16>, vector<16x16xf32> -> vector<16x16xf32>
    %125 = arith.addf %119, %121 : vector<16x16xf32>
    %c0_56 = arith.constant 0 : index
    %c32 = arith.constant 32 : index
    %126 = vector.load %arg15[%c0_56, %c32] : memref<16x128xf32, #tpu.memory_space<vmem>>, vector<16x16xf32>
    tpu.vector_store %arg15[%c0_56, %c32], %125 {strides = array<i32>} : memref<16x128xf32, #tpu.memory_space<vmem>>, vector<16x16xf32>,
    %127 = arith.addf %124, %119 : vector<16x16xf32>
    %128 = arith.subf %127, %121 : vector<16x16xf32>
    %c0_57 = arith.constant 0 : index
    %c32_58 = arith.constant 32 : index
    %129 = vector.load %arg16[%c0_57, %c32_58] : memref<16x128xf32, #tpu.memory_space<vmem>>, vector<16x16xf32>
    tpu.vector_store %arg16[%c0_57, %c32_58], %128 {strides = array<i32>} : memref<16x128xf32, #tpu.memory_space<vmem>>, vector<16x16xf32>,
    %130 = vector.extract_strided_slice %25 {offsets = [0, 48], sizes = [16, 16], strides = [1, 1]} : vector<16x128xf32> to vector<16x16xf32>
    %131 = vector.extract_strided_slice %27 {offsets = [0, 48], sizes = [16, 16], strides = [1, 1]} : vector<16x128xf32> to vector<16x16xf32>
    %132 = arith.truncf %130 : vector<16x16xf32> to vector<16x16xbf16>
    %cst_59 = arith.constant dense<0.000000e+00> : vector<16x16xf32>
    %133 = tpu.matmul %132, %3, %cst_59 {dimension_numbers = #tpu.dot_dimension_numbers<[1], [0], [0], [1], [0, 0, 1, 1], [], []>} : vector<16x16xbf16>, vector<16x16xbf16>, vector<16x16xf32> -> vector<16x16xf32>
    %134 = arith.truncf %131 : vector<16x16xf32> to vector<16x16xbf16>
    %cst_60 = arith.constant dense<0.000000e+00> : vector<16x16xf32>
    %135 = tpu.matmul %134, %4, %cst_60 {dimension_numbers = #tpu.dot_dimension_numbers<[1], [0], [0], [1], [0, 0, 1, 1], [], []>} : vector<16x16xbf16>, vector<16x16xbf16>, vector<16x16xf32> -> vector<16x16xf32>
    %136 = arith.addf %130, %131 : vector<16x16xf32>
    %137 = arith.truncf %136 : vector<16x16xf32> to vector<16x16xbf16>
    %cst_61 = arith.constant dense<0.000000e+00> : vector<16x16xf32>
    %138 = tpu.matmul %137, %5, %cst_61 {dimension_numbers = #tpu.dot_dimension_numbers<[1], [0], [0], [1], [0, 0, 1, 1], [], []>} : vector<16x16xbf16>, vector<16x16xbf16>, vector<16x16xf32> -> vector<16x16xf32>
    %139 = arith.subf %133, %135 : vector<16x16xf32>
    %140 = arith.subf %138, %133 : vector<16x16xf32>
    %141 = arith.subf %140, %135 : vector<16x16xf32>
    %142 = vector.extract_strided_slice %11 {offsets = [0, 48], sizes = [16, 16], strides = [1, 1]} : vector<16x128xf32> to vector<16x16xf32>
    %143 = arith.subf %142, %139 : vector<16x16xf32>
    %144 = vector.extract_strided_slice %15 {offsets = [0, 48], sizes = [16, 16], strides = [1, 1]} : vector<16x128xf32> to vector<16x16xf32>
    %145 = arith.mulf %143, %144 : vector<16x16xf32>
    %146 = arith.addf %139, %145 : vector<16x16xf32>
    %147 = vector.extract_strided_slice %13 {offsets = [0, 48], sizes = [16, 16], strides = [1, 1]} : vector<16x128xf32> to vector<16x16xf32>
    %148 = arith.subf %147, %141 : vector<16x16xf32>
    %149 = vector.extract_strided_slice %17 {offsets = [0, 48], sizes = [16, 16], strides = [1, 1]} : vector<16x128xf32> to vector<16x16xf32>
    %150 = arith.mulf %148, %149 : vector<16x16xf32>
    %151 = arith.addf %141, %150 : vector<16x16xf32>
    %152 = arith.truncf %146 : vector<16x16xf32> to vector<16x16xbf16>
    %cst_62 = arith.constant dense<0.000000e+00> : vector<16x16xf32>
    %153 = tpu.matmul %152, %3, %cst_62 {dimension_numbers = #tpu.dot_dimension_numbers<[1], [0], [0], [1], [0, 0, 1, 1], [], []>} : vector<16x16xbf16>, vector<16x16xbf16>, vector<16x16xf32> -> vector<16x16xf32>
    %154 = arith.truncf %151 : vector<16x16xf32> to vector<16x16xbf16>
    %cst_63 = arith.constant dense<0.000000e+00> : vector<16x16xf32>
    %155 = tpu.matmul %154, %4, %cst_63 {dimension_numbers = #tpu.dot_dimension_numbers<[1], [0], [0], [1], [0, 0, 1, 1], [], []>} : vector<16x16xbf16>, vector<16x16xbf16>, vector<16x16xf32> -> vector<16x16xf32>
    %156 = arith.subf %151, %146 : vector<16x16xf32>
    %157 = arith.truncf %156 : vector<16x16xf32> to vector<16x16xbf16>
    %cst_64 = arith.constant dense<0.000000e+00> : vector<16x16xf32>
    %158 = tpu.matmul %157, %5, %cst_64 {dimension_numbers = #tpu.dot_dimension_numbers<[1], [0], [0], [1], [0, 0, 1, 1], [], []>} : vector<16x16xbf16>, vector<16x16xbf16>, vector<16x16xf32> -> vector<16x16xf32>
    %159 = arith.addf %153, %155 : vector<16x16xf32>
    %c0_65 = arith.constant 0 : index
    %c48 = arith.constant 48 : index
    %160 = vector.load %arg15[%c0_65, %c48] : memref<16x128xf32, #tpu.memory_space<vmem>>, vector<16x16xf32>
    tpu.vector_store %arg15[%c0_65, %c48], %159 {strides = array<i32>} : memref<16x128xf32, #tpu.memory_space<vmem>>, vector<16x16xf32>,
    %161 = arith.addf %158, %153 : vector<16x16xf32>
    %162 = arith.subf %161, %155 : vector<16x16xf32>
    %c0_66 = arith.constant 0 : index
    %c48_67 = arith.constant 48 : index
    %163 = vector.load %arg16[%c0_66, %c48_67] : memref<16x128xf32, #tpu.memory_space<vmem>>, vector<16x16xf32>
    tpu.vector_store %arg16[%c0_66, %c48_67], %162 {strides = array<i32>} : memref<16x128xf32, #tpu.memory_space<vmem>>, vector<16x16xf32>,
    %164 = vector.extract_strided_slice %25 {offsets = [0, 64], sizes = [16, 16], strides = [1, 1]} : vector<16x128xf32> to vector<16x16xf32>
    %165 = vector.extract_strided_slice %27 {offsets = [0, 64], sizes = [16, 16], strides = [1, 1]} : vector<16x128xf32> to vector<16x16xf32>
    %166 = arith.truncf %164 : vector<16x16xf32> to vector<16x16xbf16>
    %cst_68 = arith.constant dense<0.000000e+00> : vector<16x16xf32>
    %167 = tpu.matmul %166, %3, %cst_68 {dimension_numbers = #tpu.dot_dimension_numbers<[1], [0], [0], [1], [0, 0, 1, 1], [], []>} : vector<16x16xbf16>, vector<16x16xbf16>, vector<16x16xf32> -> vector<16x16xf32>
    %168 = arith.truncf %165 : vector<16x16xf32> to vector<16x16xbf16>
    %cst_69 = arith.constant dense<0.000000e+00> : vector<16x16xf32>
    %169 = tpu.matmul %168, %4, %cst_69 {dimension_numbers = #tpu.dot_dimension_numbers<[1], [0], [0], [1], [0, 0, 1, 1], [], []>} : vector<16x16xbf16>, vector<16x16xbf16>, vector<16x16xf32> -> vector<16x16xf32>
    %170 = arith.addf %164, %165 : vector<16x16xf32>
    %171 = arith.truncf %170 : vector<16x16xf32> to vector<16x16xbf16>
    %cst_70 = arith.constant dense<0.000000e+00> : vector<16x16xf32>
    %172 = tpu.matmul %171, %5, %cst_70 {dimension_numbers = #tpu.dot_dimension_numbers<[1], [0], [0], [1], [0, 0, 1, 1], [], []>} : vector<16x16xbf16>, vector<16x16xbf16>, vector<16x16xf32> -> vector<16x16xf32>
    %173 = arith.subf %167, %169 : vector<16x16xf32>
    %174 = arith.subf %172, %167 : vector<16x16xf32>
    %175 = arith.subf %174, %169 : vector<16x16xf32>
    %176 = vector.extract_strided_slice %11 {offsets = [0, 64], sizes = [16, 16], strides = [1, 1]} : vector<16x128xf32> to vector<16x16xf32>
    %177 = arith.subf %176, %173 : vector<16x16xf32>
    %178 = vector.extract_strided_slice %15 {offsets = [0, 64], sizes = [16, 16], strides = [1, 1]} : vector<16x128xf32> to vector<16x16xf32>
    %179 = arith.mulf %177, %178 : vector<16x16xf32>
    %180 = arith.addf %173, %179 : vector<16x16xf32>
    %181 = vector.extract_strided_slice %13 {offsets = [0, 64], sizes = [16, 16], strides = [1, 1]} : vector<16x128xf32> to vector<16x16xf32>
    %182 = arith.subf %181, %175 : vector<16x16xf32>
    %183 = vector.extract_strided_slice %17 {offsets = [0, 64], sizes = [16, 16], strides = [1, 1]} : vector<16x128xf32> to vector<16x16xf32>
    %184 = arith.mulf %182, %183 : vector<16x16xf32>
    %185 = arith.addf %175, %184 : vector<16x16xf32>
    %186 = arith.truncf %180 : vector<16x16xf32> to vector<16x16xbf16>
    %cst_71 = arith.constant dense<0.000000e+00> : vector<16x16xf32>
    %187 = tpu.matmul %186, %3, %cst_71 {dimension_numbers = #tpu.dot_dimension_numbers<[1], [0], [0], [1], [0, 0, 1, 1], [], []>} : vector<16x16xbf16>, vector<16x16xbf16>, vector<16x16xf32> -> vector<16x16xf32>
    %188 = arith.truncf %185 : vector<16x16xf32> to vector<16x16xbf16>
    %cst_72 = arith.constant dense<0.000000e+00> : vector<16x16xf32>
    %189 = tpu.matmul %188, %4, %cst_72 {dimension_numbers = #tpu.dot_dimension_numbers<[1], [0], [0], [1], [0, 0, 1, 1], [], []>} : vector<16x16xbf16>, vector<16x16xbf16>, vector<16x16xf32> -> vector<16x16xf32>
    %190 = arith.subf %185, %180 : vector<16x16xf32>
    %191 = arith.truncf %190 : vector<16x16xf32> to vector<16x16xbf16>
    %cst_73 = arith.constant dense<0.000000e+00> : vector<16x16xf32>
    %192 = tpu.matmul %191, %5, %cst_73 {dimension_numbers = #tpu.dot_dimension_numbers<[1], [0], [0], [1], [0, 0, 1, 1], [], []>} : vector<16x16xbf16>, vector<16x16xbf16>, vector<16x16xf32> -> vector<16x16xf32>
    %193 = arith.addf %187, %189 : vector<16x16xf32>
    %c0_74 = arith.constant 0 : index
    %c64 = arith.constant 64 : index
    %194 = vector.load %arg15[%c0_74, %c64] : memref<16x128xf32, #tpu.memory_space<vmem>>, vector<16x16xf32>
    tpu.vector_store %arg15[%c0_74, %c64], %193 {strides = array<i32>} : memref<16x128xf32, #tpu.memory_space<vmem>>, vector<16x16xf32>,
    %195 = arith.addf %192, %187 : vector<16x16xf32>
    %196 = arith.subf %195, %189 : vector<16x16xf32>
    %c0_75 = arith.constant 0 : index
    %c64_76 = arith.constant 64 : index
    %197 = vector.load %arg16[%c0_75, %c64_76] : memref<16x128xf32, #tpu.memory_space<vmem>>, vector<16x16xf32>
    tpu.vector_store %arg16[%c0_75, %c64_76], %196 {strides = array<i32>} : memref<16x128xf32, #tpu.memory_space<vmem>>, vector<16x16xf32>,
    %198 = vector.extract_strided_slice %25 {offsets = [0, 80], sizes = [16, 16], strides = [1, 1]} : vector<16x128xf32> to vector<16x16xf32>
    %199 = vector.extract_strided_slice %27 {offsets = [0, 80], sizes = [16, 16], strides = [1, 1]} : vector<16x128xf32> to vector<16x16xf32>
    %200 = arith.truncf %198 : vector<16x16xf32> to vector<16x16xbf16>
    %cst_77 = arith.constant dense<0.000000e+00> : vector<16x16xf32>
    %201 = tpu.matmul %200, %3, %cst_77 {dimension_numbers = #tpu.dot_dimension_numbers<[1], [0], [0], [1], [0, 0, 1, 1], [], []>} : vector<16x16xbf16>, vector<16x16xbf16>, vector<16x16xf32> -> vector<16x16xf32>
    %202 = arith.truncf %199 : vector<16x16xf32> to vector<16x16xbf16>
    %cst_78 = arith.constant dense<0.000000e+00> : vector<16x16xf32>
    %203 = tpu.matmul %202, %4, %cst_78 {dimension_numbers = #tpu.dot_dimension_numbers<[1], [0], [0], [1], [0, 0, 1, 1], [], []>} : vector<16x16xbf16>, vector<16x16xbf16>, vector<16x16xf32> -> vector<16x16xf32>
    %204 = arith.addf %198, %199 : vector<16x16xf32>
    %205 = arith.truncf %204 : vector<16x16xf32> to vector<16x16xbf16>
    %cst_79 = arith.constant dense<0.000000e+00> : vector<16x16xf32>
    %206 = tpu.matmul %205, %5, %cst_79 {dimension_numbers = #tpu.dot_dimension_numbers<[1], [0], [0], [1], [0, 0, 1, 1], [], []>} : vector<16x16xbf16>, vector<16x16xbf16>, vector<16x16xf32> -> vector<16x16xf32>
    %207 = arith.subf %201, %203 : vector<16x16xf32>
    %208 = arith.subf %206, %201 : vector<16x16xf32>
    %209 = arith.subf %208, %203 : vector<16x16xf32>
    %210 = vector.extract_strided_slice %11 {offsets = [0, 80], sizes = [16, 16], strides = [1, 1]} : vector<16x128xf32> to vector<16x16xf32>
    %211 = arith.subf %210, %207 : vector<16x16xf32>
    %212 = vector.extract_strided_slice %15 {offsets = [0, 80], sizes = [16, 16], strides = [1, 1]} : vector<16x128xf32> to vector<16x16xf32>
    %213 = arith.mulf %211, %212 : vector<16x16xf32>
    %214 = arith.addf %207, %213 : vector<16x16xf32>
    %215 = vector.extract_strided_slice %13 {offsets = [0, 80], sizes = [16, 16], strides = [1, 1]} : vector<16x128xf32> to vector<16x16xf32>
    %216 = arith.subf %215, %209 : vector<16x16xf32>
    %217 = vector.extract_strided_slice %17 {offsets = [0, 80], sizes = [16, 16], strides = [1, 1]} : vector<16x128xf32> to vector<16x16xf32>
    %218 = arith.mulf %216, %217 : vector<16x16xf32>
    %219 = arith.addf %209, %218 : vector<16x16xf32>
    %220 = arith.truncf %214 : vector<16x16xf32> to vector<16x16xbf16>
    %cst_80 = arith.constant dense<0.000000e+00> : vector<16x16xf32>
    %221 = tpu.matmul %220, %3, %cst_80 {dimension_numbers = #tpu.dot_dimension_numbers<[1], [0], [0], [1], [0, 0, 1, 1], [], []>} : vector<16x16xbf16>, vector<16x16xbf16>, vector<16x16xf32> -> vector<16x16xf32>
    %222 = arith.truncf %219 : vector<16x16xf32> to vector<16x16xbf16>
    %cst_81 = arith.constant dense<0.000000e+00> : vector<16x16xf32>
    %223 = tpu.matmul %222, %4, %cst_81 {dimension_numbers = #tpu.dot_dimension_numbers<[1], [0], [0], [1], [0, 0, 1, 1], [], []>} : vector<16x16xbf16>, vector<16x16xbf16>, vector<16x16xf32> -> vector<16x16xf32>
    %224 = arith.subf %219, %214 : vector<16x16xf32>
    %225 = arith.truncf %224 : vector<16x16xf32> to vector<16x16xbf16>
    %cst_82 = arith.constant dense<0.000000e+00> : vector<16x16xf32>
    %226 = tpu.matmul %225, %5, %cst_82 {dimension_numbers = #tpu.dot_dimension_numbers<[1], [0], [0], [1], [0, 0, 1, 1], [], []>} : vector<16x16xbf16>, vector<16x16xbf16>, vector<16x16xf32> -> vector<16x16xf32>
    %227 = arith.addf %221, %223 : vector<16x16xf32>
    %c0_83 = arith.constant 0 : index
    %c80 = arith.constant 80 : index
    %228 = vector.load %arg15[%c0_83, %c80] : memref<16x128xf32, #tpu.memory_space<vmem>>, vector<16x16xf32>
    tpu.vector_store %arg15[%c0_83, %c80], %227 {strides = array<i32>} : memref<16x128xf32, #tpu.memory_space<vmem>>, vector<16x16xf32>,
    %229 = arith.addf %226, %221 : vector<16x16xf32>
    %230 = arith.subf %229, %223 : vector<16x16xf32>
    %c0_84 = arith.constant 0 : index
    %c80_85 = arith.constant 80 : index
    %231 = vector.load %arg16[%c0_84, %c80_85] : memref<16x128xf32, #tpu.memory_space<vmem>>, vector<16x16xf32>
    tpu.vector_store %arg16[%c0_84, %c80_85], %230 {strides = array<i32>} : memref<16x128xf32, #tpu.memory_space<vmem>>, vector<16x16xf32>,
    %232 = vector.extract_strided_slice %25 {offsets = [0, 96], sizes = [16, 16], strides = [1, 1]} : vector<16x128xf32> to vector<16x16xf32>
    %233 = vector.extract_strided_slice %27 {offsets = [0, 96], sizes = [16, 16], strides = [1, 1]} : vector<16x128xf32> to vector<16x16xf32>
    %234 = arith.truncf %232 : vector<16x16xf32> to vector<16x16xbf16>
    %cst_86 = arith.constant dense<0.000000e+00> : vector<16x16xf32>
    %235 = tpu.matmul %234, %3, %cst_86 {dimension_numbers = #tpu.dot_dimension_numbers<[1], [0], [0], [1], [0, 0, 1, 1], [], []>} : vector<16x16xbf16>, vector<16x16xbf16>, vector<16x16xf32> -> vector<16x16xf32>
    %236 = arith.truncf %233 : vector<16x16xf32> to vector<16x16xbf16>
    %cst_87 = arith.constant dense<0.000000e+00> : vector<16x16xf32>
    %237 = tpu.matmul %236, %4, %cst_87 {dimension_numbers = #tpu.dot_dimension_numbers<[1], [0], [0], [1], [0, 0, 1, 1], [], []>} : vector<16x16xbf16>, vector<16x16xbf16>, vector<16x16xf32> -> vector<16x16xf32>
    %238 = arith.addf %232, %233 : vector<16x16xf32>
    %239 = arith.truncf %238 : vector<16x16xf32> to vector<16x16xbf16>
    %cst_88 = arith.constant dense<0.000000e+00> : vector<16x16xf32>
    %240 = tpu.matmul %239, %5, %cst_88 {dimension_numbers = #tpu.dot_dimension_numbers<[1], [0], [0], [1], [0, 0, 1, 1], [], []>} : vector<16x16xbf16>, vector<16x16xbf16>, vector<16x16xf32> -> vector<16x16xf32>
    %241 = arith.subf %235, %237 : vector<16x16xf32>
    %242 = arith.subf %240, %235 : vector<16x16xf32>
    %243 = arith.subf %242, %237 : vector<16x16xf32>
    %244 = vector.extract_strided_slice %11 {offsets = [0, 96], sizes = [16, 16], strides = [1, 1]} : vector<16x128xf32> to vector<16x16xf32>
    %245 = arith.subf %244, %241 : vector<16x16xf32>
    %246 = vector.extract_strided_slice %15 {offsets = [0, 96], sizes = [16, 16], strides = [1, 1]} : vector<16x128xf32> to vector<16x16xf32>
    %247 = arith.mulf %245, %246 : vector<16x16xf32>
    %248 = arith.addf %241, %247 : vector<16x16xf32>
    %249 = vector.extract_strided_slice %13 {offsets = [0, 96], sizes = [16, 16], strides = [1, 1]} : vector<16x128xf32> to vector<16x16xf32>
    %250 = arith.subf %249, %243 : vector<16x16xf32>
    %251 = vector.extract_strided_slice %17 {offsets = [0, 96], sizes = [16, 16], strides = [1, 1]} : vector<16x128xf32> to vector<16x16xf32>
    %252 = arith.mulf %250, %251 : vector<16x16xf32>
    %253 = arith.addf %243, %252 : vector<16x16xf32>
    %254 = arith.truncf %248 : vector<16x16xf32> to vector<16x16xbf16>
    %cst_89 = arith.constant dense<0.000000e+00> : vector<16x16xf32>
    %255 = tpu.matmul %254, %3, %cst_89 {dimension_numbers = #tpu.dot_dimension_numbers<[1], [0], [0], [1], [0, 0, 1, 1], [], []>} : vector<16x16xbf16>, vector<16x16xbf16>, vector<16x16xf32> -> vector<16x16xf32>
    %256 = arith.truncf %253 : vector<16x16xf32> to vector<16x16xbf16>
    %cst_90 = arith.constant dense<0.000000e+00> : vector<16x16xf32>
    %257 = tpu.matmul %256, %4, %cst_90 {dimension_numbers = #tpu.dot_dimension_numbers<[1], [0], [0], [1], [0, 0, 1, 1], [], []>} : vector<16x16xbf16>, vector<16x16xbf16>, vector<16x16xf32> -> vector<16x16xf32>
    %258 = arith.subf %253, %248 : vector<16x16xf32>
    %259 = arith.truncf %258 : vector<16x16xf32> to vector<16x16xbf16>
    %cst_91 = arith.constant dense<0.000000e+00> : vector<16x16xf32>
    %260 = tpu.matmul %259, %5, %cst_91 {dimension_numbers = #tpu.dot_dimension_numbers<[1], [0], [0], [1], [0, 0, 1, 1], [], []>} : vector<16x16xbf16>, vector<16x16xbf16>, vector<16x16xf32> -> vector<16x16xf32>
    %261 = arith.addf %255, %257 : vector<16x16xf32>
    %c0_92 = arith.constant 0 : index
    %c96 = arith.constant 96 : index
    %262 = vector.load %arg15[%c0_92, %c96] : memref<16x128xf32, #tpu.memory_space<vmem>>, vector<16x16xf32>
    tpu.vector_store %arg15[%c0_92, %c96], %261 {strides = array<i32>} : memref<16x128xf32, #tpu.memory_space<vmem>>, vector<16x16xf32>,
    %263 = arith.addf %260, %255 : vector<16x16xf32>
    %264 = arith.subf %263, %257 : vector<16x16xf32>
    %c0_93 = arith.constant 0 : index
    %c96_94 = arith.constant 96 : index
    %265 = vector.load %arg16[%c0_93, %c96_94] : memref<16x128xf32, #tpu.memory_space<vmem>>, vector<16x16xf32>
    tpu.vector_store %arg16[%c0_93, %c96_94], %264 {strides = array<i32>} : memref<16x128xf32, #tpu.memory_space<vmem>>, vector<16x16xf32>,
    %266 = vector.extract_strided_slice %25 {offsets = [0, 112], sizes = [16, 16], strides = [1, 1]} : vector<16x128xf32> to vector<16x16xf32>
    %267 = vector.extract_strided_slice %27 {offsets = [0, 112], sizes = [16, 16], strides = [1, 1]} : vector<16x128xf32> to vector<16x16xf32>
    %268 = arith.truncf %266 : vector<16x16xf32> to vector<16x16xbf16>
    %cst_95 = arith.constant dense<0.000000e+00> : vector<16x16xf32>
    %269 = tpu.matmul %268, %3, %cst_95 {dimension_numbers = #tpu.dot_dimension_numbers<[1], [0], [0], [1], [0, 0, 1, 1], [], []>} : vector<16x16xbf16>, vector<16x16xbf16>, vector<16x16xf32> -> vector<16x16xf32>
    %270 = arith.truncf %267 : vector<16x16xf32> to vector<16x16xbf16>
    %cst_96 = arith.constant dense<0.000000e+00> : vector<16x16xf32>
    %271 = tpu.matmul %270, %4, %cst_96 {dimension_numbers = #tpu.dot_dimension_numbers<[1], [0], [0], [1], [0, 0, 1, 1], [], []>} : vector<16x16xbf16>, vector<16x16xbf16>, vector<16x16xf32> -> vector<16x16xf32>
    %272 = arith.addf %266, %267 : vector<16x16xf32>
    %273 = arith.truncf %272 : vector<16x16xf32> to vector<16x16xbf16>
    %cst_97 = arith.constant dense<0.000000e+00> : vector<16x16xf32>
    %274 = tpu.matmul %273, %5, %cst_97 {dimension_numbers = #tpu.dot_dimension_numbers<[1], [0], [0], [1], [0, 0, 1, 1], [], []>} : vector<16x16xbf16>, vector<16x16xbf16>, vector<16x16xf32> -> vector<16x16xf32>
    %275 = arith.subf %269, %271 : vector<16x16xf32>
    %276 = arith.subf %274, %269 : vector<16x16xf32>
    %277 = arith.subf %276, %271 : vector<16x16xf32>
    %278 = vector.extract_strided_slice %11 {offsets = [0, 112], sizes = [16, 16], strides = [1, 1]} : vector<16x128xf32> to vector<16x16xf32>
    %279 = arith.subf %278, %275 : vector<16x16xf32>
    %280 = vector.extract_strided_slice %15 {offsets = [0, 112], sizes = [16, 16], strides = [1, 1]} : vector<16x128xf32> to vector<16x16xf32>
    %281 = arith.mulf %279, %280 : vector<16x16xf32>
    %282 = arith.addf %275, %281 : vector<16x16xf32>
    %283 = vector.extract_strided_slice %13 {offsets = [0, 112], sizes = [16, 16], strides = [1, 1]} : vector<16x128xf32> to vector<16x16xf32>
    %284 = arith.subf %283, %277 : vector<16x16xf32>
    %285 = vector.extract_strided_slice %17 {offsets = [0, 112], sizes = [16, 16], strides = [1, 1]} : vector<16x128xf32> to vector<16x16xf32>
    %286 = arith.mulf %284, %285 : vector<16x16xf32>
    %287 = arith.addf %277, %286 : vector<16x16xf32>
    %288 = arith.truncf %282 : vector<16x16xf32> to vector<16x16xbf16>
    %cst_98 = arith.constant dense<0.000000e+00> : vector<16x16xf32>
    %289 = tpu.matmul %288, %3, %cst_98 {dimension_numbers = #tpu.dot_dimension_numbers<[1], [0], [0], [1], [0, 0, 1, 1], [], []>} : vector<16x16xbf16>, vector<16x16xbf16>, vector<16x16xf32> -> vector<16x16xf32>
    %290 = arith.truncf %287 : vector<16x16xf32> to vector<16x16xbf16>
    %cst_99 = arith.constant dense<0.000000e+00> : vector<16x16xf32>
    %291 = tpu.matmul %290, %4, %cst_99 {dimension_numbers = #tpu.dot_dimension_numbers<[1], [0], [0], [1], [0, 0, 1, 1], [], []>} : vector<16x16xbf16>, vector<16x16xbf16>, vector<16x16xf32> -> vector<16x16xf32>
    %292 = arith.subf %287, %282 : vector<16x16xf32>
    %293 = arith.truncf %292 : vector<16x16xf32> to vector<16x16xbf16>
    %cst_100 = arith.constant dense<0.000000e+00> : vector<16x16xf32>
    %294 = tpu.matmul %293, %5, %cst_100 {dimension_numbers = #tpu.dot_dimension_numbers<[1], [0], [0], [1], [0, 0, 1, 1], [], []>} : vector<16x16xbf16>, vector<16x16xbf16>, vector<16x16xf32> -> vector<16x16xf32>
    %295 = arith.addf %289, %291 : vector<16x16xf32>
    %c0_101 = arith.constant 0 : index
    %c112 = arith.constant 112 : index
    %296 = vector.load %arg15[%c0_101, %c112] : memref<16x128xf32, #tpu.memory_space<vmem>>, vector<16x16xf32>
    tpu.vector_store %arg15[%c0_101, %c112], %295 {strides = array<i32>} : memref<16x128xf32, #tpu.memory_space<vmem>>, vector<16x16xf32>,
    %297 = arith.addf %294, %289 : vector<16x16xf32>
    %298 = arith.subf %297, %291 : vector<16x16xf32>
    %c0_102 = arith.constant 0 : index
    %c112_103 = arith.constant 112 : index
    %299 = vector.load %arg16[%c0_102, %c112_103] : memref<16x128xf32, #tpu.memory_space<vmem>>, vector<16x16xf32>
    tpu.vector_store %arg16[%c0_102, %c112_103], %298 {strides = array<i32>} : memref<16x128xf32, #tpu.memory_space<vmem>>, vector<16x16xf32>,
    %c0_104 = arith.constant 0 : index
    %c0_105 = arith.constant 0 : index
    %300 = vector.load %arg15[%c0_104, %c0_105] : memref<16x128xf32, #tpu.memory_space<vmem>>, vector<16x128xf32>
    %c0_106 = arith.constant 0 : index
    %c0_107 = arith.constant 0 : index
    %301 = vector.load %arg16[%c0_106, %c0_107] : memref<16x128xf32, #tpu.memory_space<vmem>>, vector<16x128xf32>
    %302 = arith.truncf %300 : vector<16x128xf32> to vector<16x128xbf16>
    %cst_108 = arith.constant dense<0.000000e+00> : vector<16x128xf32>
    %303 = tpu.matmul %0, %302, %cst_108 {dimension_numbers = #tpu.dot_dimension_numbers<[1], [0], [0], [1], [0, 0, 1, 1], [], []>} : vector<16x16xbf16>, vector<16x128xbf16>, vector<16x128xf32> -> vector<16x128xf32>
    %304 = arith.truncf %301 : vector<16x128xf32> to vector<16x128xbf16>
    %cst_109 = arith.constant dense<0.000000e+00> : vector<16x128xf32>
    %305 = tpu.matmul %1, %304, %cst_109 {dimension_numbers = #tpu.dot_dimension_numbers<[1], [0], [0], [1], [0, 0, 1, 1], [], []>} : vector<16x16xbf16>, vector<16x128xbf16>, vector<16x128xf32> -> vector<16x128xf32>
    %306 = arith.subf %301, %300 : vector<16x128xf32>
    %307 = arith.truncf %306 : vector<16x128xf32> to vector<16x128xbf16>
    %cst_110 = arith.constant dense<0.000000e+00> : vector<16x128xf32>
    %308 = tpu.matmul %2, %307, %cst_110 {dimension_numbers = #tpu.dot_dimension_numbers<[1], [0], [0], [1], [0, 0, 1, 1], [], []>} : vector<16x16xbf16>, vector<16x128xbf16>, vector<16x128xf32> -> vector<16x128xf32>
    %309 = arith.addf %303, %305 : vector<16x128xf32>
    %c0_111 = arith.constant 0 : index
    %c0_112 = arith.constant 0 : index
    %c0_113 = arith.constant 0 : index
    %310 = vector.load %arg13[%c0_111, %c0_112, %c0_113] : memref<1x16x128xf32, #tpu.memory_space<vmem>>, vector<1x16x128xf32>
    %311 = vector.shape_cast %310 : vector<1x16x128xf32> to vector<16x128xf32>
    %312 = vector.shape_cast %309 : vector<16x128xf32> to vector<1x16x128xf32>
    tpu.vector_store %arg13[%c0_111, %c0_112, %c0_113], %312 {strides = array<i32>} : memref<1x16x128xf32, #tpu.memory_space<vmem>>, vector<1x16x128xf32>,
    %313 = arith.addf %308, %303 : vector<16x128xf32>
    %314 = arith.subf %313, %305 : vector<16x128xf32>
    %c0_114 = arith.constant 0 : index
    %c0_115 = arith.constant 0 : index
    %c0_116 = arith.constant 0 : index
    %315 = vector.load %arg14[%c0_114, %c0_115, %c0_116] : memref<1x16x128xf32, #tpu.memory_space<vmem>>, vector<1x16x128xf32>
    %316 = vector.shape_cast %315 : vector<1x16x128xf32> to vector<16x128xf32>
    %317 = vector.shape_cast %314 : vector<16x128xf32> to vector<1x16x128xf32>
    tpu.vector_store %arg14[%c0_114, %c0_115, %c0_116], %317 {strides = array<i32>} : memref<1x16x128xf32, #tpu.memory_space<vmem>>, vector<1x16x128xf32>,
    return
  }
  func.func @transform_0(%arg0: i32) -> (i32, i32) {
    %c0_i32 = arith.constant 0 : i32
    %c0_i32_0 = arith.constant 0 : i32
    %c0_i32_1 = arith.constant 0 : i32
    return %c0_i32, %c0_i32_0 : i32, i32
  }
  func.func @transform_1(%arg0: i32) -> (i32, i32) {
    %c0_i32 = arith.constant 0 : i32
    %c0_i32_0 = arith.constant 0 : i32
    %c0_i32_1 = arith.constant 0 : i32
    return %c0_i32, %c0_i32_0 : i32, i32
  }
  func.func @transform_2(%arg0: i32) -> (i32, i32) {
    %c0_i32 = arith.constant 0 : i32
    %c0_i32_0 = arith.constant 0 : i32
    %c0_i32_1 = arith.constant 0 : i32
    return %c0_i32, %c0_i32_0 : i32, i32
  }
  func.func @transform_3(%arg0: i32) -> (i32, i32) {
    %c0_i32 = arith.constant 0 : i32
    %c0_i32_0 = arith.constant 0 : i32
    %c0_i32_1 = arith.constant 0 : i32
    return %c0_i32, %c0_i32_0 : i32, i32
  }
  func.func @transform_4(%arg0: i32) -> (i32, i32) {
    %c0_i32 = arith.constant 0 : i32
    %c0_i32_0 = arith.constant 0 : i32
    %c0_i32_1 = arith.constant 0 : i32
    return %c0_i32, %c0_i32_0 : i32, i32
  }
  func.func @transform_5(%arg0: i32) -> (i32, i32) {
    %c0_i32 = arith.constant 0 : i32
    %c0_i32_0 = arith.constant 0 : i32
    %c0_i32_1 = arith.constant 0 : i32
    return %c0_i32, %c0_i32_0 : i32, i32
  }
  func.func @transform_6(%arg0: i32) -> (i32, i32, i32) {
    %c0_i32 = arith.constant 0 : i32
    %c0_i32_0 = arith.constant 0 : i32
    %c0_i32_1 = arith.constant 0 : i32
    return %arg0, %c0_i32, %c0_i32_0 : i32, i32, i32
  }
  func.func @transform_7(%arg0: i32) -> (i32, i32, i32) {
    %c0_i32 = arith.constant 0 : i32
    %c0_i32_0 = arith.constant 0 : i32
    %c0_i32_1 = arith.constant 0 : i32
    return %arg0, %c0_i32, %c0_i32_0 : i32, i32, i32
  }
  func.func @transform_8(%arg0: i32) -> (i32, i32, i32) {
    %c0_i32 = arith.constant 0 : i32
    %c0_i32_0 = arith.constant 0 : i32
    %c0_i32_1 = arith.constant 0 : i32
    return %arg0, %c0_i32, %c0_i32_0 : i32, i32, i32
  }
  func.func @transform_9(%arg0: i32) -> (i32, i32, i32) {
    %c0_i32 = arith.constant 0 : i32
    %c0_i32_0 = arith.constant 0 : i32
    %c0_i32_1 = arith.constant 0 : i32
    return %arg0, %c0_i32, %c0_i32_0 : i32, i32, i32
  }
  func.func @transform_10(%arg0: i32) -> (i32, i32, i32) {
    %c0_i32 = arith.constant 0 : i32
    %c0_i32_0 = arith.constant 0 : i32
    %c0_i32_1 = arith.constant 0 : i32
    return %arg0, %c0_i32, %c0_i32_0 : i32, i32, i32
  }
  func.func @transform_11(%arg0: i32) -> (i32, i32, i32) {
    %c0_i32 = arith.constant 0 : i32
    %c0_i32_0 = arith.constant 0 : i32
    %c0_i32_1 = arith.constant 0 : i32
    return %arg0, %c0_i32, %c0_i32_0 : i32, i32, i32
  }
  func.func @transform_12(%arg0: i32) -> (i32, i32, i32) {
    %c0_i32 = arith.constant 0 : i32
    %c0_i32_0 = arith.constant 0 : i32
    %c0_i32_1 = arith.constant 0 : i32
    return %arg0, %c0_i32, %c0_i32_0 : i32, i32, i32
  }
  func.func @transform_13(%arg0: i32) -> (i32, i32, i32) {
    %c0_i32 = arith.constant 0 : i32
    %c0_i32_0 = arith.constant 0 : i32
    %c0_i32_1 = arith.constant 0 : i32
    return %arg0, %c0_i32, %c0_i32_0 : i32, i32, i32
  }
}

</mosaic_0001>

<llo_original>
// kernel: tpu_custom_call.1
$region0: #{tpu_custom_call.1}
  #allocation0 [shape = 'u32[]', space=smem, size = 0x4, offset = 0x4, fixed_abs, tag = 'smem constant byte address 0x4 - core index']
  #allocation1 [shape = 'u32[144,128]{1,0:T(1,128)}', space=vmem, size = 0x12000, scoped, tag = 'internal scratch']
  #allocation2 [shape = 'f32[16,128]{1,0:T(8,128)}', space=vmem, size = 0x2000, scoped, tag = 'scratch operand']
  #allocation3 [shape = 'f32[16,128]{1,0:T(8,128)}', space=vmem, size = 0x2000, scoped, tag = 'scratch operand']
  %s0 = inlined_call_operand.hbm [shape: bf16[16,16], index: 0, kind: input, shape index: {}]
  %s1 = inlined_call_operand.hbm [shape: bf16[16,16], index: 1, kind: input, shape index: {}]
  %s2 = inlined_call_operand.hbm [shape: bf16[16,16], index: 2, kind: input, shape index: {}]
  %s3 = inlined_call_operand.hbm [shape: bf16[16,16], index: 3, kind: input, shape index: {}]
  %s4 = inlined_call_operand.hbm [shape: bf16[16,16], index: 4, kind: input, shape index: {}]
  %s5 = inlined_call_operand.hbm [shape: bf16[16,16], index: 5, kind: input, shape index: {}]
  %s6 = inlined_call_operand.hbm [shape: f32[1,16,128], index: 6, kind: input, shape index: {}]
  %s7 = inlined_call_operand.hbm [shape: f32[1,16,128], index: 7, kind: input, shape index: {}]
  %s8 = inlined_call_operand.hbm [shape: f32[1,16,128], index: 8, kind: input, shape index: {}]
  %s9 = inlined_call_operand.vmem [shape: f32[1,16,128], index: 9, kind: input, shape index: {}]
  %s10 = inlined_call_operand.hbm [shape: f32[1,16,128], index: 10, kind: input, shape index: {}]
  %s11 = inlined_call_operand.hbm [shape: f32[1,16,128], index: 11, kind: input, shape index: {}]
  %s12 = inlined_call_operand.hbm [shape: f32[1,16,128], index: 12, kind: output, shape index: {0}]
  %s13 = inlined_call_operand.hbm [shape: f32[1,16,128], index: 13, kind: output, shape index: {1}]
  %14 = xla_tuple %s12, %s13
  %s15 = sld [smem:[#allocation0]]
  $region110: #{tpu_custom_call.1} parent=0
    _
  %s17 = ssub.s32 1, %s15
  %s18 = scalar_select 0, %s17, %s15
  $region1: #{tpu_custom_call.1} parent=0
    #allocation4 [shape = 'u8[4096]{0}', space=vmem, size = 0x1000, scoped, tag = 'input window, operand 0, single buffered']
    #allocation5 [shape = 's32[1]{0}', space=sflag, size = 0x4, scoped, tag = 'scoped memory for tpu_custom_call.1']
    #allocation6 [shape = 's32[1]{0}', space=sflag, size = 0x4, scoped, tag = 'scoped memory for tpu_custom_call.1']
    #allocation7 [shape = 'u8[4096]{0}', space=vmem, size = 0x1000, scoped, tag = 'input window, operand 1, single buffered']
    #allocation8 [shape = 's32[1]{0}', space=sflag, size = 0x4, scoped, tag = 'scoped memory for tpu_custom_call.1']
    #allocation9 [shape = 'u8[4096]{0}', space=vmem, size = 0x1000, scoped, tag = 'input window, operand 2, single buffered']
    #allocation10 [shape = 'u8[4096]{0}', space=vmem, size = 0x1000, scoped, tag = 'input window, operand 3, single buffered']
    #allocation11 [shape = 's32[1]{0}', space=sflag, size = 0x4, scoped, tag = 'scoped memory for tpu_custom_call.1']
    #allocation12 [shape = 'u8[4096]{0}', space=vmem, size = 0x1000, scoped, tag = 'input window, operand 4, single buffered']
    #allocation13 [shape = 'u8[4096]{0}', space=vmem, size = 0x1000, scoped, tag = 'input window, operand 5, single buffered']
    #allocation14 [shape = 's32[1]{0}', space=sflag, size = 0x4, scoped, tag = 'scoped memory for tpu_custom_call.1']
    #allocation15 [shape = 'u8[8192]{0}', space=vmem, size = 0x2000, scoped, tag = 'input window, operand 6, single buffered']
    #allocation16 [shape = 'u8[8192]{0}', space=vmem, size = 0x2000, scoped, tag = 'input window, operand 7, single buffered']
    #allocation17 [shape = 's32[1]{0}', space=sflag, size = 0x4, scoped, tag = 'scoped memory for tpu_custom_call.1']
    #allocation18 [shape = 'u8[8192]{0}', space=vmem, size = 0x2000, scoped, tag = 'input window, operand 8, single buffered']
    #allocation19 [shape = 'u8[8192]{0}', space=vmem, size = 0x2000, scoped, tag = 'input window, operand 10, single buffered']
    #allocation20 [shape = 's32[1]{0}', space=sflag, size = 0x4, scoped, tag = 'scoped memory for tpu_custom_call.1']
    #allocation21 [shape = 'u8[8192]{0}', space=vmem, size = 0x2000, scoped, tag = 'input window, operand 11, single buffered']
    #allocation22 [shape = 'u8[8192]{0}', space=vmem, size = 0x2000, scoped, tag = 'output window, operand 0, single buffered']
    #allocation23 [shape = 'u8[8192]{0}', space=vmem, size = 0x2000, scoped, tag = 'output window, operand 1, single buffered']
    #allocation24 [shape = 's32[1]{0}', space=sflag, size = 0x4, scoped, tag = 'scoped memory for tpu_custom_call.1']
    %19 = vsyncpa [#allocation5], 0
    %20 = vsyncpa [#allocation8], 0
    %21 = vsyncpa [#allocation11], 0
    %22 = vsyncpa [#allocation14], 0
    %23 = vsyncpa [#allocation17], 0
    %24 = vsyncpa [#allocation20], 0
    %25 = vsyncpa [#allocation6], 0
    %26 = vsyncpa [#allocation24], 0
    // Predicated region
    $region2: #{tpu_custom_call.1} parent=1 // pred_check
      _
    $region3: #{tpu_custom_call.1} parent=1 // pred_check_branch
      %28 = sbr.rel (0) target = $region5
    $region4: #{tpu_custom_call.1} parent=1 // pred_region
      %s30 = ssub.s32 128, 128
      %31 = vsyncadd [#allocation5], %s30
      %s32 = sshll.u32 [#allocation4], 4
      %s33 = int_to_ptr.vmem [resolvable:$true] %s32
      %38 = dma.hbm_to_vmem [thread:$0]  %s0, 128, %s33, [#allocation5], 64, 64, 4
    $region5: #{tpu_custom_call.1} parent=1 // pred_fallthru
      _
    // Predicated region
    $region6: #{tpu_custom_call.1} parent=1 // pred_check
      _
    $region7: #{tpu_custom_call.1} parent=1 // pred_check_branch
      %40 = sbr.rel (0) target = $region9
    $region8: #{tpu_custom_call.1} parent=1 // pred_region
      %s42 = ssub.s32 128, 128
      %43 = vsyncadd [#allocation8], %s42
      %s44 = sshll.u32 [#allocation7], 4
      %s45 = int_to_ptr.vmem [resolvable:$true] %s44
      %50 = dma.hbm_to_vmem [thread:$0]  %s1, 128, %s45, [#allocation8], 64, 64, 4
    $region9: #{tpu_custom_call.1} parent=1 // pred_fallthru
      _
    // Predicated region
    $region10: #{tpu_custom_call.1} parent=1 // pred_check
      _
    $region11: #{tpu_custom_call.1} parent=1 // pred_check_branch
      %52 = sbr.rel (0) target = $region13
    $region12: #{tpu_custom_call.1} parent=1 // pred_region
      %s54 = ssub.s32 128, 128
      %55 = vsyncadd [#allocation8], %s54
      %s56 = sshll.u32 [#allocation9], 4
      %s57 = int_to_ptr.vmem [resolvable:$true] %s56
      %62 = dma.hbm_to_vmem [thread:$0]  %s2, 128, %s57, [#allocation8], 64, 64, 4
    $region13: #{tpu_custom_call.1} parent=1 // pred_fallthru
      _
    // Predicated region
    $region14: #{tpu_custom_call.1} parent=1 // pred_check
      _
    $region15: #{tpu_custom_call.1} parent=1 // pred_check_branch
      %64 = sbr.rel (0) target = $region17
    $region16: #{tpu_custom_call.1} parent=1 // pred_region
      %s66 = ssub.s32 128, 128
      %67 = vsyncadd [#allocation11], %s66
      %s68 = sshll.u32 [#allocation10], 4
      %s69 = int_to_ptr.vmem [resolvable:$true] %s68
      %74 = dma.hbm_to_vmem [thread:$0]  %s3, 128, %s69, [#allocation11], 64, 64, 4
    $region17: #{tpu_custom_call.1} parent=1 // pred_fallthru
      _
    // Predicated region
    $region18: #{tpu_custom_call.1} parent=1 // pred_check
      _
    $region19: #{tpu_custom_call.1} parent=1 // pred_check_branch
      %76 = sbr.rel (0) target = $region21
    $region20: #{tpu_custom_call.1} parent=1 // pred_region
      %s78 = ssub.s32 128, 128
      %79 = vsyncadd [#allocation11], %s78
      %s80 = sshll.u32 [#allocation12], 4
      %s81 = int_to_ptr.vmem [resolvable:$true] %s80
      %86 = dma.hbm_to_vmem [thread:$0]  %s4, 128, %s81, [#allocation11], 64, 64, 4
    $region21: #{tpu_custom_call.1} parent=1 // pred_fallthru
      _
    // Predicated region
    $region22: #{tpu_custom_call.1} parent=1 // pred_check
      _
    $region23: #{tpu_custom_call.1} parent=1 // pred_check_branch
      %88 = sbr.rel (0) target = $region25
    $region24: #{tpu_custom_call.1} parent=1 // pred_region
      %s90 = ssub.s32 128, 128
      %91 = vsyncadd [#allocation14], %s90
      %s92 = sshll.u32 [#allocation13], 4
      %s93 = int_to_ptr.vmem [resolvable:$true] %s92
      %98 = dma.hbm_to_vmem [thread:$0]  %s5, 128, %s93, [#allocation14], 64, 64, 4
    $region25: #{tpu_custom_call.1} parent=1 // pred_fallthru
      _
    // Predicated region
    $region26: #{tpu_custom_call.1} parent=1 // pred_check
      _
    $region27: #{tpu_custom_call.1} parent=1 // pred_check_branch
      %100 = sbr.rel (0) target = $region29
    $region28: #{tpu_custom_call.1} parent=1 // pred_region
      %s102 = ssub.s32 256, 256
      %103 = vsyncadd [#allocation14], %s102
      %s104 = sshll.u32 [#allocation15], 4
      %s105 = int_to_ptr.vmem [resolvable:$true] %s104
      %110 = dma.hbm_to_vmem [thread:$0]  %s6, 256, %s105, [#allocation14], 128, 128, 8
    $region29: #{tpu_custom_call.1} parent=1 // pred_fallthru
      _
    // Predicated region
    $region30: #{tpu_custom_call.1} parent=1 // pred_check
      _
    $region31: #{tpu_custom_call.1} parent=1 // pred_check_branch
      %112 = sbr.rel (0) target = $region33
    $region32: #{tpu_custom_call.1} parent=1 // pred_region
      %s114 = ssub.s32 256, 256
      %115 = vsyncadd [#allocation17], %s114
      %s116 = sshll.u32 [#allocation16], 4
      %s117 = int_to_ptr.vmem [resolvable:$true] %s116
      %122 = dma.hbm_to_vmem [thread:$0]  %s7, 256, %s117, [#allocation17], 128, 128, 8
    $region33: #{tpu_custom_call.1} parent=1 // pred_fallthru
      _
    // Predicated region
    $region34: #{tpu_custom_call.1} parent=1 // pred_check
      _
    $region35: #{tpu_custom_call.1} parent=1 // pred_check_branch
      %124 = sbr.rel (0) target = $region37
    $region36: #{tpu_custom_call.1} parent=1 // pred_region
      %s126 = ssub.s32 256, 256
      %127 = vsyncadd [#allocation17], %s126
      %s128 = sshll.u32 [#allocation18], 4
      %s129 = int_to_ptr.vmem [resolvable:$true] %s128
      %134 = dma.hbm_to_vmem [thread:$0]  %s8, 256, %s129, [#allocation17], 128, 128, 8
    $region37: #{tpu_custom_call.1} parent=1 // pred_fallthru
      _
    // Predicated region
    $region38: #{tpu_custom_call.1} parent=1 // pred_check
      _
    $region39: #{tpu_custom_call.1} parent=1 // pred_check_branch
      %136 = sbr.rel (0) target = $region41
    $region40: #{tpu_custom_call.1} parent=1 // pred_region
      _
    $region41: #{tpu_custom_call.1} parent=1 // pred_fallthru
      _
    // Predicated region
    $region42: #{tpu_custom_call.1} parent=1 // pred_check
      _
    $region43: #{tpu_custom_call.1} parent=1 // pred_check_branch
      %138 = sbr.rel (0) target = $region45
    $region44: #{tpu_custom_call.1} parent=1 // pred_region
      %s140 = ssub.s32 256, 256
      %141 = vsyncadd [#allocation20], %s140
      %s142 = sshll.u32 [#allocation19], 4
      %s143 = int_to_ptr.vmem [resolvable:$true] %s142
      %148 = dma.hbm_to_vmem [thread:$0]  %s10, 256, %s143, [#allocation20], 128, 128, 8
    $region45: #{tpu_custom_call.1} parent=1 // pred_fallthru
      _
    // Predicated region
    $region46: #{tpu_custom_call.1} parent=1 // pred_check
      _
    $region47: #{tpu_custom_call.1} parent=1 // pred_check_branch
      %150 = sbr.rel (0) target = $region49
    $region48: #{tpu_custom_call.1} parent=1 // pred_region
      %s152 = ssub.s32 256, 256
      %153 = vsyncadd [#allocation20], %s152
      %s154 = sshll.u32 [#allocation21], 4
      %s155 = int_to_ptr.vmem [resolvable:$true] %s154
      %160 = dma.hbm_to_vmem [thread:$0]  %s11, 256, %s155, [#allocation20], 128, 128, 8
    $region49: #{tpu_custom_call.1} parent=1 // pred_fallthru
      _
    // Predicated region
    $region50: #{tpu_custom_call.1} parent=1 // pred_check
      _
    $region51: #{tpu_custom_call.1} parent=1 // pred_check_branch
      %162 = sbr.rel (0) target = $region53
    $region52: #{tpu_custom_call.1} parent=1 // pred_region
      %163 = dma.done [#allocation5], 128
    $region53: #{tpu_custom_call.1} parent=1 // pred_fallthru
      _
    // Predicated region
    $region54: #{tpu_custom_call.1} parent=1 // pred_check
      _
    $region55: #{tpu_custom_call.1} parent=1 // pred_check_branch
      %165 = sbr.rel (0) target = $region57
    $region56: #{tpu_custom_call.1} parent=1 // pred_region
      %166 = dma.done [#allocation8], 128
    $region57: #{tpu_custom_call.1} parent=1 // pred_fallthru
      _
    // Predicated region
    $region58: #{tpu_custom_call.1} parent=1 // pred_check
      _
    $region59: #{tpu_custom_call.1} parent=1 // pred_check_branch
      %168 = sbr.rel (0) target = $region61
    $region60: #{tpu_custom_call.1} parent=1 // pred_region
      %169 = dma.done [#allocation8], 128
    $region61: #{tpu_custom_call.1} parent=1 // pred_fallthru
      _
    // Predicated region
    $region62: #{tpu_custom_call.1} parent=1 // pred_check
      _
    $region63: #{tpu_custom_call.1} parent=1 // pred_check_branch
      %171 = sbr.rel (0) target = $region65
    $region64: #{tpu_custom_call.1} parent=1 // pred_region
      %172 = dma.done [#allocation11], 128
    $region65: #{tpu_custom_call.1} parent=1 // pred_fallthru
      _
    // Predicated region
    $region66: #{tpu_custom_call.1} parent=1 // pred_check
      _
    $region67: #{tpu_custom_call.1} parent=1 // pred_check_branch
      %174 = sbr.rel (0) target = $region69
    $region68: #{tpu_custom_call.1} parent=1 // pred_region
      %175 = dma.done [#allocation11], 128
    $region69: #{tpu_custom_call.1} parent=1 // pred_fallthru
      _
    // Predicated region
    $region70: #{tpu_custom_call.1} parent=1 // pred_check
      _
    $region71: #{tpu_custom_call.1} parent=1 // pred_check_branch
      %177 = sbr.rel (0) target = $region73
    $region72: #{tpu_custom_call.1} parent=1 // pred_region
      %178 = dma.done [#allocation14], 128
    $region73: #{tpu_custom_call.1} parent=1 // pred_fallthru
      _
    // Predicated region
    $region74: #{tpu_custom_call.1} parent=1 // pred_check
      _
    $region75: #{tpu_custom_call.1} parent=1 // pred_check_branch
      %180 = sbr.rel (0) target = $region77
    $region76: #{tpu_custom_call.1} parent=1 // pred_region
      %181 = dma.done [#allocation14], 256
    $region77: #{tpu_custom_call.1} parent=1 // pred_fallthru
      _
    // Predicated region
    $region78: #{tpu_custom_call.1} parent=1 // pred_check
      _
    $region79: #{tpu_custom_call.1} parent=1 // pred_check_branch
      %183 = sbr.rel (0) target = $region81
    $region80: #{tpu_custom_call.1} parent=1 // pred_region
      %184 = dma.done [#allocation17], 256
    $region81: #{tpu_custom_call.1} parent=1 // pred_fallthru
      _
    // Predicated region
    $region82: #{tpu_custom_call.1} parent=1 // pred_check
      _
    $region83: #{tpu_custom_call.1} parent=1 // pred_check_branch
      %186 = sbr.rel (0) target = $region85
    $region84: #{tpu_custom_call.1} parent=1 // pred_region
      %187 = dma.done [#allocation17], 256
    $region85: #{tpu_custom_call.1} parent=1 // pred_fallthru
      _
    // Predicated region
    $region86: #{tpu_custom_call.1} parent=1 // pred_check
      _
    $region87: #{tpu_custom_call.1} parent=1 // pred_check_branch
      %189 = sbr.rel (0) target = $region89
    $region88: #{tpu_custom_call.1} parent=1 // pred_region
      %190 = dma.done [#allocation20], 256
    $region89: #{tpu_custom_call.1} parent=1 // pred_fallthru
      _
    // Predicated region
    $region90: #{tpu_custom_call.1} parent=1 // pred_check
      _
    $region91: #{tpu_custom_call.1} parent=1 // pred_check_branch
      %192 = sbr.rel (0) target = $region93
    $region92: #{tpu_custom_call.1} parent=1 // pred_region
      %193 = dma.done [#allocation20], 256
    $region93: #{tpu_custom_call.1} parent=1 // pred_fallthru
      _
    %v195 = vld [vmem:[#allocation4] sm:$0xf]
    %v196 = vld [vmem:[#allocation4 + $0x4] sm:$0xf]
    %v197 = vld [vmem:[#allocation7] sm:$0xf]
    %v198 = vld [vmem:[#allocation7 + $0x4] sm:$0xf]
    %v199 = vld [vmem:[#allocation9] sm:$0xf]
    %v200 = vld [vmem:[#allocation9 + $0x4] sm:$0xf]
    %v201 = vld [vmem:[#allocation10] sm:$0xf]
    %v202 = vld [vmem:[#allocation10 + $0x4] sm:$0xf]
    %v203 = vld [vmem:[#allocation12] sm:$0xf]
    %v204 = vld [vmem:[#allocation12 + $0x4] sm:$0xf]
    %v205 = vld [vmem:[#allocation13] sm:$0xf]
    %v206 = vld [vmem:[#allocation13 + $0x4] sm:$0xf]
    %v207 = vld [vmem:[#allocation15] sm:$0xff]
    %v208 = vld [vmem:[#allocation15 + $0x8] sm:$0xff]
    %v209 = vld [vmem:[#allocation16] sm:$0xff]
    %v210 = vld [vmem:[#allocation16 + $0x8] sm:$0xff]
    %v211 = vld [vmem:[#allocation18] sm:$0xff]
    %v212 = vld [vmem:[#allocation18 + $0x8] sm:$0xff]
    %v213 = vld [vmem:[%s9] sm:$0xff]
    %v214 = vld [vmem:[%s9 + $0x8] sm:$0xff]
    %v215 = vld [vmem:[#allocation19] sm:$0xff]
    %v216 = vld [vmem:[#allocation19 + $0x8] sm:$0xff]
    %v217 = vld [vmem:[#allocation21] sm:$0xff]
    %v218 = vld [vmem:[#allocation21 + $0x8] sm:$0xff]
    %v219 = vpack.c.bf16 %v208, %v207
    %v222 = vunpack.c.l.b16 %v195
    %v223 = vunpack.c.l.b16 %v196
    %v224 = vpack.c.b16 %v223, %v222
    %vm225 = vcmask 130048
    %v227 = vsel %vm225, %v224, 0
    %229 = vmatprep.subr.bf16.mxu0 0
    %230 = vmatpush1.bf16.msra.mxu0 0
    %231 = vmatprep.subr.bf16.mxu0 0
    %232 = vmatpush1.bf16.msra.mxu0 0
    %233 = vmatprep.subr.bf16.mxu0 0
    %234 = vmatpush1.bf16.msra.mxu0 0
    %235 = vmatprep.subr.bf16.mxu0 0
    %236 = vmatpush1.bf16.msra.mxu0 0
    %237 = vmatprep.subr.bf16.mxu0 0
    %238 = vmatpush1.bf16.msra.mxu0 0
    %239 = vmatprep.subr.bf16.mxu0 0
    %240 = vmatpush1.bf16.msra.mxu0 0
    %241 = vmatprep.subr.bf16.mxu0 0
    %242 = vmatpush1.bf16.msra.mxu0 0
    %243 = vmatprep.subr.bf16.mxu0 0
    %244 = vmatpush1.bf16.msra.mxu0 %v219
    %245 = vmatprep.subr.bf16.mxu0 0
    %246 = vmatpush2.bf16.msra.mxu0 0
    %247 = vmatprep.subr.bf16.mxu0 0
    %248 = vmatpush2.bf16.msra.mxu0 0
    %249 = vmatprep.subr.bf16.mxu0 0
    %250 = vmatpush2.bf16.msra.mxu0 0
    %251 = vmatprep.subr.bf16.mxu0 0
    %252 = vmatpush2.bf16.msra.mxu0 0
    %253 = vmatprep.subr.bf16.mxu0 0
    %254 = vmatpush2.bf16.msra.mxu0 0
    %255 = vmatprep.subr.bf16.mxu0 0
    %256 = vmatpush2.bf16.msra.mxu0 0
    %257 = vmatprep.subr.bf16.mxu0 0
    %258 = vmatpush2.bf16.msra.mxu0 0
    %259 = vmatprep.subr.bf16.mxu0 0
    %260 = vmatpush2.bf16.msra.mxu0 0
    %261 = vmatprep.mubr.bf16.mxu0 0
    %262 = vmatmul.mubr.bf16.gmra.mxu0 %v227
    %v263 = vpop.f32.mrf.mxu0
    %v264 = vadd.f32 0.0, %v263
    %v265 = vpop.f32.mrf.mxu0
    %v266 = vpop.f32.mrf.mxu0
    %v267 = vadd.f32 0.0, %v266
    %v268 = vpop.f32.mrf.mxu0
    %269 = vdwg.mxu0
    %v270 = vpack.c.bf16 %v210, %v209
    %v273 = vunpack.c.l.b16 %v197
    %v274 = vunpack.c.l.b16 %v198
    %v275 = vpack.c.b16 %v274, %v273
    %v277 = vsel %vm225, %v275, 0
    %279 = vmatprep.subr.bf16.mxu0 0
    %280 = vmatpush1.bf16.msra.mxu0 0
    %281 = vmatprep.subr.bf16.mxu0 0
    %282 = vmatpush1.bf16.msra.mxu0 0
    %283 = vmatprep.subr.bf16.mxu0 0
    %284 = vmatpush1.bf16.msra.mxu0 0
    %285 = vmatprep.subr.bf16.mxu0 0
    %286 = vmatpush1.bf16.msra.mxu0 0
    %287 = vmatprep.subr.bf16.mxu0 0
    %288 = vmatpush1.bf16.msra.mxu0 0
    %289 = vmatprep.subr.bf16.mxu0 0
    %290 = vmatpush1.bf16.msra.mxu0 0
    %291 = vmatprep.subr.bf16.mxu0 0
    %292 = vmatpush1.bf16.msra.mxu0 0
    %293 = vmatprep.subr.bf16.mxu0 0
    %294 = vmatpush1.bf16.msra.mxu0 %v270
    %295 = vmatprep.subr.bf16.mxu0 0
    %296 = vmatpush2.bf16.msra.mxu0 0
    %297 = vmatprep.subr.bf16.mxu0 0
    %298 = vmatpush2.bf16.msra.mxu0 0
    %299 = vmatprep.subr.bf16.mxu0 0
    %300 = vmatpush2.bf16.msra.mxu0 0
    %301 = vmatprep.subr.bf16.mxu0 0
    %302 = vmatpush2.bf16.msra.mxu0 0
    %303 = vmatprep.subr.bf16.mxu0 0
    %304 = vmatpush2.bf16.msra.mxu0 0
    %305 = vmatprep.subr.bf16.mxu0 0
    %306 = vmatpush2.bf16.msra.mxu0 0
    %307 = vmatprep.subr.bf16.mxu0 0
    %308 = vmatpush2.bf16.msra.mxu0 0
    %309 = vmatprep.subr.bf16.mxu0 0
    %310 = vmatpush2.bf16.msra.mxu0 0
    %311 = vmatprep.mubr.bf16.mxu0 0
    %312 = vmatmul.mubr.bf16.gmra.mxu0 %v277
    %v313 = vpop.f32.mrf.mxu0
    %v314 = vadd.f32 0.0, %v313
    %v315 = vpop.f32.mrf.mxu0
    %v316 = vpop.f32.mrf.mxu0
    %v317 = vadd.f32 0.0, %v316
    %v318 = vpop.f32.mrf.mxu0
    %319 = vdwg.mxu0
    %v320 = vadd.f32 %v207, %v209
    %v321 = vadd.f32 %v208, %v210
    %v322 = vpack.c.bf16 %v321, %v320
    %v325 = vunpack.c.l.b16 %v199
    %v326 = vunpack.c.l.b16 %v200
    %v327 = vpack.c.b16 %v326, %v325
    %v329 = vsel %vm225, %v327, 0
    %331 = vmatprep.subr.bf16.mxu0 0
    %332 = vmatpush1.bf16.msra.mxu0 0
    %333 = vmatprep.subr.bf16.mxu0 0
    %334 = vmatpush1.bf16.msra.mxu0 0
    %335 = vmatprep.subr.bf16.mxu0 0
    %336 = vmatpush1.bf16.msra.mxu0 0
    %337 = vmatprep.subr.bf16.mxu0 0
    %338 = vmatpush1.bf16.msra.mxu0 0
    %339 = vmatprep.subr.bf16.mxu0 0
    %340 = vmatpush1.bf16.msra.mxu0 0
    %341 = vmatprep.subr.bf16.mxu0 0
    %342 = vmatpush1.bf16.msra.mxu0 0
    %343 = vmatprep.subr.bf16.mxu0 0
    %344 = vmatpush1.bf16.msra.mxu0 0
    %345 = vmatprep.subr.bf16.mxu0 0
    %346 = vmatpush1.bf16.msra.mxu0 %v322
    %347 = vmatprep.subr.bf16.mxu0 0
    %348 = vmatpush2.bf16.msra.mxu0 0
    %349 = vmatprep.subr.bf16.mxu0 0
    %350 = vmatpush2.bf16.msra.mxu0 0
    %351 = vmatprep.subr.bf16.mxu0 0
    %352 = vmatpush2.bf16.msra.mxu0 0
    %353 = vmatprep.subr.bf16.mxu0 0
    %354 = vmatpush2.bf16.msra.mxu0 0
    %355 = vmatprep.subr.bf16.mxu0 0
    %356 = vmatpush2.bf16.msra.mxu0 0
    %357 = vmatprep.subr.bf16.mxu0 0
    %358 = vmatpush2.bf16.msra.mxu0 0
    %359 = vmatprep.subr.bf16.mxu0 0
    %360 = vmatpush2.bf16.msra.mxu0 0
    %361 = vmatprep.subr.bf16.mxu0 0
    %362 = vmatpush2.bf16.msra.mxu0 0
    %363 = vmatprep.mubr.bf16.mxu0 0
    %364 = vmatmul.mubr.bf16.gmra.mxu0 %v329
    %v365 = vpop.f32.mrf.mxu0
    %v366 = vadd.f32 0.0, %v365
    %v367 = vpop.f32.mrf.mxu0
    %v368 = vpop.f32.mrf.mxu0
    %v369 = vadd.f32 0.0, %v368
    %v370 = vpop.f32.mrf.mxu0
    %371 = vdwg.mxu0
    %v372 = vsub.f32 %v264, %v314
    %v373 = vsub.f32 %v267, %v317
    %v374 = vsub.f32 %v366, %v264
    %v375 = vsub.f32 %v369, %v267
    %v376 = vsub.f32 %v374, %v314
    %v377 = vsub.f32 %v375, %v317
    %v378 = vpack.c.bf16 %v373, %v372
    %v381 = vunpack.c.l.b16 %v201
    %v382 = vunpack.c.l.b16 %v202
    %v383 = vpack.c.b16 %v382, %v381
    %v386 = vsel %vm225, %v378, 0
    %388 = vmatprep.subr.bf16.mxu0 0
    %389 = vmatpush1.bf16.msra.mxu0 0
    %390 = vmatprep.subr.bf16.mxu0 0
    %391 = vmatpush1.bf16.msra.mxu0 0
    %392 = vmatprep.subr.bf16.mxu0 0
    %393 = vmatpush1.bf16.msra.mxu0 0
    %394 = vmatprep.subr.bf16.mxu0 0
    %395 = vmatpush1.bf16.msra.mxu0 0
    %396 = vmatprep.subr.bf16.mxu0 0
    %397 = vmatpush1.bf16.msra.mxu0 0
    %398 = vmatprep.subr.bf16.mxu0 0
    %399 = vmatpush1.bf16.msra.mxu0 0
    %400 = vmatprep.subr.bf16.mxu0 0
    %401 = vmatpush1.bf16.msra.mxu0 0
    %402 = vmatprep.subr.bf16.mxu0 0
    %403 = vmatpush1.bf16.msra.mxu0 %v383
    %404 = vmatprep.subr.bf16.mxu0 0
    %405 = vmatpush2.bf16.msra.mxu0 0
    %406 = vmatprep.subr.bf16.mxu0 0
    %407 = vmatpush2.bf16.msra.mxu0 0
    %408 = vmatprep.subr.bf16.mxu0 0
    %409 = vmatpush2.bf16.msra.mxu0 0
    %410 = vmatprep.subr.bf16.mxu0 0
    %411 = vmatpush2.bf16.msra.mxu0 0
    %412 = vmatprep.subr.bf16.mxu0 0
    %413 = vmatpush2.bf16.msra.mxu0 0
    %414 = vmatprep.subr.bf16.mxu0 0
    %415 = vmatpush2.bf16.msra.mxu0 0
    %416 = vmatprep.subr.bf16.mxu0 0
    %417 = vmatpush2.bf16.msra.mxu0 0
    %418 = vmatprep.subr.bf16.mxu0 0
    %419 = vmatpush2.bf16.msra.mxu0 0
    %420 = vmatprep.mubr.bf16.mxu0 0
    %421 = vmatmul.mubr.bf16.gmra.mxu0 %v386
    %v422 = vpop.f32.mrf.mxu0
    %v423 = vadd.f32 0.0, %v422
    %v424 = vpop.f32.mrf.mxu0
    %v425 = vpop.f32.mrf.mxu0
    %v426 = vadd.f32 0.0, %v425
    %v427 = vpop.f32.mrf.mxu0
    %428 = vdwg.mxu0
    %v429 = vpack.c.bf16 %v377, %v376
    %v432 = vunpack.c.l.b16 %v203
    %v433 = vunpack.c.l.b16 %v204
    %v434 = vpack.c.b16 %v433, %v432
    %v437 = vsel %vm225, %v429, 0
    %439 = vmatprep.subr.bf16.mxu0 0
    %440 = vmatpush1.bf16.msra.mxu0 0
    %441 = vmatprep.subr.bf16.mxu0 0
    %442 = vmatpush1.bf16.msra.mxu0 0
    %443 = vmatprep.subr.bf16.mxu0 0
    %444 = vmatpush1.bf16.msra.mxu0 0
    %445 = vmatprep.subr.bf16.mxu0 0
    %446 = vmatpush1.bf16.msra.mxu0 0
    %447 = vmatprep.subr.bf16.mxu0 0
    %448 = vmatpush1.bf16.msra.mxu0 0
    %449 = vmatprep.subr.bf16.mxu0 0
    %450 = vmatpush1.bf16.msra.mxu0 0
    %451 = vmatprep.subr.bf16.mxu0 0
    %452 = vmatpush1.bf16.msra.mxu0 0
    %453 = vmatprep.subr.bf16.mxu0 0
    %454 = vmatpush1.bf16.msra.mxu0 %v434
    %455 = vmatprep.subr.bf16.mxu0 0
    %456 = vmatpush2.bf16.msra.mxu0 0
    %457 = vmatprep.subr.bf16.mxu0 0
    %458 = vmatpush2.bf16.msra.mxu0 0
    %459 = vmatprep.subr.bf16.mxu0 0
    %460 = vmatpush2.bf16.msra.mxu0 0
    %461 = vmatprep.subr.bf16.mxu0 0
    %462 = vmatpush2.bf16.msra.mxu0 0
    %463 = vmatprep.subr.bf16.mxu0 0
    %464 = vmatpush2.bf16.msra.mxu0 0
    %465 = vmatprep.subr.bf16.mxu0 0
    %466 = vmatpush2.bf16.msra.mxu0 0
    %467 = vmatprep.subr.bf16.mxu0 0
    %468 = vmatpush2.bf16.msra.mxu0 0
    %469 = vmatprep.subr.bf16.mxu0 0
    %470 = vmatpush2.bf16.msra.mxu0 0
    %471 = vmatprep.mubr.bf16.mxu0 0
    %472 = vmatmul.mubr.bf16.gmra.mxu0 %v437
    %v473 = vpop.f32.mrf.mxu0
    %v474 = vadd.f32 0.0, %v473
    %v475 = vpop.f32.mrf.mxu0
    %v476 = vpop.f32.mrf.mxu0
    %v477 = vadd.f32 0.0, %v476
    %v478 = vpop.f32.mrf.mxu0
    %479 = vdwg.mxu0
    %v480 = vadd.f32 %v372, %v376
    %v481 = vadd.f32 %v373, %v377
    %v482 = vpack.c.bf16 %v481, %v480
    %v485 = vunpack.c.l.b16 %v205
    %v486 = vunpack.c.l.b16 %v206
    %v487 = vpack.c.b16 %v486, %v485
    %v490 = vsel %vm225, %v482, 0
    %492 = vmatprep.subr.bf16.mxu0 0
    %493 = vmatpush1.bf16.msra.mxu0 0
    %494 = vmatprep.subr.bf16.mxu0 0
    %495 = vmatpush1.bf16.msra.mxu0 0
    %496 = vmatprep.subr.bf16.mxu0 0
    %497 = vmatpush1.bf16.msra.mxu0 0
    %498 = vmatprep.subr.bf16.mxu0 0
    %499 = vmatpush1.bf16.msra.mxu0 0
    %500 = vmatprep.subr.bf16.mxu0 0
    %501 = vmatpush1.bf16.msra.mxu0 0
    %502 = vmatprep.subr.bf16.mxu0 0
    %503 = vmatpush1.bf16.msra.mxu0 0
    %504 = vmatprep.subr.bf16.mxu0 0
    %505 = vmatpush1.bf16.msra.mxu0 0
    %506 = vmatprep.subr.bf16.mxu0 0
    %507 = vmatpush1.bf16.msra.mxu0 %v487
    %508 = vmatprep.subr.bf16.mxu0 0
    %509 = vmatpush2.bf16.msra.mxu0 0
    %510 = vmatprep.subr.bf16.mxu0 0
    %511 = vmatpush2.bf16.msra.mxu0 0
    %512 = vmatprep.subr.bf16.mxu0 0
    %513 = vmatpush2.bf16.msra.mxu0 0
    %514 = vmatprep.subr.bf16.mxu0 0
    %515 = vmatpush2.bf16.msra.mxu0 0
    %516 = vmatprep.subr.bf16.mxu0 0
    %517 = vmatpush2.bf16.msra.mxu0 0
    %518 = vmatprep.subr.bf16.mxu0 0
    %519 = vmatpush2.bf16.msra.mxu0 0
    %520 = vmatprep.subr.bf16.mxu0 0
    %521 = vmatpush2.bf16.msra.mxu0 0
    %522 = vmatprep.subr.bf16.mxu0 0
    %523 = vmatpush2.bf16.msra.mxu0 0
    %524 = vmatprep.mubr.bf16.mxu0 0
    %525 = vmatmul.mubr.bf16.gmra.mxu0 %v490
    %v526 = vpop.f32.mrf.mxu0
    %v527 = vadd.f32 0.0, %v526
    %v528 = vpop.f32.mrf.mxu0
    %v529 = vpop.f32.mrf.mxu0
    %v530 = vadd.f32 0.0, %v529
    %v531 = vpop.f32.mrf.mxu0
    %532 = vdwg.mxu0
    %v533 = vsub.f32 %v423, %v474
    %v534 = vsub.f32 %v426, %v477
    %v535 = vsub.f32 %v527, %v423
    %v536 = vsub.f32 %v530, %v426
    %v537 = vsub.f32 %v535, %v474
    %v538 = vsub.f32 %v536, %v477
    %v539 = vsub.f32 %v211, %v533
    %v540 = vsub.f32 %v212, %v534
    %v541 = vmul.f32 %v539, %v215
    %v542 = vmul.f32 %v540, %v216
    %v543 = vadd.f32 %v533, %v541
    %v544 = vadd.f32 %v534, %v542
    %v545 = vsub.f32 %v213, %v537
    %v546 = vsub.f32 %v214, %v538
    %v547 = vmul.f32 %v545, %v217
    %v548 = vmul.f32 %v546, %v218
    %v549 = vadd.f32 %v537, %v547
    %v550 = vadd.f32 %v538, %v548
    %v551 = vpack.c.bf16 %v544, %v543
    %v553 = vsel %vm225, %v551, 0
    %555 = vmatprep.subr.bf16.mxu0 0
    %556 = vmatpush1.bf16.msra.mxu0 0
    %557 = vmatprep.subr.bf16.mxu0 0
    %558 = vmatpush1.bf16.msra.mxu0 0
    %559 = vmatprep.subr.bf16.mxu0 0
    %560 = vmatpush1.bf16.msra.mxu0 0
    %561 = vmatprep.subr.bf16.mxu0 0
    %562 = vmatpush1.bf16.msra.mxu0 0
    %563 = vmatprep.subr.bf16.mxu0 0
    %564 = vmatpush1.bf16.msra.mxu0 0
    %565 = vmatprep.subr.bf16.mxu0 0
    %566 = vmatpush1.bf16.msra.mxu0 0
    %567 = vmatprep.subr.bf16.mxu0 0
    %568 = vmatpush1.bf16.msra.mxu0 0
    %569 = vmatprep.subr.bf16.mxu0 0
    %570 = vmatpush1.bf16.msra.mxu0 %v383
    %571 = vmatprep.subr.bf16.mxu0 0
    %572 = vmatpush2.bf16.msra.mxu0 0
    %573 = vmatprep.subr.bf16.mxu0 0
    %574 = vmatpush2.bf16.msra.mxu0 0
    %575 = vmatprep.subr.bf16.mxu0 0
    %576 = vmatpush2.bf16.msra.mxu0 0
    %577 = vmatprep.subr.bf16.mxu0 0
    %578 = vmatpush2.bf16.msra.mxu0 0
    %579 = vmatprep.subr.bf16.mxu0 0
    %580 = vmatpush2.bf16.msra.mxu0 0
    %581 = vmatprep.subr.bf16.mxu0 0
    %582 = vmatpush2.bf16.msra.mxu0 0
    %583 = vmatprep.subr.bf16.mxu0 0
    %584 = vmatpush2.bf16.msra.mxu0 0
    %585 = vmatprep.subr.bf16.mxu0 0
    %586 = vmatpush2.bf16.msra.mxu0 0
    %587 = vmatprep.mubr.bf16.mxu0 0
    %588 = vmatmul.mubr.bf16.gmra.mxu0 %v553
    %v589 = vpop.f32.mrf.mxu0
    %v590 = vadd.f32 0.0, %v589
    %v591 = vpop.f32.mrf.mxu0
    %v592 = vpop.f32.mrf.mxu0
    %v593 = vadd.f32 0.0, %v592
    %v594 = vpop.f32.mrf.mxu0
    %595 = vdwg.mxu0
    %v596 = vpack.c.bf16 %v550, %v549
    %v598 = vsel %vm225, %v596, 0
    %600 = vmatprep.subr.bf16.mxu0 0
    %601 = vmatpush1.bf16.msra.mxu0 0
    %602 = vmatprep.subr.bf16.mxu0 0
    %603 = vmatpush1.bf16.msra.mxu0 0
    %604 = vmatprep.subr.bf16.mxu0 0
    %605 = vmatpush1.bf16.msra.mxu0 0
    %606 = vmatprep.subr.bf16.mxu0 0
    %607 = vmatpush1.bf16.msra.mxu0 0
    %608 = vmatprep.subr.bf16.mxu0 0
    %609 = vmatpush1.bf16.msra.mxu0 0
    %610 = vmatprep.subr.bf16.mxu0 0
    %611 = vmatpush1.bf16.msra.mxu0 0
    %612 = vmatprep.subr.bf16.mxu0 0
    %613 = vmatpush1.bf16.msra.mxu0 0
    %614 = vmatprep.subr.bf16.mxu0 0
    %615 = vmatpush1.bf16.msra.mxu0 %v434
    %616 = vmatprep.subr.bf16.mxu0 0
    %617 = vmatpush2.bf16.msra.mxu0 0
    %618 = vmatprep.subr.bf16.mxu0 0
    %619 = vmatpush2.bf16.msra.mxu0 0
    %620 = vmatprep.subr.bf16.mxu0 0
    %621 = vmatpush2.bf16.msra.mxu0 0
    %622 = vmatprep.subr.bf16.mxu0 0
    %623 = vmatpush2.bf16.msra.mxu0 0
    %624 = vmatprep.subr.bf16.mxu0 0
    %625 = vmatpush2.bf16.msra.mxu0 0
    %626 = vmatprep.subr.bf16.mxu0 0
    %627 = vmatpush2.bf16.msra.mxu0 0
    %628 = vmatprep.subr.bf16.mxu0 0
    %629 = vmatpush2.bf16.msra.mxu0 0
    %630 = vmatprep.subr.bf16.mxu0 0
    %631 = vmatpush2.bf16.msra.mxu0 0
    %632 = vmatprep.mubr.bf16.mxu0 0
    %633 = vmatmul.mubr.bf16.gmra.mxu0 %v598
    %v634 = vpop.f32.mrf.mxu0
    %v635 = vadd.f32 0.0, %v634
    %v636 = vpop.f32.mrf.mxu0
    %v637 = vpop.f32.mrf.mxu0
    %v638 = vadd.f32 0.0, %v637
    %v639 = vpop.f32.mrf.mxu0
    %640 = vdwg.mxu0
    %v641 = vsub.f32 %v549, %v543
    %v642 = vsub.f32 %v550, %v544
    %v643 = vpack.c.bf16 %v642, %v641
    %v644 = vadd.f32 %v590, %v635
    %v645 = vadd.f32 %v593, %v638
    %646 = vst.msk [vmem:[#allocation2] sm:$0xff] %vm225, %v644
    %647 = vst.msk [vmem:[#allocation2 + $0x8] sm:$0xff] %vm225, %v645
    %v649 = vsel %vm225, %v643, 0
    %651 = vmatprep.subr.bf16.mxu0 0
    %652 = vmatpush1.bf16.msra.mxu0 0
    %653 = vmatprep.subr.bf16.mxu0 0
    %654 = vmatpush1.bf16.msra.mxu0 0
    %655 = vmatprep.subr.bf16.mxu0 0
    %656 = vmatpush1.bf16.msra.mxu0 0
    %657 = vmatprep.subr.bf16.mxu0 0
    %658 = vmatpush1.bf16.msra.mxu0 0
    %659 = vmatprep.subr.bf16.mxu0 0
    %660 = vmatpush1.bf16.msra.mxu0 0
    %661 = vmatprep.subr.bf16.mxu0 0
    %662 = vmatpush1.bf16.msra.mxu0 0
    %663 = vmatprep.subr.bf16.mxu0 0
    %664 = vmatpush1.bf16.msra.mxu0 0
    %665 = vmatprep.subr.bf16.mxu0 0
    %666 = vmatpush1.bf16.msra.mxu0 %v487
    %667 = vmatprep.subr.bf16.mxu0 0
    %668 = vmatpush2.bf16.msra.mxu0 0
    %669 = vmatprep.subr.bf16.mxu0 0
    %670 = vmatpush2.bf16.msra.mxu0 0
    %671 = vmatprep.subr.bf16.mxu0 0
    %672 = vmatpush2.bf16.msra.mxu0 0
    %673 = vmatprep.subr.bf16.mxu0 0
    %674 = vmatpush2.bf16.msra.mxu0 0
    %675 = vmatprep.subr.bf16.mxu0 0
    %676 = vmatpush2.bf16.msra.mxu0 0
    %677 = vmatprep.subr.bf16.mxu0 0
    %678 = vmatpush2.bf16.msra.mxu0 0
    %679 = vmatprep.subr.bf16.mxu0 0
    %680 = vmatpush2.bf16.msra.mxu0 0
    %681 = vmatprep.subr.bf16.mxu0 0
    %682 = vmatpush2.bf16.msra.mxu0 0
    %683 = vmatprep.mubr.bf16.mxu0 0
    %684 = vmatmul.mubr.bf16.gmra.mxu0 %v649
    %v685 = vpop.f32.mrf.mxu0
    %v686 = vadd.f32 %v590, %v685
    %v687 = vpop.f32.mrf.mxu0
    %v688 = vpop.f32.mrf.mxu0
    %v689 = vadd.f32 %v593, %v688
    %v690 = vpop.f32.mrf.mxu0
    %691 = vdwg.mxu0
    %v692 = vsub.f32 %v686, %v635
    %v693 = vsub.f32 %v689, %v638
    %694 = vst.msk [vmem:[#allocation3] sm:$0xff] %vm225, %v692
    %695 = vst.msk [vmem:[#allocation3 + $0x8] sm:$0xff] %vm225, %v693
    %697 = vrot.lane.b32.xlu0 %v378, 112
    %v698 = vpop.permute.xlu0 %697
    %v700 = vsel %vm225, %v698, 0
    %702 = vmatprep.subr.bf16.mxu0 0
    %703 = vmatpush1.bf16.msra.mxu0 0
    %704 = vmatprep.subr.bf16.mxu0 0
    %705 = vmatpush1.bf16.msra.mxu0 0
    %706 = vmatprep.subr.bf16.mxu0 0
    %707 = vmatpush1.bf16.msra.mxu0 0
    %708 = vmatprep.subr.bf16.mxu0 0
    %709 = vmatpush1.bf16.msra.mxu0 0
    %710 = vmatprep.subr.bf16.mxu0 0
    %711 = vmatpush1.bf16.msra.mxu0 0
    %712 = vmatprep.subr.bf16.mxu0 0
    %713 = vmatpush1.bf16.msra.mxu0 0
    %714 = vmatprep.subr.bf16.mxu0 0
    %715 = vmatpush1.bf16.msra.mxu0 0
    %716 = vmatprep.subr.bf16.mxu0 0
    %717 = vmatpush1.bf16.msra.mxu0 %v383
    %718 = vmatprep.subr.bf16.mxu0 0
    %719 = vmatpush2.bf16.msra.mxu0 0
    %720 = vmatprep.subr.bf16.mxu0 0
    %721 = vmatpush2.bf16.msra.mxu0 0
    %722 = vmatprep.subr.bf16.mxu0 0
    %723 = vmatpush2.bf16.msra.mxu0 0
    %724 = vmatprep.subr.bf16.mxu0 0
    %725 = vmatpush2.bf16.msra.mxu0 0
    %726 = vmatprep.subr.bf16.mxu0 0
    %727 = vmatpush2.bf16.msra.mxu0 0
    %728 = vmatprep.subr.bf16.mxu0 0
    %729 = vmatpush2.bf16.msra.mxu0 0
    %730 = vmatprep.subr.bf16.mxu0 0
    %731 = vmatpush2.bf16.msra.mxu0 0
    %732 = vmatprep.subr.bf16.mxu0 0
    %733 = vmatpush2.bf16.msra.mxu0 0
    %734 = vmatprep.mubr.bf16.mxu0 0
    %735 = vmatmul.mubr.bf16.gmra.mxu0 %v700
    %v736 = vpop.f32.mrf.mxu0
    %v737 = vadd.f32 0.0, %v736
    %v738 = vpop.f32.mrf.mxu0
    %v739 = vpop.f32.mrf.mxu0
    %v740 = vadd.f32 0.0, %v739
    %v741 = vpop.f32.mrf.mxu0
    %742 = vdwg.mxu0
    %744 = vrot.lane.b32.xlu0 %v429, 112
    %v745 = vpop.permute.xlu0 %744
    %v747 = vsel %vm225, %v745, 0
    %749 = vmatprep.subr.bf16.mxu0 0
    %750 = vmatpush1.bf16.msra.mxu0 0
    %751 = vmatprep.subr.bf16.mxu0 0
    %752 = vmatpush1.bf16.msra.mxu0 0
    %753 = vmatprep.subr.bf16.mxu0 0
    %754 = vmatpush1.bf16.msra.mxu0 0
    %755 = vmatprep.subr.bf16.mxu0 0
    %756 = vmatpush1.bf16.msra.mxu0 0
    %757 = vmatprep.subr.bf16.mxu0 0
    %758 = vmatpush1.bf16.msra.mxu0 0
    %759 = vmatprep.subr.bf16.mxu0 0
    %760 = vmatpush1.bf16.msra.mxu0 0
    %761 = vmatprep.subr.bf16.mxu0 0
    %762 = vmatpush1.bf16.msra.mxu0 0
    %763 = vmatprep.subr.bf16.mxu0 0
    %764 = vmatpush1.bf16.msra.mxu0 %v434
    %765 = vmatprep.subr.bf16.mxu0 0
    %766 = vmatpush2.bf16.msra.mxu0 0
    %767 = vmatprep.subr.bf16.mxu0 0
    %768 = vmatpush2.bf16.msra.mxu0 0
    %769 = vmatprep.subr.bf16.mxu0 0
    %770 = vmatpush2.bf16.msra.mxu0 0
    %771 = vmatprep.subr.bf16.mxu0 0
    %772 = vmatpush2.bf16.msra.mxu0 0
    %773 = vmatprep.subr.bf16.mxu0 0
    %774 = vmatpush2.bf16.msra.mxu0 0
    %775 = vmatprep.subr.bf16.mxu0 0
    %776 = vmatpush2.bf16.msra.mxu0 0
    %777 = vmatprep.subr.bf16.mxu0 0
    %778 = vmatpush2.bf16.msra.mxu0 0
    %779 = vmatprep.subr.bf16.mxu0 0
    %780 = vmatpush2.bf16.msra.mxu0 0
    %781 = vmatprep.mubr.bf16.mxu0 0
    %782 = vmatmul.mubr.bf16.gmra.mxu0 %v747
    %v783 = vpop.f32.mrf.mxu0
    %v784 = vadd.f32 0.0, %v783
    %v785 = vpop.f32.mrf.mxu0
    %v786 = vpop.f32.mrf.mxu0
    %v787 = vadd.f32 0.0, %v786
    %v788 = vpop.f32.mrf.mxu0
    %789 = vdwg.mxu0
    %791 = vrot.lane.b32.xlu0 %v482, 112
    %v792 = vpop.permute.xlu0 %791
    %v794 = vsel %vm225, %v792, 0
    %796 = vmatprep.subr.bf16.mxu0 0
    %797 = vmatpush1.bf16.msra.mxu0 0
    %798 = vmatprep.subr.bf16.mxu0 0
    %799 = vmatpush1.bf16.msra.mxu0 0
    %800 = vmatprep.subr.bf16.mxu0 0
    %801 = vmatpush1.bf16.msra.mxu0 0
    %802 = vmatprep.subr.bf16.mxu0 0
    %803 = vmatpush1.bf16.msra.mxu0 0
    %804 = vmatprep.subr.bf16.mxu0 0
    %805 = vmatpush1.bf16.msra.mxu0 0
    %806 = vmatprep.subr.bf16.mxu0 0
    %807 = vmatpush1.bf16.msra.mxu0 0
    %808 = vmatprep.subr.bf16.mxu0 0
    %809 = vmatpush1.bf16.msra.mxu0 0
    %810 = vmatprep.subr.bf16.mxu0 0
    %811 = vmatpush1.bf16.msra.mxu0 %v487
    %812 = vmatprep.subr.bf16.mxu0 0
    %813 = vmatpush2.bf16.msra.mxu0 0
    %814 = vmatprep.subr.bf16.mxu0 0
    %815 = vmatpush2.bf16.msra.mxu0 0
    %816 = vmatprep.subr.bf16.mxu0 0
    %817 = vmatpush2.bf16.msra.mxu0 0
    %818 = vmatprep.subr.bf16.mxu0 0
    %819 = vmatpush2.bf16.msra.mxu0 0
    %820 = vmatprep.subr.bf16.mxu0 0
    %821 = vmatpush2.bf16.msra.mxu0 0
    %822 = vmatprep.subr.bf16.mxu0 0
    %823 = vmatpush2.bf16.msra.mxu0 0
    %824 = vmatprep.subr.bf16.mxu0 0
    %825 = vmatpush2.bf16.msra.mxu0 0
    %826 = vmatprep.subr.bf16.mxu0 0
    %827 = vmatpush2.bf16.msra.mxu0 0
    %828 = vmatprep.mubr.bf16.mxu0 0
    %829 = vmatmul.mubr.bf16.gmra.mxu0 %v794
    %v830 = vpop.f32.mrf.mxu0
    %v831 = vadd.f32 0.0, %v830
    %v832 = vpop.f32.mrf.mxu0
    %v833 = vpop.f32.mrf.mxu0
    %v834 = vadd.f32 0.0, %v833
    %v835 = vpop.f32.mrf.mxu0
    %836 = vdwg.mxu0
    %v837 = vsub.f32 %v737, %v784
    %v838 = vsub.f32 %v740, %v787
    %v839 = vsub.f32 %v831, %v737
    %v840 = vsub.f32 %v834, %v740
    %v841 = vsub.f32 %v839, %v784
    %v842 = vsub.f32 %v840, %v787
    %845 = vrot.lane.b32.xlu0 %v837, 16
    %v846 = vpop.permute.xlu0 %845
    %847 = vrot.lane.b32.xlu0 %v838, 16
    %v848 = vpop.permute.xlu0 %847
    %v851 = vsub.f32 %v211, %v846
    %v852 = vsub.f32 %v212, %v848
    %v853 = vmul.f32 %v851, %v215
    %v854 = vmul.f32 %v852, %v216
    %857 = vrot.lane.b32.xlu0 %v853, 112
    %v858 = vpop.permute.xlu0 %857
    %859 = vrot.lane.b32.xlu0 %v854, 112
    %v860 = vpop.permute.xlu0 %859
    %v863 = vadd.f32 %v837, %v858
    %v864 = vadd.f32 %v838, %v860
    %867 = vrot.lane.b32.xlu0 %v841, 16
    %v868 = vpop.permute.xlu0 %867
    %869 = vrot.lane.b32.xlu0 %v842, 16
    %v870 = vpop.permute.xlu0 %869
    %v873 = vsub.f32 %v213, %v868
    %v874 = vsub.f32 %v214, %v870
    %v875 = vmul.f32 %v873, %v217
    %v876 = vmul.f32 %v874, %v218
    %879 = vrot.lane.b32.xlu0 %v875, 112
    %v880 = vpop.permute.xlu0 %879
    %881 = vrot.lane.b32.xlu0 %v876, 112
    %v882 = vpop.permute.xlu0 %881
    %v885 = vadd.f32 %v841, %v880
    %v886 = vadd.f32 %v842, %v882
    %v887 = vpack.c.bf16 %v864, %v863
    %v889 = vsel %vm225, %v887, 0
    %891 = vmatprep.subr.bf16.mxu0 0
    %892 = vmatpush1.bf16.msra.mxu0 0
    %893 = vmatprep.subr.bf16.mxu0 0
    %894 = vmatpush1.bf16.msra.mxu0 0
    %895 = vmatprep.subr.bf16.mxu0 0
    %896 = vmatpush1.bf16.msra.mxu0 0
    %897 = vmatprep.subr.bf16.mxu0 0
    %898 = vmatpush1.bf16.msra.mxu0 0
    %899 = vmatprep.subr.bf16.mxu0 0
    %900 = vmatpush1.bf16.msra.mxu0 0
    %901 = vmatprep.subr.bf16.mxu0 0
    %902 = vmatpush1.bf16.msra.mxu0 0
    %903 = vmatprep.subr.bf16.mxu0 0
    %904 = vmatpush1.bf16.msra.mxu0 0
    %905 = vmatprep.subr.bf16.mxu0 0
    %906 = vmatpush1.bf16.msra.mxu0 %v383
    %907 = vmatprep.subr.bf16.mxu0 0
    %908 = vmatpush2.bf16.msra.mxu0 0
    %909 = vmatprep.subr.bf16.mxu0 0
    %910 = vmatpush2.bf16.msra.mxu0 0
    %911 = vmatprep.subr.bf16.mxu0 0
    %912 = vmatpush2.bf16.msra.mxu0 0
    %913 = vmatprep.subr.bf16.mxu0 0
    %914 = vmatpush2.bf16.msra.mxu0 0
    %915 = vmatprep.subr.bf16.mxu0 0
    %916 = vmatpush2.bf16.msra.mxu0 0
    %917 = vmatprep.subr.bf16.mxu0 0
    %918 = vmatpush2.bf16.msra.mxu0 0
    %919 = vmatprep.subr.bf16.mxu0 0
    %920 = vmatpush2.bf16.msra.mxu0 0
    %921 = vmatprep.subr.bf16.mxu0 0
    %922 = vmatpush2.bf16.msra.mxu0 0
    %923 = vmatprep.mubr.bf16.mxu0 0
    %924 = vmatmul.mubr.bf16.gmra.mxu0 %v889
    %v925 = vpop.f32.mrf.mxu0
    %v926 = vadd.f32 0.0, %v925
    %v927 = vpop.f32.mrf.mxu0
    %v928 = vpop.f32.mrf.mxu0
    %v929 = vadd.f32 0.0, %v928
    %v930 = vpop.f32.mrf.mxu0
    %931 = vdwg.mxu0
    %v932 = vpack.c.bf16 %v886, %v885
    %v934 = vsel %vm225, %v932, 0
    %936 = vmatprep.subr.bf16.mxu0 0
    %937 = vmatpush1.bf16.msra.mxu0 0
    %938 = vmatprep.subr.bf16.mxu0 0
    %939 = vmatpush1.bf16.msra.mxu0 0
    %940 = vmatprep.subr.bf16.mxu0 0
    %941 = vmatpush1.bf16.msra.mxu0 0
    %942 = vmatprep.subr.bf16.mxu0 0
    %943 = vmatpush1.bf16.msra.mxu0 0
    %944 = vmatprep.subr.bf16.mxu0 0
    %945 = vmatpush1.bf16.msra.mxu0 0
    %946 = vmatprep.subr.bf16.mxu0 0
    %947 = vmatpush1.bf16.msra.mxu0 0
    %948 = vmatprep.subr.bf16.mxu0 0
    %949 = vmatpush1.bf16.msra.mxu0 0
    %950 = vmatprep.subr.bf16.mxu0 0
    %951 = vmatpush1.bf16.msra.mxu0 %v434
    %952 = vmatprep.subr.bf16.mxu0 0
    %953 = vmatpush2.bf16.msra.mxu0 0
    %954 = vmatprep.subr.bf16.mxu0 0
    %955 = vmatpush2.bf16.msra.mxu0 0
    %956 = vmatprep.subr.bf16.mxu0 0
    %957 = vmatpush2.bf16.msra.mxu0 0
    %958 = vmatprep.subr.bf16.mxu0 0
    %959 = vmatpush2.bf16.msra.mxu0 0
    %960 = vmatprep.subr.bf16.mxu0 0
    %961 = vmatpush2.bf16.msra.mxu0 0
    %962 = vmatprep.subr.bf16.mxu0 0
    %963 = vmatpush2.bf16.msra.mxu0 0
    %964 = vmatprep.subr.bf16.mxu0 0
    %965 = vmatpush2.bf16.msra.mxu0 0
    %966 = vmatprep.subr.bf16.mxu0 0
    %967 = vmatpush2.bf16.msra.mxu0 0
    %968 = vmatprep.mubr.bf16.mxu0 0
    %969 = vmatmul.mubr.bf16.gmra.mxu0 %v934
    %v970 = vpop.f32.mrf.mxu0
    %v971 = vadd.f32 0.0, %v970
    %v972 = vpop.f32.mrf.mxu0
    %v973 = vpop.f32.mrf.mxu0
    %v974 = vadd.f32 0.0, %v973
    %v975 = vpop.f32.mrf.mxu0
    %976 = vdwg.mxu0
    %v977 = vsub.f32 %v885, %v863
    %v978 = vsub.f32 %v886, %v864
    %v979 = vpack.c.bf16 %v978, %v977
    %v980 = vadd.f32 %v926, %v971
    %v981 = vadd.f32 %v929, %v974
    %984 = vrot.lane.b32.xlu0 %v980, 16
    %v985 = vpop.permute.xlu0 %984
    %986 = vrot.lane.b32.xlu0 %v981, 16
    %v987 = vpop.permute.xlu0 %986
    %vm990 = vcmask 261248
    %991 = vst.msk [vmem:[#allocation2] sm:$0xff] %vm990, %v985
    %992 = vst.msk [vmem:[#allocation2 + $0x8] sm:$0xff] %vm990, %v987
    %v994 = vsel %vm225, %v979, 0
    %996 = vmatprep.subr.bf16.mxu0 0
    %997 = vmatpush1.bf16.msra.mxu0 0
    %998 = vmatprep.subr.bf16.mxu0 0
    %999 = vmatpush1.bf16.msra.mxu0 0
    %1000 = vmatprep.subr.bf16.mxu0 0
    %1001 = vmatpush1.bf16.msra.mxu0 0
    %1002 = vmatprep.subr.bf16.mxu0 0
    %1003 = vmatpush1.bf16.msra.mxu0 0
    %1004 = vmatprep.subr.bf16.mxu0 0
    %1005 = vmatpush1.bf16.msra.mxu0 0
    %1006 = vmatprep.subr.bf16.mxu0 0
    %1007 = vmatpush1.bf16.msra.mxu0 0
    %1008 = vmatprep.subr.bf16.mxu0 0
    %1009 = vmatpush1.bf16.msra.mxu0 0
    %1010 = vmatprep.subr.bf16.mxu0 0
    %1011 = vmatpush1.bf16.msra.mxu0 %v487
    %1012 = vmatprep.subr.bf16.mxu0 0
    %1013 = vmatpush2.bf16.msra.mxu0 0
    %1014 = vmatprep.subr.bf16.mxu0 0
    %1015 = vmatpush2.bf16.msra.mxu0 0
    %1016 = vmatprep.subr.bf16.mxu0 0
    %1017 = vmatpush2.bf16.msra.mxu0 0
    %1018 = vmatprep.subr.bf16.mxu0 0
    %1019 = vmatpush2.bf16.msra.mxu0 0
    %1020 = vmatprep.subr.bf16.mxu0 0
    %1021 = vmatpush2.bf16.msra.mxu0 0
    %1022 = vmatprep.subr.bf16.mxu0 0
    %1023 = vmatpush2.bf16.msra.mxu0 0
    %1024 = vmatprep.subr.bf16.mxu0 0
    %1025 = vmatpush2.bf16.msra.mxu0 0
    %1026 = vmatprep.subr.bf16.mxu0 0
    %1027 = vmatpush2.bf16.msra.mxu0 0
    %1028 = vmatprep.mubr.bf16.mxu0 0
    %1029 = vmatmul.mubr.bf16.gmra.mxu0 %v994
    %v1030 = vpop.f32.mrf.mxu0
    %v1031 = vadd.f32 %v926, %v1030
    %v1032 = vpop.f32.mrf.mxu0
    %v1033 = vpop.f32.mrf.mxu0
    %v1034 = vadd.f32 %v929, %v1033
    %v1035 = vpop.f32.mrf.mxu0
    %1036 = vdwg.mxu0
    %v1037 = vsub.f32 %v1031, %v971
    %v1038 = vsub.f32 %v1034, %v974
    %1041 = vrot.lane.b32.xlu0 %v1037, 16
    %v1042 = vpop.permute.xlu0 %1041
    %1043 = vrot.lane.b32.xlu0 %v1038, 16
    %v1044 = vpop.permute.xlu0 %1043
    %1047 = vst.msk [vmem:[#allocation3] sm:$0xff] %vm990, %v1042
    %1048 = vst.msk [vmem:[#allocation3 + $0x8] sm:$0xff] %vm990, %v1044
    %1049 = vrot.lane.b32.xlu0 %v378, 96
    %v1050 = vpop.permute.xlu0 %1049
    %v1052 = vsel %vm225, %v1050, 0
    %1054 = vmatprep.subr.bf16.mxu0 0
    %1055 = vmatpush1.bf16.msra.mxu0 0
    %1056 = vmatprep.subr.bf16.mxu0 0
    %1057 = vmatpush1.bf16.msra.mxu0 0
    %1058 = vmatprep.subr.bf16.mxu0 0
    %1059 = vmatpush1.bf16.msra.mxu0 0
    %1060 = vmatprep.subr.bf16.mxu0 0
    %1061 = vmatpush1.bf16.msra.mxu0 0
    %1062 = vmatprep.subr.bf16.mxu0 0
    %1063 = vmatpush1.bf16.msra.mxu0 0
    %1064 = vmatprep.subr.bf16.mxu0 0
    %1065 = vmatpush1.bf16.msra.mxu0 0
    %1066 = vmatprep.subr.bf16.mxu0 0
    %1067 = vmatpush1.bf16.msra.mxu0 0
    %1068 = vmatprep.subr.bf16.mxu0 0
    %1069 = vmatpush1.bf16.msra.mxu0 %v383
    %1070 = vmatprep.subr.bf16.mxu0 0
    %1071 = vmatpush2.bf16.msra.mxu0 0
    %1072 = vmatprep.subr.bf16.mxu0 0
    %1073 = vmatpush2.bf16.msra.mxu0 0
    %1074 = vmatprep.subr.bf16.mxu0 0
    %1075 = vmatpush2.bf16.msra.mxu0 0
    %1076 = vmatprep.subr.bf16.mxu0 0
    %1077 = vmatpush2.bf16.msra.mxu0 0
    %1078 = vmatprep.subr.bf16.mxu0 0
    %1079 = vmatpush2.bf16.msra.mxu0 0
    %1080 = vmatprep.subr.bf16.mxu0 0
    %1081 = vmatpush2.bf16.msra.mxu0 0
    %1082 = vmatprep.subr.bf16.mxu0 0
    %1083 = vmatpush2.bf16.msra.mxu0 0
    %1084 = vmatprep.subr.bf16.mxu0 0
    %1085 = vmatpush2.bf16.msra.mxu0 0
    %1086 = vmatprep.mubr.bf16.mxu0 0
    %1087 = vmatmul.mubr.bf16.gmra.mxu0 %v1052
    %v1088 = vpop.f32.mrf.mxu0
    %v1089 = vadd.f32 0.0, %v1088
    %v1090 = vpop.f32.mrf.mxu0
    %v1091 = vpop.f32.mrf.mxu0
    %v1092 = vadd.f32 0.0, %v1091
    %v1093 = vpop.f32.mrf.mxu0
    %1094 = vdwg.mxu0
    %1095 = vrot.lane.b32.xlu0 %v429, 96
    %v1096 = vpop.permute.xlu0 %1095
    %v1098 = vsel %vm225, %v1096, 0
    %1100 = vmatprep.subr.bf16.mxu0 0
    %1101 = vmatpush1.bf16.msra.mxu0 0
    %1102 = vmatprep.subr.bf16.mxu0 0
    %1103 = vmatpush1.bf16.msra.mxu0 0
    %1104 = vmatprep.subr.bf16.mxu0 0
    %1105 = vmatpush1.bf16.msra.mxu0 0
    %1106 = vmatprep.subr.bf16.mxu0 0
    %1107 = vmatpush1.bf16.msra.mxu0 0
    %1108 = vmatprep.subr.bf16.mxu0 0
    %1109 = vmatpush1.bf16.msra.mxu0 0
    %1110 = vmatprep.subr.bf16.mxu0 0
    %1111 = vmatpush1.bf16.msra.mxu0 0
    %1112 = vmatprep.subr.bf16.mxu0 0
    %1113 = vmatpush1.bf16.msra.mxu0 0
    %1114 = vmatprep.subr.bf16.mxu0 0
    %1115 = vmatpush1.bf16.msra.mxu0 %v434
    %1116 = vmatprep.subr.bf16.mxu0 0
    %1117 = vmatpush2.bf16.msra.mxu0 0
    %1118 = vmatprep.subr.bf16.mxu0 0
    %1119 = vmatpush2.bf16.msra.mxu0 0
    %1120 = vmatprep.subr.bf16.mxu0 0
    %1121 = vmatpush2.bf16.msra.mxu0 0
    %1122 = vmatprep.subr.bf16.mxu0 0
    %1123 = vmatpush2.bf16.msra.mxu0 0
    %1124 = vmatprep.subr.bf16.mxu0 0
    %1125 = vmatpush2.bf16.msra.mxu0 0
    %1126 = vmatprep.subr.bf16.mxu0 0
    %1127 = vmatpush2.bf16.msra.mxu0 0
    %1128 = vmatprep.subr.bf16.mxu0 0
    %1129 = vmatpush2.bf16.msra.mxu0 0
    %1130 = vmatprep.subr.bf16.mxu0 0
    %1131 = vmatpush2.bf16.msra.mxu0 0
    %1132 = vmatprep.mubr.bf16.mxu0 0
    %1133 = vmatmul.mubr.bf16.gmra.mxu0 %v1098
    %v1134 = vpop.f32.mrf.mxu0
    %v1135 = vadd.f32 0.0, %v1134
    %v1136 = vpop.f32.mrf.mxu0
    %v1137 = vpop.f32.mrf.mxu0
    %v1138 = vadd.f32 0.0, %v1137
    %v1139 = vpop.f32.mrf.mxu0
    %1140 = vdwg.mxu0
    %1141 = vrot.lane.b32.xlu0 %v482, 96
    %v1142 = vpop.permute.xlu0 %1141
    %v1144 = vsel %vm225, %v1142, 0
    %1146 = vmatprep.subr.bf16.mxu0 0
    %1147 = vmatpush1.bf16.msra.mxu0 0
    %1148 = vmatprep.subr.bf16.mxu0 0
    %1149 = vmatpush1.bf16.msra.mxu0 0
    %1150 = vmatprep.subr.bf16.mxu0 0
    %1151 = vmatpush1.bf16.msra.mxu0 0
    %1152 = vmatprep.subr.bf16.mxu0 0
    %1153 = vmatpush1.bf16.msra.mxu0 0
    %1154 = vmatprep.subr.bf16.mxu0 0
    %1155 = vmatpush1.bf16.msra.mxu0 0
    %1156 = vmatprep.subr.bf16.mxu0 0
    %1157 = vmatpush1.bf16.msra.mxu0 0
    %1158 = vmatprep.subr.bf16.mxu0 0
    %1159 = vmatpush1.bf16.msra.mxu0 0
    %1160 = vmatprep.subr.bf16.mxu0 0
    %1161 = vmatpush1.bf16.msra.mxu0 %v487
    %1162 = vmatprep.subr.bf16.mxu0 0
    %1163 = vmatpush2.bf16.msra.mxu0 0
    %1164 = vmatprep.subr.bf16.mxu0 0
    %1165 = vmatpush2.bf16.msra.mxu0 0
    %1166 = vmatprep.subr.bf16.mxu0 0
    %1167 = vmatpush2.bf16.msra.mxu0 0
    %1168 = vmatprep.subr.bf16.mxu0 0
    %1169 = vmatpush2.bf16.msra.mxu0 0
    %1170 = vmatprep.subr.bf16.mxu0 0
    %1171 = vmatpush2.bf16.msra.mxu0 0
    %1172 = vmatprep.subr.bf16.mxu0 0
    %1173 = vmatpush2.bf16.msra.mxu0 0
    %1174 = vmatprep.subr.bf16.mxu0 0
    %1175 = vmatpush2.bf16.msra.mxu0 0
    %1176 = vmatprep.subr.bf16.mxu0 0
    %1177 = vmatpush2.bf16.msra.mxu0 0
    %1178 = vmatprep.mubr.bf16.mxu0 0
    %1179 = vmatmul.mubr.bf16.gmra.mxu0 %v1144
    %v1180 = vpop.f32.mrf.mxu0
    %v1181 = vadd.f32 0.0, %v1180
    %v1182 = vpop.f32.mrf.mxu0
    %v1183 = vpop.f32.mrf.mxu0
    %v1184 = vadd.f32 0.0, %v1183
    %v1185 = vpop.f32.mrf.mxu0
    %1186 = vdwg.mxu0
    %v1187 = vsub.f32 %v1089, %v1135
    %v1188 = vsub.f32 %v1092, %v1138
    %v1189 = vsub.f32 %v1181, %v1089
    %v1190 = vsub.f32 %v1184, %v1092
    %v1191 = vsub.f32 %v1189, %v1135
    %v1192 = vsub.f32 %v1190, %v1138
    %1195 = vrot.lane.b32.xlu0 %v1187, 32
    %v1196 = vpop.permute.xlu0 %1195
    %1197 = vrot.lane.b32.xlu0 %v1188, 32
    %v1198 = vpop.permute.xlu0 %1197
    %v1201 = vsub.f32 %v211, %v1196
    %v1202 = vsub.f32 %v212, %v1198
    %v1203 = vmul.f32 %v1201, %v215
    %v1204 = vmul.f32 %v1202, %v216
    %1207 = vrot.lane.b32.xlu0 %v1203, 96
    %v1208 = vpop.permute.xlu0 %1207
    %1209 = vrot.lane.b32.xlu0 %v1204, 96
    %v1210 = vpop.permute.xlu0 %1209
    %v1213 = vadd.f32 %v1187, %v1208
    %v1214 = vadd.f32 %v1188, %v1210
    %1217 = vrot.lane.b32.xlu0 %v1191, 32
    %v1218 = vpop.permute.xlu0 %1217
    %1219 = vrot.lane.b32.xlu0 %v1192, 32
    %v1220 = vpop.permute.xlu0 %1219
    %v1223 = vsub.f32 %v213, %v1218
    %v1224 = vsub.f32 %v214, %v1220
    %v1225 = vmul.f32 %v1223, %v217
    %v1226 = vmul.f32 %v1224, %v218
    %1229 = vrot.lane.b32.xlu0 %v1225, 96
    %v1230 = vpop.permute.xlu0 %1229
    %1231 = vrot.lane.b32.xlu0 %v1226, 96
    %v1232 = vpop.permute.xlu0 %1231
    %v1235 = vadd.f32 %v1191, %v1230
    %v1236 = vadd.f32 %v1192, %v1232
    %v1237 = vpack.c.bf16 %v1214, %v1213
    %v1239 = vsel %vm225, %v1237, 0
    %1241 = vmatprep.subr.bf16.mxu0 0
    %1242 = vmatpush1.bf16.msra.mxu0 0
    %1243 = vmatprep.subr.bf16.mxu0 0
    %1244 = vmatpush1.bf16.msra.mxu0 0
    %1245 = vmatprep.subr.bf16.mxu0 0
    %1246 = vmatpush1.bf16.msra.mxu0 0
    %1247 = vmatprep.subr.bf16.mxu0 0
    %1248 = vmatpush1.bf16.msra.mxu0 0
    %1249 = vmatprep.subr.bf16.mxu0 0
    %1250 = vmatpush1.bf16.msra.mxu0 0
    %1251 = vmatprep.subr.bf16.mxu0 0
    %1252 = vmatpush1.bf16.msra.mxu0 0
    %1253 = vmatprep.subr.bf16.mxu0 0
    %1254 = vmatpush1.bf16.msra.mxu0 0
    %1255 = vmatprep.subr.bf16.mxu0 0
    %1256 = vmatpush1.bf16.msra.mxu0 %v383
    %1257 = vmatprep.subr.bf16.mxu0 0
    %1258 = vmatpush2.bf16.msra.mxu0 0
    %1259 = vmatprep.subr.bf16.mxu0 0
    %1260 = vmatpush2.bf16.msra.mxu0 0
    %1261 = vmatprep.subr.bf16.mxu0 0
    %1262 = vmatpush2.bf16.msra.mxu0 0
    %1263 = vmatprep.subr.bf16.mxu0 0
    %1264 = vmatpush2.bf16.msra.mxu0 0
    %1265 = vmatprep.subr.bf16.mxu0 0
    %1266 = vmatpush2.bf16.msra.mxu0 0
    %1267 = vmatprep.subr.bf16.mxu0 0
    %1268 = vmatpush2.bf16.msra.mxu0 0
    %1269 = vmatprep.subr.bf16.mxu0 0
    %1270 = vmatpush2.bf16.msra.mxu0 0
    %1271 = vmatprep.subr.bf16.mxu0 0
    %1272 = vmatpush2.bf16.msra.mxu0 0
    %1273 = vmatprep.mubr.bf16.mxu0 0
    %1274 = vmatmul.mubr.bf16.gmra.mxu0 %v1239
    %v1275 = vpop.f32.mrf.mxu0
    %v1276 = vadd.f32 0.0, %v1275
    %v1277 = vpop.f32.mrf.mxu0
    %v1278 = vpop.f32.mrf.mxu0
    %v1279 = vadd.f32 0.0, %v1278
    %v1280 = vpop.f32.mrf.mxu0
    %1281 = vdwg.mxu0
    %v1282 = vpack.c.bf16 %v1236, %v1235
    %v1284 = vsel %vm225, %v1282, 0
    %1286 = vmatprep.subr.bf16.mxu0 0
    %1287 = vmatpush1.bf16.msra.mxu0 0
    %1288 = vmatprep.subr.bf16.mxu0 0
    %1289 = vmatpush1.bf16.msra.mxu0 0
    %1290 = vmatprep.subr.bf16.mxu0 0
    %1291 = vmatpush1.bf16.msra.mxu0 0
    %1292 = vmatprep.subr.bf16.mxu0 0
    %1293 = vmatpush1.bf16.msra.mxu0 0
    %1294 = vmatprep.subr.bf16.mxu0 0
    %1295 = vmatpush1.bf16.msra.mxu0 0
    %1296 = vmatprep.subr.bf16.mxu0 0
    %1297 = vmatpush1.bf16.msra.mxu0 0
    %1298 = vmatprep.subr.bf16.mxu0 0
    %1299 = vmatpush1.bf16.msra.mxu0 0
    %1300 = vmatprep.subr.bf16.mxu0 0
    %1301 = vmatpush1.bf16.msra.mxu0 %v434
    %1302 = vmatprep.subr.bf16.mxu0 0
    %1303 = vmatpush2.bf16.msra.mxu0 0
    %1304 = vmatprep.subr.bf16.mxu0 0
    %1305 = vmatpush2.bf16.msra.mxu0 0
    %1306 = vmatprep.subr.bf16.mxu0 0
    %1307 = vmatpush2.bf16.msra.mxu0 0
    %1308 = vmatprep.subr.bf16.mxu0 0
    %1309 = vmatpush2.bf16.msra.mxu0 0
    %1310 = vmatprep.subr.bf16.mxu0 0
    %1311 = vmatpush2.bf16.msra.mxu0 0
    %1312 = vmatprep.subr.bf16.mxu0 0
    %1313 = vmatpush2.bf16.msra.mxu0 0
    %1314 = vmatprep.subr.bf16.mxu0 0
    %1315 = vmatpush2.bf16.msra.mxu0 0
    %1316 = vmatprep.subr.bf16.mxu0 0
    %1317 = vmatpush2.bf16.msra.mxu0 0
    %1318 = vmatprep.mubr.bf16.mxu0 0
    %1319 = vmatmul.mubr.bf16.gmra.mxu0 %v1284
    %v1320 = vpop.f32.mrf.mxu0
    %v1321 = vadd.f32 0.0, %v1320
    %v1322 = vpop.f32.mrf.mxu0
    %v1323 = vpop.f32.mrf.mxu0
    %v1324 = vadd.f32 0.0, %v1323
    %v1325 = vpop.f32.mrf.mxu0
    %1326 = vdwg.mxu0
    %v1327 = vsub.f32 %v1235, %v1213
    %v1328 = vsub.f32 %v1236, %v1214
    %v1329 = vpack.c.bf16 %v1328, %v1327
    %v1330 = vadd.f32 %v1276, %v1321
    %v1331 = vadd.f32 %v1279, %v1324
    %1334 = vrot.lane.b32.xlu0 %v1330, 32
    %v1335 = vpop.permute.xlu0 %1334
    %1336 = vrot.lane.b32.xlu0 %v1331, 32
    %v1337 = vpop.permute.xlu0 %1336
    %vm1340 = vcmask 392448
    %1341 = vst.msk [vmem:[#allocation2] sm:$0xff] %vm1340, %v1335
    %1342 = vst.msk [vmem:[#allocation2 + $0x8] sm:$0xff] %vm1340, %v1337
    %v1344 = vsel %vm225, %v1329, 0
    %1346 = vmatprep.subr.bf16.mxu0 0
    %1347 = vmatpush1.bf16.msra.mxu0 0
    %1348 = vmatprep.subr.bf16.mxu0 0
    %1349 = vmatpush1.bf16.msra.mxu0 0
    %1350 = vmatprep.subr.bf16.mxu0 0
    %1351 = vmatpush1.bf16.msra.mxu0 0
    %1352 = vmatprep.subr.bf16.mxu0 0
    %1353 = vmatpush1.bf16.msra.mxu0 0
    %1354 = vmatprep.subr.bf16.mxu0 0
    %1355 = vmatpush1.bf16.msra.mxu0 0
    %1356 = vmatprep.subr.bf16.mxu0 0
    %1357 = vmatpush1.bf16.msra.mxu0 0
    %1358 = vmatprep.subr.bf16.mxu0 0
    %1359 = vmatpush1.bf16.msra.mxu0 0
    %1360 = vmatprep.subr.bf16.mxu0 0
    %1361 = vmatpush1.bf16.msra.mxu0 %v487
    %1362 = vmatprep.subr.bf16.mxu0 0
    %1363 = vmatpush2.bf16.msra.mxu0 0
    %1364 = vmatprep.subr.bf16.mxu0 0
    %1365 = vmatpush2.bf16.msra.mxu0 0
    %1366 = vmatprep.subr.bf16.mxu0 0
    %1367 = vmatpush2.bf16.msra.mxu0 0
    %1368 = vmatprep.subr.bf16.mxu0 0
    %1369 = vmatpush2.bf16.msra.mxu0 0
    %1370 = vmatprep.subr.bf16.mxu0 0
    %1371 = vmatpush2.bf16.msra.mxu0 0
    %1372 = vmatprep.subr.bf16.mxu0 0
    %1373 = vmatpush2.bf16.msra.mxu0 0
    %1374 = vmatprep.subr.bf16.mxu0 0
    %1375 = vmatpush2.bf16.msra.mxu0 0
    %1376 = vmatprep.subr.bf16.mxu0 0
    %1377 = vmatpush2.bf16.msra.mxu0 0
    %1378 = vmatprep.mubr.bf16.mxu0 0
    %1379 = vmatmul.mubr.bf16.gmra.mxu0 %v1344
    %v1380 = vpop.f32.mrf.mxu0
    %v1381 = vadd.f32 %v1276, %v1380
    %v1382 = vpop.f32.mrf.mxu0
    %v1383 = vpop.f32.mrf.mxu0
    %v1384 = vadd.f32 %v1279, %v1383
    %v1385 = vpop.f32.mrf.mxu0
    %1386 = vdwg.mxu0
    %v1387 = vsub.f32 %v1381, %v1321
    %v1388 = vsub.f32 %v1384, %v1324
    %1391 = vrot.lane.b32.xlu0 %v1387, 32
    %v1392 = vpop.permute.xlu0 %1391
    %1393 = vrot.lane.b32.xlu0 %v1388, 32
    %v1394 = vpop.permute.xlu0 %1393
    %1397 = vst.msk [vmem:[#allocation3] sm:$0xff] %vm1340, %v1392
    %1398 = vst.msk [vmem:[#allocation3 + $0x8] sm:$0xff] %vm1340, %v1394
    %1399 = vrot.lane.b32.xlu0 %v378, 80
    %v1400 = vpop.permute.xlu0 %1399
    %v1402 = vsel %vm225, %v1400, 0
    %1404 = vmatprep.subr.bf16.mxu0 0
    %1405 = vmatpush1.bf16.msra.mxu0 0
    %1406 = vmatprep.subr.bf16.mxu0 0
    %1407 = vmatpush1.bf16.msra.mxu0 0
    %1408 = vmatprep.subr.bf16.mxu0 0
    %1409 = vmatpush1.bf16.msra.mxu0 0
    %1410 = vmatprep.subr.bf16.mxu0 0
    %1411 = vmatpush1.bf16.msra.mxu0 0
    %1412 = vmatprep.subr.bf16.mxu0 0
    %1413 = vmatpush1.bf16.msra.mxu0 0
    %1414 = vmatprep.subr.bf16.mxu0 0
    %1415 = vmatpush1.bf16.msra.mxu0 0
    %1416 = vmatprep.subr.bf16.mxu0 0
    %1417 = vmatpush1.bf16.msra.mxu0 0
    %1418 = vmatprep.subr.bf16.mxu0 0
    %1419 = vmatpush1.bf16.msra.mxu0 %v383
    %1420 = vmatprep.subr.bf16.mxu0 0
    %1421 = vmatpush2.bf16.msra.mxu0 0
    %1422 = vmatprep.subr.bf16.mxu0 0
    %1423 = vmatpush2.bf16.msra.mxu0 0
    %1424 = vmatprep.subr.bf16.mxu0 0
    %1425 = vmatpush2.bf16.msra.mxu0 0
    %1426 = vmatprep.subr.bf16.mxu0 0
    %1427 = vmatpush2.bf16.msra.mxu0 0
    %1428 = vmatprep.subr.bf16.mxu0 0
    %1429 = vmatpush2.bf16.msra.mxu0 0
    %1430 = vmatprep.subr.bf16.mxu0 0
    %1431 = vmatpush2.bf16.msra.mxu0 0
    %1432 = vmatprep.subr.bf16.mxu0 0
    %1433 = vmatpush2.bf16.msra.mxu0 0
    %1434 = vmatprep.subr.bf16.mxu0 0
    %1435 = vmatpush2.bf16.msra.mxu0 0
    %1436 = vmatprep.mubr.bf16.mxu0 0
    %1437 = vmatmul.mubr.bf16.gmra.mxu0 %v1402
    %v1438 = vpop.f32.mrf.mxu0
    %v1439 = vadd.f32 0.0, %v1438
    %v1440 = vpop.f32.mrf.mxu0
    %v1441 = vpop.f32.mrf.mxu0
    %v1442 = vadd.f32 0.0, %v1441
    %v1443 = vpop.f32.mrf.mxu0
    %1444 = vdwg.mxu0
    %1445 = vrot.lane.b32.xlu0 %v429, 80
    %v1446 = vpop.permute.xlu0 %1445
    %v1448 = vsel %vm225, %v1446, 0
    %1450 = vmatprep.subr.bf16.mxu0 0
    %1451 = vmatpush1.bf16.msra.mxu0 0
    %1452 = vmatprep.subr.bf16.mxu0 0
    %1453 = vmatpush1.bf16.msra.mxu0 0
    %1454 = vmatprep.subr.bf16.mxu0 0
    %1455 = vmatpush1.bf16.msra.mxu0 0
    %1456 = vmatprep.subr.bf16.mxu0 0
    %1457 = vmatpush1.bf16.msra.mxu0 0
    %1458 = vmatprep.subr.bf16.mxu0 0
    %1459 = vmatpush1.bf16.msra.mxu0 0
    %1460 = vmatprep.subr.bf16.mxu0 0
    %1461 = vmatpush1.bf16.msra.mxu0 0
    %1462 = vmatprep.subr.bf16.mxu0 0
    %1463 = vmatpush1.bf16.msra.mxu0 0
    %1464 = vmatprep.subr.bf16.mxu0 0
    %1465 = vmatpush1.bf16.msra.mxu0 %v434
    %1466 = vmatprep.subr.bf16.mxu0 0
    %1467 = vmatpush2.bf16.msra.mxu0 0
    %1468 = vmatprep.subr.bf16.mxu0 0
    %1469 = vmatpush2.bf16.msra.mxu0 0
    %1470 = vmatprep.subr.bf16.mxu0 0
    %1471 = vmatpush2.bf16.msra.mxu0 0
    %1472 = vmatprep.subr.bf16.mxu0 0
    %1473 = vmatpush2.bf16.msra.mxu0 0
    %1474 = vmatprep.subr.bf16.mxu0 0
    %1475 = vmatpush2.bf16.msra.mxu0 0
    %1476 = vmatprep.subr.bf16.mxu0 0
    %1477 = vmatpush2.bf16.msra.mxu0 0
    %1478 = vmatprep.subr.bf16.mxu0 0
    %1479 = vmatpush2.bf16.msra.mxu0 0
    %1480 = vmatprep.subr.bf16.mxu0 0
    %1481 = vmatpush2.bf16.msra.mxu0 0
    %1482 = vmatprep.mubr.bf16.mxu0 0
    %1483 = vmatmul.mubr.bf16.gmra.mxu0 %v1448
    %v1484 = vpop.f32.mrf.mxu0
    %v1485 = vadd.f32 0.0, %v1484
    %v1486 = vpop.f32.mrf.mxu0
    %v1487 = vpop.f32.mrf.mxu0
    %v1488 = vadd.f32 0.0, %v1487
    %v1489 = vpop.f32.mrf.mxu0
    %1490 = vdwg.mxu0
    %1491 = vrot.lane.b32.xlu0 %v482, 80
    %v1492 = vpop.permute.xlu0 %1491
    %v1494 = vsel %vm225, %v1492, 0
    %1496 = vmatprep.subr.bf16.mxu0 0
    %1497 = vmatpush1.bf16.msra.mxu0 0
    %1498 = vmatprep.subr.bf16.mxu0 0
    %1499 = vmatpush1.bf16.msra.mxu0 0
    %1500 = vmatprep.subr.bf16.mxu0 0
    %1501 = vmatpush1.bf16.msra.mxu0 0
    %1502 = vmatprep.subr.bf16.mxu0 0
    %1503 = vmatpush1.bf16.msra.mxu0 0
    %1504 = vmatprep.subr.bf16.mxu0 0
    %1505 = vmatpush1.bf16.msra.mxu0 0
    %1506 = vmatprep.subr.bf16.mxu0 0
    %1507 = vmatpush1.bf16.msra.mxu0 0
    %1508 = vmatprep.subr.bf16.mxu0 0
    %1509 = vmatpush1.bf16.msra.mxu0 0
    %1510 = vmatprep.subr.bf16.mxu0 0
    %1511 = vmatpush1.bf16.msra.mxu0 %v487
    %1512 = vmatprep.subr.bf16.mxu0 0
    %1513 = vmatpush2.bf16.msra.mxu0 0
    %1514 = vmatprep.subr.bf16.mxu0 0
    %1515 = vmatpush2.bf16.msra.mxu0 0
    %1516 = vmatprep.subr.bf16.mxu0 0
    %1517 = vmatpush2.bf16.msra.mxu0 0
    %1518 = vmatprep.subr.bf16.mxu0 0
    %1519 = vmatpush2.bf16.msra.mxu0 0
    %1520 = vmatprep.subr.bf16.mxu0 0
    %1521 = vmatpush2.bf16.msra.mxu0 0
    %1522 = vmatprep.subr.bf16.mxu0 0
    %1523 = vmatpush2.bf16.msra.mxu0 0
    %1524 = vmatprep.subr.bf16.mxu0 0
    %1525 = vmatpush2.bf16.msra.mxu0 0
    %1526 = vmatprep.subr.bf16.mxu0 0
    %1527 = vmatpush2.bf16.msra.mxu0 0
    %1528 = vmatprep.mubr.bf16.mxu0 0
    %1529 = vmatmul.mubr.bf16.gmra.mxu0 %v1494
    %v1530 = vpop.f32.mrf.mxu0
    %v1531 = vadd.f32 0.0, %v1530
    %v1532 = vpop.f32.mrf.mxu0
    %v1533 = vpop.f32.mrf.mxu0
    %v1534 = vadd.f32 0.0, %v1533
    %v1535 = vpop.f32.mrf.mxu0
    %1536 = vdwg.mxu0
    %v1537 = vsub.f32 %v1439, %v1485
    %v1538 = vsub.f32 %v1442, %v1488
    %v1539 = vsub.f32 %v1531, %v1439
    %v1540 = vsub.f32 %v1534, %v1442
    %v1541 = vsub.f32 %v1539, %v1485
    %v1542 = vsub.f32 %v1540, %v1488
    %1545 = vrot.lane.b32.xlu0 %v1537, 48
    %v1546 = vpop.permute.xlu0 %1545
    %1547 = vrot.lane.b32.xlu0 %v1538, 48
    %v1548 = vpop.permute.xlu0 %1547
    %v1551 = vsub.f32 %v211, %v1546
    %v1552 = vsub.f32 %v212, %v1548
    %v1553 = vmul.f32 %v1551, %v215
    %v1554 = vmul.f32 %v1552, %v216
    %1557 = vrot.lane.b32.xlu0 %v1553, 80
    %v1558 = vpop.permute.xlu0 %1557
    %1559 = vrot.lane.b32.xlu0 %v1554, 80
    %v1560 = vpop.permute.xlu0 %1559
    %v1563 = vadd.f32 %v1537, %v1558
    %v1564 = vadd.f32 %v1538, %v1560
    %1567 = vrot.lane.b32.xlu0 %v1541, 48
    %v1568 = vpop.permute.xlu0 %1567
    %1569 = vrot.lane.b32.xlu0 %v1542, 48
    %v1570 = vpop.permute.xlu0 %1569
    %v1573 = vsub.f32 %v213, %v1568
    %v1574 = vsub.f32 %v214, %v1570
    %v1575 = vmul.f32 %v1573, %v217
    %v1576 = vmul.f32 %v1574, %v218
    %1579 = vrot.lane.b32.xlu0 %v1575, 80
    %v1580 = vpop.permute.xlu0 %1579
    %1581 = vrot.lane.b32.xlu0 %v1576, 80
    %v1582 = vpop.permute.xlu0 %1581
    %v1585 = vadd.f32 %v1541, %v1580
    %v1586 = vadd.f32 %v1542, %v1582
    %v1587 = vpack.c.bf16 %v1564, %v1563
    %v1589 = vsel %vm225, %v1587, 0
    %1591 = vmatprep.subr.bf16.mxu0 0
    %1592 = vmatpush1.bf16.msra.mxu0 0
    %1593 = vmatprep.subr.bf16.mxu0 0
    %1594 = vmatpush1.bf16.msra.mxu0 0
    %1595 = vmatprep.subr.bf16.mxu0 0
    %1596 = vmatpush1.bf16.msra.mxu0 0
    %1597 = vmatprep.subr.bf16.mxu0 0
    %1598 = vmatpush1.bf16.msra.mxu0 0
    %1599 = vmatprep.subr.bf16.mxu0 0
    %1600 = vmatpush1.bf16.msra.mxu0 0
    %1601 = vmatprep.subr.bf16.mxu0 0
    %1602 = vmatpush1.bf16.msra.mxu0 0
    %1603 = vmatprep.subr.bf16.mxu0 0
    %1604 = vmatpush1.bf16.msra.mxu0 0
    %1605 = vmatprep.subr.bf16.mxu0 0
    %1606 = vmatpush1.bf16.msra.mxu0 %v383
    %1607 = vmatprep.subr.bf16.mxu0 0
    %1608 = vmatpush2.bf16.msra.mxu0 0
    %1609 = vmatprep.subr.bf16.mxu0 0
    %1610 = vmatpush2.bf16.msra.mxu0 0
    %1611 = vmatprep.subr.bf16.mxu0 0
    %1612 = vmatpush2.bf16.msra.mxu0 0
    %1613 = vmatprep.subr.bf16.mxu0 0
    %1614 = vmatpush2.bf16.msra.mxu0 0
    %1615 = vmatprep.subr.bf16.mxu0 0
    %1616 = vmatpush2.bf16.msra.mxu0 0
    %1617 = vmatprep.subr.bf16.mxu0 0
    %1618 = vmatpush2.bf16.msra.mxu0 0
    %1619 = vmatprep.subr.bf16.mxu0 0
    %1620 = vmatpush2.bf16.msra.mxu0 0
    %1621 = vmatprep.subr.bf16.mxu0 0
    %1622 = vmatpush2.bf16.msra.mxu0 0
    %1623 = vmatprep.mubr.bf16.mxu0 0
    %1624 = vmatmul.mubr.bf16.gmra.mxu0 %v1589
    %v1625 = vpop.f32.mrf.mxu0
    %v1626 = vadd.f32 0.0, %v1625
    %v1627 = vpop.f32.mrf.mxu0
    %v1628 = vpop.f32.mrf.mxu0
    %v1629 = vadd.f32 0.0, %v1628
    %v1630 = vpop.f32.mrf.mxu0
    %1631 = vdwg.mxu0
    %v1632 = vpack.c.bf16 %v1586, %v1585
    %v1634 = vsel %vm225, %v1632, 0
    %1636 = vmatprep.subr.bf16.mxu0 0
    %1637 = vmatpush1.bf16.msra.mxu0 0
    %1638 = vmatprep.subr.bf16.mxu0 0
    %1639 = vmatpush1.bf16.msra.mxu0 0
    %1640 = vmatprep.subr.bf16.mxu0 0
    %1641 = vmatpush1.bf16.msra.mxu0 0
    %1642 = vmatprep.subr.bf16.mxu0 0
    %1643 = vmatpush1.bf16.msra.mxu0 0
    %1644 = vmatprep.subr.bf16.mxu0 0
    %1645 = vmatpush1.bf16.msra.mxu0 0
    %1646 = vmatprep.subr.bf16.mxu0 0
    %1647 = vmatpush1.bf16.msra.mxu0 0
    %1648 = vmatprep.subr.bf16.mxu0 0
    %1649 = vmatpush1.bf16.msra.mxu0 0
    %1650 = vmatprep.subr.bf16.mxu0 0
    %1651 = vmatpush1.bf16.msra.mxu0 %v434
    %1652 = vmatprep.subr.bf16.mxu0 0
    %1653 = vmatpush2.bf16.msra.mxu0 0
    %1654 = vmatprep.subr.bf16.mxu0 0
    %1655 = vmatpush2.bf16.msra.mxu0 0
    %1656 = vmatprep.subr.bf16.mxu0 0
    %1657 = vmatpush2.bf16.msra.mxu0 0
    %1658 = vmatprep.subr.bf16.mxu0 0
    %1659 = vmatpush2.bf16.msra.mxu0 0
    %1660 = vmatprep.subr.bf16.mxu0 0
    %1661 = vmatpush2.bf16.msra.mxu0 0
    %1662 = vmatprep.subr.bf16.mxu0 0
    %1663 = vmatpush2.bf16.msra.mxu0 0
    %1664 = vmatprep.subr.bf16.mxu0 0
    %1665 = vmatpush2.bf16.msra.mxu0 0
    %1666 = vmatprep.subr.bf16.mxu0 0
    %1667 = vmatpush2.bf16.msra.mxu0 0
    %1668 = vmatprep.mubr.bf16.mxu0 0
    %1669 = vmatmul.mubr.bf16.gmra.mxu0 %v1634
    %v1670 = vpop.f32.mrf.mxu0
    %v1671 = vadd.f32 0.0, %v1670
    %v1672 = vpop.f32.mrf.mxu0
    %v1673 = vpop.f32.mrf.mxu0
    %v1674 = vadd.f32 0.0, %v1673
    %v1675 = vpop.f32.mrf.mxu0
    %1676 = vdwg.mxu0
    %v1677 = vsub.f32 %v1585, %v1563
    %v1678 = vsub.f32 %v1586, %v1564
    %v1679 = vpack.c.bf16 %v1678, %v1677
    %v1680 = vadd.f32 %v1626, %v1671
    %v1681 = vadd.f32 %v1629, %v1674
    %1684 = vrot.lane.b32.xlu0 %v1680, 48
    %v1685 = vpop.permute.xlu0 %1684
    %1686 = vrot.lane.b32.xlu0 %v1681, 48
    %v1687 = vpop.permute.xlu0 %1686
    %vm1690 = vcmask 523648
    %1691 = vst.msk [vmem:[#allocation2] sm:$0xff] %vm1690, %v1685
    %1692 = vst.msk [vmem:[#allocation2 + $0x8] sm:$0xff] %vm1690, %v1687
    %v1694 = vsel %vm225, %v1679, 0
    %1696 = vmatprep.subr.bf16.mxu0 0
    %1697 = vmatpush1.bf16.msra.mxu0 0
    %1698 = vmatprep.subr.bf16.mxu0 0
    %1699 = vmatpush1.bf16.msra.mxu0 0
    %1700 = vmatprep.subr.bf16.mxu0 0
    %1701 = vmatpush1.bf16.msra.mxu0 0
    %1702 = vmatprep.subr.bf16.mxu0 0
    %1703 = vmatpush1.bf16.msra.mxu0 0
    %1704 = vmatprep.subr.bf16.mxu0 0
    %1705 = vmatpush1.bf16.msra.mxu0 0
    %1706 = vmatprep.subr.bf16.mxu0 0
    %1707 = vmatpush1.bf16.msra.mxu0 0
    %1708 = vmatprep.subr.bf16.mxu0 0
    %1709 = vmatpush1.bf16.msra.mxu0 0
    %1710 = vmatprep.subr.bf16.mxu0 0
    %1711 = vmatpush1.bf16.msra.mxu0 %v487
    %1712 = vmatprep.subr.bf16.mxu0 0
    %1713 = vmatpush2.bf16.msra.mxu0 0
    %1714 = vmatprep.subr.bf16.mxu0 0
    %1715 = vmatpush2.bf16.msra.mxu0 0
    %1716 = vmatprep.subr.bf16.mxu0 0
    %1717 = vmatpush2.bf16.msra.mxu0 0
    %1718 = vmatprep.subr.bf16.mxu0 0
    %1719 = vmatpush2.bf16.msra.mxu0 0
    %1720 = vmatprep.subr.bf16.mxu0 0
    %1721 = vmatpush2.bf16.msra.mxu0 0
    %1722 = vmatprep.subr.bf16.mxu0 0
    %1723 = vmatpush2.bf16.msra.mxu0 0
    %1724 = vmatprep.subr.bf16.mxu0 0
    %1725 = vmatpush2.bf16.msra.mxu0 0
    %1726 = vmatprep.subr.bf16.mxu0 0
    %1727 = vmatpush2.bf16.msra.mxu0 0
    %1728 = vmatprep.mubr.bf16.mxu0 0
    %1729 = vmatmul.mubr.bf16.gmra.mxu0 %v1694
    %v1730 = vpop.f32.mrf.mxu0
    %v1731 = vadd.f32 %v1626, %v1730
    %v1732 = vpop.f32.mrf.mxu0
    %v1733 = vpop.f32.mrf.mxu0
    %v1734 = vadd.f32 %v1629, %v1733
    %v1735 = vpop.f32.mrf.mxu0
    %1736 = vdwg.mxu0
    %v1737 = vsub.f32 %v1731, %v1671
    %v1738 = vsub.f32 %v1734, %v1674
    %1741 = vrot.lane.b32.xlu0 %v1737, 48
    %v1742 = vpop.permute.xlu0 %1741
    %1743 = vrot.lane.b32.xlu0 %v1738, 48
    %v1744 = vpop.permute.xlu0 %1743
    %1747 = vst.msk [vmem:[#allocation3] sm:$0xff] %vm1690, %v1742
    %1748 = vst.msk [vmem:[#allocation3 + $0x8] sm:$0xff] %vm1690, %v1744
    %1749 = vrot.lane.b32.xlu0 %v378, 64
    %v1750 = vpop.permute.xlu0 %1749
    %v1752 = vsel %vm225, %v1750, 0
    %1754 = vmatprep.subr.bf16.mxu0 0
    %1755 = vmatpush1.bf16.msra.mxu0 0
    %1756 = vmatprep.subr.bf16.mxu0 0
    %1757 = vmatpush1.bf16.msra.mxu0 0
    %1758 = vmatprep.subr.bf16.mxu0 0
    %1759 = vmatpush1.bf16.msra.mxu0 0
    %1760 = vmatprep.subr.bf16.mxu0 0
    %1761 = vmatpush1.bf16.msra.mxu0 0
    %1762 = vmatprep.subr.bf16.mxu0 0
    %1763 = vmatpush1.bf16.msra.mxu0 0
    %1764 = vmatprep.subr.bf16.mxu0 0
    %1765 = vmatpush1.bf16.msra.mxu0 0
    %1766 = vmatprep.subr.bf16.mxu0 0
    %1767 = vmatpush1.bf16.msra.mxu0 0
    %1768 = vmatprep.subr.bf16.mxu0 0
    %1769 = vmatpush1.bf16.msra.mxu0 %v383
    %1770 = vmatprep.subr.bf16.mxu0 0
    %1771 = vmatpush2.bf16.msra.mxu0 0
    %1772 = vmatprep.subr.bf16.mxu0 0
    %1773 = vmatpush2.bf16.msra.mxu0 0
    %1774 = vmatprep.subr.bf16.mxu0 0
    %1775 = vmatpush2.bf16.msra.mxu0 0
    %1776 = vmatprep.subr.bf16.mxu0 0
    %1777 = vmatpush2.bf16.msra.mxu0 0
    %1778 = vmatprep.subr.bf16.mxu0 0
    %1779 = vmatpush2.bf16.msra.mxu0 0
    %1780 = vmatprep.subr.bf16.mxu0 0
    %1781 = vmatpush2.bf16.msra.mxu0 0
    %1782 = vmatprep.subr.bf16.mxu0 0
    %1783 = vmatpush2.bf16.msra.mxu0 0
    %1784 = vmatprep.subr.bf16.mxu0 0
    %1785 = vmatpush2.bf16.msra.mxu0 0
    %1786 = vmatprep.mubr.bf16.mxu0 0
    %1787 = vmatmul.mubr.bf16.gmra.mxu0 %v1752
    %v1788 = vpop.f32.mrf.mxu0
    %v1789 = vadd.f32 0.0, %v1788
    %v1790 = vpop.f32.mrf.mxu0
    %v1791 = vpop.f32.mrf.mxu0
    %v1792 = vadd.f32 0.0, %v1791
    %v1793 = vpop.f32.mrf.mxu0
    %1794 = vdwg.mxu0
    %1795 = vrot.lane.b32.xlu0 %v429, 64
    %v1796 = vpop.permute.xlu0 %1795
    %v1798 = vsel %vm225, %v1796, 0
    %1800 = vmatprep.subr.bf16.mxu0 0
    %1801 = vmatpush1.bf16.msra.mxu0 0
    %1802 = vmatprep.subr.bf16.mxu0 0
    %1803 = vmatpush1.bf16.msra.mxu0 0
    %1804 = vmatprep.subr.bf16.mxu0 0
    %1805 = vmatpush1.bf16.msra.mxu0 0
    %1806 = vmatprep.subr.bf16.mxu0 0
    %1807 = vmatpush1.bf16.msra.mxu0 0
    %1808 = vmatprep.subr.bf16.mxu0 0
    %1809 = vmatpush1.bf16.msra.mxu0 0
    %1810 = vmatprep.subr.bf16.mxu0 0
    %1811 = vmatpush1.bf16.msra.mxu0 0
    %1812 = vmatprep.subr.bf16.mxu0 0
    %1813 = vmatpush1.bf16.msra.mxu0 0
    %1814 = vmatprep.subr.bf16.mxu0 0
    %1815 = vmatpush1.bf16.msra.mxu0 %v434
    %1816 = vmatprep.subr.bf16.mxu0 0
    %1817 = vmatpush2.bf16.msra.mxu0 0
    %1818 = vmatprep.subr.bf16.mxu0 0
    %1819 = vmatpush2.bf16.msra.mxu0 0
    %1820 = vmatprep.subr.bf16.mxu0 0
    %1821 = vmatpush2.bf16.msra.mxu0 0
    %1822 = vmatprep.subr.bf16.mxu0 0
    %1823 = vmatpush2.bf16.msra.mxu0 0
    %1824 = vmatprep.subr.bf16.mxu0 0
    %1825 = vmatpush2.bf16.msra.mxu0 0
    %1826 = vmatprep.subr.bf16.mxu0 0
    %1827 = vmatpush2.bf16.msra.mxu0 0
    %1828 = vmatprep.subr.bf16.mxu0 0
    %1829 = vmatpush2.bf16.msra.mxu0 0
    %1830 = vmatprep.subr.bf16.mxu0 0
    %1831 = vmatpush2.bf16.msra.mxu0 0
    %1832 = vmatprep.mubr.bf16.mxu0 0
    %1833 = vmatmul.mubr.bf16.gmra.mxu0 %v1798
    %v1834 = vpop.f32.mrf.mxu0
    %v1835 = vadd.f32 0.0, %v1834
    %v1836 = vpop.f32.mrf.mxu0
    %v1837 = vpop.f32.mrf.mxu0
    %v1838 = vadd.f32 0.0, %v1837
    %v1839 = vpop.f32.mrf.mxu0
    %1840 = vdwg.mxu0
    %1841 = vrot.lane.b32.xlu0 %v482, 64
    %v1842 = vpop.permute.xlu0 %1841
    %v1844 = vsel %vm225, %v1842, 0
    %1846 = vmatprep.subr.bf16.mxu0 0
    %1847 = vmatpush1.bf16.msra.mxu0 0
    %1848 = vmatprep.subr.bf16.mxu0 0
    %1849 = vmatpush1.bf16.msra.mxu0 0
    %1850 = vmatprep.subr.bf16.mxu0 0
    %1851 = vmatpush1.bf16.msra.mxu0 0
    %1852 = vmatprep.subr.bf16.mxu0 0
    %1853 = vmatpush1.bf16.msra.mxu0 0
    %1854 = vmatprep.subr.bf16.mxu0 0
    %1855 = vmatpush1.bf16.msra.mxu0 0
    %1856 = vmatprep.subr.bf16.mxu0 0
    %1857 = vmatpush1.bf16.msra.mxu0 0
    %1858 = vmatprep.subr.bf16.mxu0 0
    %1859 = vmatpush1.bf16.msra.mxu0 0
    %1860 = vmatprep.subr.bf16.mxu0 0
    %1861 = vmatpush1.bf16.msra.mxu0 %v487
    %1862 = vmatprep.subr.bf16.mxu0 0
    %1863 = vmatpush2.bf16.msra.mxu0 0
    %1864 = vmatprep.subr.bf16.mxu0 0
    %1865 = vmatpush2.bf16.msra.mxu0 0
    %1866 = vmatprep.subr.bf16.mxu0 0
    %1867 = vmatpush2.bf16.msra.mxu0 0
    %1868 = vmatprep.subr.bf16.mxu0 0
    %1869 = vmatpush2.bf16.msra.mxu0 0
    %1870 = vmatprep.subr.bf16.mxu0 0
    %1871 = vmatpush2.bf16.msra.mxu0 0
    %1872 = vmatprep.subr.bf16.mxu0 0
    %1873 = vmatpush2.bf16.msra.mxu0 0
    %1874 = vmatprep.subr.bf16.mxu0 0
    %1875 = vmatpush2.bf16.msra.mxu0 0
    %1876 = vmatprep.subr.bf16.mxu0 0
    %1877 = vmatpush2.bf16.msra.mxu0 0
    %1878 = vmatprep.mubr.bf16.mxu0 0
    %1879 = vmatmul.mubr.bf16.gmra.mxu0 %v1844
    %v1880 = vpop.f32.mrf.mxu0
    %v1881 = vadd.f32 0.0, %v1880
    %v1882 = vpop.f32.mrf.mxu0
    %v1883 = vpop.f32.mrf.mxu0
    %v1884 = vadd.f32 0.0, %v1883
    %v1885 = vpop.f32.mrf.mxu0
    %1886 = vdwg.mxu0
    %v1887 = vsub.f32 %v1789, %v1835
    %v1888 = vsub.f32 %v1792, %v1838
    %v1889 = vsub.f32 %v1881, %v1789
    %v1890 = vsub.f32 %v1884, %v1792
    %v1891 = vsub.f32 %v1889, %v1835
    %v1892 = vsub.f32 %v1890, %v1838
    %1895 = vrot.lane.b32.xlu0 %v1887, 64
    %v1896 = vpop.permute.xlu0 %1895
    %1897 = vrot.lane.b32.xlu0 %v1888, 64
    %v1898 = vpop.permute.xlu0 %1897
    %v1901 = vsub.f32 %v211, %v1896
    %v1902 = vsub.f32 %v212, %v1898
    %v1903 = vmul.f32 %v1901, %v215
    %v1904 = vmul.f32 %v1902, %v216
    %1907 = vrot.lane.b32.xlu0 %v1903, 64
    %v1908 = vpop.permute.xlu0 %1907
    %1909 = vrot.lane.b32.xlu0 %v1904, 64
    %v1910 = vpop.permute.xlu0 %1909
    %v1913 = vadd.f32 %v1887, %v1908
    %v1914 = vadd.f32 %v1888, %v1910
    %1917 = vrot.lane.b32.xlu0 %v1891, 64
    %v1918 = vpop.permute.xlu0 %1917
    %1919 = vrot.lane.b32.xlu0 %v1892, 64
    %v1920 = vpop.permute.xlu0 %1919
    %v1923 = vsub.f32 %v213, %v1918
    %v1924 = vsub.f32 %v214, %v1920
    %v1925 = vmul.f32 %v1923, %v217
    %v1926 = vmul.f32 %v1924, %v218
    %1929 = vrot.lane.b32.xlu0 %v1925, 64
    %v1930 = vpop.permute.xlu0 %1929
    %1931 = vrot.lane.b32.xlu0 %v1926, 64
    %v1932 = vpop.permute.xlu0 %1931
    %v1935 = vadd.f32 %v1891, %v1930
    %v1936 = vadd.f32 %v1892, %v1932
    %v1937 = vpack.c.bf16 %v1914, %v1913
    %v1939 = vsel %vm225, %v1937, 0
    %1941 = vmatprep.subr.bf16.mxu0 0
    %1942 = vmatpush1.bf16.msra.mxu0 0
    %1943 = vmatprep.subr.bf16.mxu0 0
    %1944 = vmatpush1.bf16.msra.mxu0 0
    %1945 = vmatprep.subr.bf16.mxu0 0
    %1946 = vmatpush1.bf16.msra.mxu0 0
    %1947 = vmatprep.subr.bf16.mxu0 0
    %1948 = vmatpush1.bf16.msra.mxu0 0
    %1949 = vmatprep.subr.bf16.mxu0 0
    %1950 = vmatpush1.bf16.msra.mxu0 0
    %1951 = vmatprep.subr.bf16.mxu0 0
    %1952 = vmatpush1.bf16.msra.mxu0 0
    %1953 = vmatprep.subr.bf16.mxu0 0
    %1954 = vmatpush1.bf16.msra.mxu0 0
    %1955 = vmatprep.subr.bf16.mxu0 0
    %1956 = vmatpush1.bf16.msra.mxu0 %v383
    %1957 = vmatprep.subr.bf16.mxu0 0
    %1958 = vmatpush2.bf16.msra.mxu0 0
    %1959 = vmatprep.subr.bf16.mxu0 0
    %1960 = vmatpush2.bf16.msra.mxu0 0
    %1961 = vmatprep.subr.bf16.mxu0 0
    %1962 = vmatpush2.bf16.msra.mxu0 0
    %1963 = vmatprep.subr.bf16.mxu0 0
    %1964 = vmatpush2.bf16.msra.mxu0 0
    %1965 = vmatprep.subr.bf16.mxu0 0
    %1966 = vmatpush2.bf16.msra.mxu0 0
    %1967 = vmatprep.subr.bf16.mxu0 0
    %1968 = vmatpush2.bf16.msra.mxu0 0
    %1969 = vmatprep.subr.bf16.mxu0 0
    %1970 = vmatpush2.bf16.msra.mxu0 0
    %1971 = vmatprep.subr.bf16.mxu0 0
    %1972 = vmatpush2.bf16.msra.mxu0 0
    %1973 = vmatprep.mubr.bf16.mxu0 0
    %1974 = vmatmul.mubr.bf16.gmra.mxu0 %v1939
    %v1975 = vpop.f32.mrf.mxu0
    %v1976 = vadd.f32 0.0, %v1975
    %v1977 = vpop.f32.mrf.mxu0
    %v1978 = vpop.f32.mrf.mxu0
    %v1979 = vadd.f32 0.0, %v1978
    %v1980 = vpop.f32.mrf.mxu0
    %1981 = vdwg.mxu0
    %v1982 = vpack.c.bf16 %v1936, %v1935
    %v1984 = vsel %vm225, %v1982, 0
    %1986 = vmatprep.subr.bf16.mxu0 0
    %1987 = vmatpush1.bf16.msra.mxu0 0
    %1988 = vmatprep.subr.bf16.mxu0 0
    %1989 = vmatpush1.bf16.msra.mxu0 0
    %1990 = vmatprep.subr.bf16.mxu0 0
    %1991 = vmatpush1.bf16.msra.mxu0 0
    %1992 = vmatprep.subr.bf16.mxu0 0
    %1993 = vmatpush1.bf16.msra.mxu0 0
    %1994 = vmatprep.subr.bf16.mxu0 0
    %1995 = vmatpush1.bf16.msra.mxu0 0
    %1996 = vmatprep.subr.bf16.mxu0 0
    %1997 = vmatpush1.bf16.msra.mxu0 0
    %1998 = vmatprep.subr.bf16.mxu0 0
    %1999 = vmatpush1.bf16.msra.mxu0 0
    %2000 = vmatprep.subr.bf16.mxu0 0
    %2001 = vmatpush1.bf16.msra.mxu0 %v434
    %2002 = vmatprep.subr.bf16.mxu0 0
    %2003 = vmatpush2.bf16.msra.mxu0 0
    %2004 = vmatprep.subr.bf16.mxu0 0
    %2005 = vmatpush2.bf16.msra.mxu0 0
    %2006 = vmatprep.subr.bf16.mxu0 0
    %2007 = vmatpush2.bf16.msra.mxu0 0
    %2008 = vmatprep.subr.bf16.mxu0 0
    %2009 = vmatpush2.bf16.msra.mxu0 0
    %2010 = vmatprep.subr.bf16.mxu0 0
    %2011 = vmatpush2.bf16.msra.mxu0 0
    %2012 = vmatprep.subr.bf16.mxu0 0
    %2013 = vmatpush2.bf16.msra.mxu0 0
    %2014 = vmatprep.subr.bf16.mxu0 0
    %2015 = vmatpush2.bf16.msra.mxu0 0
    %2016 = vmatprep.subr.bf16.mxu0 0
    %2017 = vmatpush2.bf16.msra.mxu0 0
    %2018 = vmatprep.mubr.bf16.mxu0 0
    %2019 = vmatmul.mubr.bf16.gmra.mxu0 %v1984
    %v2020 = vpop.f32.mrf.mxu0
    %v2021 = vadd.f32 0.0, %v2020
    %v2022 = vpop.f32.mrf.mxu0
    %v2023 = vpop.f32.mrf.mxu0
    %v2024 = vadd.f32 0.0, %v2023
    %v2025 = vpop.f32.mrf.mxu0
    %2026 = vdwg.mxu0
    %v2027 = vsub.f32 %v1935, %v1913
    %v2028 = vsub.f32 %v1936, %v1914
    %v2029 = vpack.c.bf16 %v2028, %v2027
    %v2030 = vadd.f32 %v1976, %v2021
    %v2031 = vadd.f32 %v1979, %v2024
    %2034 = vrot.lane.b32.xlu0 %v2030, 64
    %v2035 = vpop.permute.xlu0 %2034
    %2036 = vrot.lane.b32.xlu0 %v2031, 64
    %v2037 = vpop.permute.xlu0 %2036
    %vm2040 = vcmask 654848
    %2041 = vst.msk [vmem:[#allocation2] sm:$0xff] %vm2040, %v2035
    %2042 = vst.msk [vmem:[#allocation2 + $0x8] sm:$0xff] %vm2040, %v2037
    %v2044 = vsel %vm225, %v2029, 0
    %2046 = vmatprep.subr.bf16.mxu0 0
    %2047 = vmatpush1.bf16.msra.mxu0 0
    %2048 = vmatprep.subr.bf16.mxu0 0
    %2049 = vmatpush1.bf16.msra.mxu0 0
    %2050 = vmatprep.subr.bf16.mxu0 0
    %2051 = vmatpush1.bf16.msra.mxu0 0
    %2052 = vmatprep.subr.bf16.mxu0 0
    %2053 = vmatpush1.bf16.msra.mxu0 0
    %2054 = vmatprep.subr.bf16.mxu0 0
    %2055 = vmatpush1.bf16.msra.mxu0 0
    %2056 = vmatprep.subr.bf16.mxu0 0
    %2057 = vmatpush1.bf16.msra.mxu0 0
    %2058 = vmatprep.subr.bf16.mxu0 0
    %2059 = vmatpush1.bf16.msra.mxu0 0
    %2060 = vmatprep.subr.bf16.mxu0 0
    %2061 = vmatpush1.bf16.msra.mxu0 %v487
    %2062 = vmatprep.subr.bf16.mxu0 0
    %2063 = vmatpush2.bf16.msra.mxu0 0
    %2064 = vmatprep.subr.bf16.mxu0 0
    %2065 = vmatpush2.bf16.msra.mxu0 0
    %2066 = vmatprep.subr.bf16.mxu0 0
    %2067 = vmatpush2.bf16.msra.mxu0 0
    %2068 = vmatprep.subr.bf16.mxu0 0
    %2069 = vmatpush2.bf16.msra.mxu0 0
    %2070 = vmatprep.subr.bf16.mxu0 0
    %2071 = vmatpush2.bf16.msra.mxu0 0
    %2072 = vmatprep.subr.bf16.mxu0 0
    %2073 = vmatpush2.bf16.msra.mxu0 0
    %2074 = vmatprep.subr.bf16.mxu0 0
    %2075 = vmatpush2.bf16.msra.mxu0 0
    %2076 = vmatprep.subr.bf16.mxu0 0
    %2077 = vmatpush2.bf16.msra.mxu0 0
    %2078 = vmatprep.mubr.bf16.mxu0 0
    %2079 = vmatmul.mubr.bf16.gmra.mxu0 %v2044
    %v2080 = vpop.f32.mrf.mxu0
    %v2081 = vadd.f32 %v1976, %v2080
    %v2082 = vpop.f32.mrf.mxu0
    %v2083 = vpop.f32.mrf.mxu0
    %v2084 = vadd.f32 %v1979, %v2083
    %v2085 = vpop.f32.mrf.mxu0
    %2086 = vdwg.mxu0
    %v2087 = vsub.f32 %v2081, %v2021
    %v2088 = vsub.f32 %v2084, %v2024
    %2091 = vrot.lane.b32.xlu0 %v2087, 64
    %v2092 = vpop.permute.xlu0 %2091
    %2093 = vrot.lane.b32.xlu0 %v2088, 64
    %v2094 = vpop.permute.xlu0 %2093
    %2097 = vst.msk [vmem:[#allocation3] sm:$0xff] %vm2040, %v2092
    %2098 = vst.msk [vmem:[#allocation3 + $0x8] sm:$0xff] %vm2040, %v2094
    %2099 = vrot.lane.b32.xlu0 %v378, 48
    %v2100 = vpop.permute.xlu0 %2099
    %v2102 = vsel %vm225, %v2100, 0
    %2104 = vmatprep.subr.bf16.mxu0 0
    %2105 = vmatpush1.bf16.msra.mxu0 0
    %2106 = vmatprep.subr.bf16.mxu0 0
    %2107 = vmatpush1.bf16.msra.mxu0 0
    %2108 = vmatprep.subr.bf16.mxu0 0
    %2109 = vmatpush1.bf16.msra.mxu0 0
    %2110 = vmatprep.subr.bf16.mxu0 0
    %2111 = vmatpush1.bf16.msra.mxu0 0
    %2112 = vmatprep.subr.bf16.mxu0 0
    %2113 = vmatpush1.bf16.msra.mxu0 0
    %2114 = vmatprep.subr.bf16.mxu0 0
    %2115 = vmatpush1.bf16.msra.mxu0 0
    %2116 = vmatprep.subr.bf16.mxu0 0
    %2117 = vmatpush1.bf16.msra.mxu0 0
    %2118 = vmatprep.subr.bf16.mxu0 0
    %2119 = vmatpush1.bf16.msra.mxu0 %v383
    %2120 = vmatprep.subr.bf16.mxu0 0
    %2121 = vmatpush2.bf16.msra.mxu0 0
    %2122 = vmatprep.subr.bf16.mxu0 0
    %2123 = vmatpush2.bf16.msra.mxu0 0
    %2124 = vmatprep.subr.bf16.mxu0 0
    %2125 = vmatpush2.bf16.msra.mxu0 0
    %2126 = vmatprep.subr.bf16.mxu0 0
    %2127 = vmatpush2.bf16.msra.mxu0 0
    %2128 = vmatprep.subr.bf16.mxu0 0
    %2129 = vmatpush2.bf16.msra.mxu0 0
    %2130 = vmatprep.subr.bf16.mxu0 0
    %2131 = vmatpush2.bf16.msra.mxu0 0
    %2132 = vmatprep.subr.bf16.mxu0 0
    %2133 = vmatpush2.bf16.msra.mxu0 0
    %2134 = vmatprep.subr.bf16.mxu0 0
    %2135 = vmatpush2.bf16.msra.mxu0 0
    %2136 = vmatprep.mubr.bf16.mxu0 0
    %2137 = vmatmul.mubr.bf16.gmra.mxu0 %v2102
    %v2138 = vpop.f32.mrf.mxu0
    %v2139 = vadd.f32 0.0, %v2138
    %v2140 = vpop.f32.mrf.mxu0
    %v2141 = vpop.f32.mrf.mxu0
    %v2142 = vadd.f32 0.0, %v2141
    %v2143 = vpop.f32.mrf.mxu0
    %2144 = vdwg.mxu0
    %2145 = vrot.lane.b32.xlu0 %v429, 48
    %v2146 = vpop.permute.xlu0 %2145
    %v2148 = vsel %vm225, %v2146, 0
    %2150 = vmatprep.subr.bf16.mxu0 0
    %2151 = vmatpush1.bf16.msra.mxu0 0
    %2152 = vmatprep.subr.bf16.mxu0 0
    %2153 = vmatpush1.bf16.msra.mxu0 0
    %2154 = vmatprep.subr.bf16.mxu0 0
    %2155 = vmatpush1.bf16.msra.mxu0 0
    %2156 = vmatprep.subr.bf16.mxu0 0
    %2157 = vmatpush1.bf16.msra.mxu0 0
    %2158 = vmatprep.subr.bf16.mxu0 0
    %2159 = vmatpush1.bf16.msra.mxu0 0
    %2160 = vmatprep.subr.bf16.mxu0 0
    %2161 = vmatpush1.bf16.msra.mxu0 0
    %2162 = vmatprep.subr.bf16.mxu0 0
    %2163 = vmatpush1.bf16.msra.mxu0 0
    %2164 = vmatprep.subr.bf16.mxu0 0
    %2165 = vmatpush1.bf16.msra.mxu0 %v434
    %2166 = vmatprep.subr.bf16.mxu0 0
    %2167 = vmatpush2.bf16.msra.mxu0 0
    %2168 = vmatprep.subr.bf16.mxu0 0
    %2169 = vmatpush2.bf16.msra.mxu0 0
    %2170 = vmatprep.subr.bf16.mxu0 0
    %2171 = vmatpush2.bf16.msra.mxu0 0
    %2172 = vmatprep.subr.bf16.mxu0 0
    %2173 = vmatpush2.bf16.msra.mxu0 0
    %2174 = vmatprep.subr.bf16.mxu0 0
    %2175 = vmatpush2.bf16.msra.mxu0 0
    %2176 = vmatprep.subr.bf16.mxu0 0
    %2177 = vmatpush2.bf16.msra.mxu0 0
    %2178 = vmatprep.subr.bf16.mxu0 0
    %2179 = vmatpush2.bf16.msra.mxu0 0
    %2180 = vmatprep.subr.bf16.mxu0 0
    %2181 = vmatpush2.bf16.msra.mxu0 0
    %2182 = vmatprep.mubr.bf16.mxu0 0
    %2183 = vmatmul.mubr.bf16.gmra.mxu0 %v2148
    %v2184 = vpop.f32.mrf.mxu0
    %v2185 = vadd.f32 0.0, %v2184
    %v2186 = vpop.f32.mrf.mxu0
    %v2187 = vpop.f32.mrf.mxu0
    %v2188 = vadd.f32 0.0, %v2187
    %v2189 = vpop.f32.mrf.mxu0
    %2190 = vdwg.mxu0
    %2191 = vrot.lane.b32.xlu0 %v482, 48
    %v2192 = vpop.permute.xlu0 %2191
    %v2194 = vsel %vm225, %v2192, 0
    %2196 = vmatprep.subr.bf16.mxu0 0
    %2197 = vmatpush1.bf16.msra.mxu0 0
    %2198 = vmatprep.subr.bf16.mxu0 0
    %2199 = vmatpush1.bf16.msra.mxu0 0
    %2200 = vmatprep.subr.bf16.mxu0 0
    %2201 = vmatpush1.bf16.msra.mxu0 0
    %2202 = vmatprep.subr.bf16.mxu0 0
    %2203 = vmatpush1.bf16.msra.mxu0 0
    %2204 = vmatprep.subr.bf16.mxu0 0
    %2205 = vmatpush1.bf16.msra.mxu0 0
    %2206 = vmatprep.subr.bf16.mxu0 0
    %2207 = vmatpush1.bf16.msra.mxu0 0
    %2208 = vmatprep.subr.bf16.mxu0 0
    %2209 = vmatpush1.bf16.msra.mxu0 0
    %2210 = vmatprep.subr.bf16.mxu0 0
    %2211 = vmatpush1.bf16.msra.mxu0 %v487
    %2212 = vmatprep.subr.bf16.mxu0 0
    %2213 = vmatpush2.bf16.msra.mxu0 0
    %2214 = vmatprep.subr.bf16.mxu0 0
    %2215 = vmatpush2.bf16.msra.mxu0 0
    %2216 = vmatprep.subr.bf16.mxu0 0
    %2217 = vmatpush2.bf16.msra.mxu0 0
    %2218 = vmatprep.subr.bf16.mxu0 0
    %2219 = vmatpush2.bf16.msra.mxu0 0
    %2220 = vmatprep.subr.bf16.mxu0 0
    %2221 = vmatpush2.bf16.msra.mxu0 0
    %2222 = vmatprep.subr.bf16.mxu0 0
    %2223 = vmatpush2.bf16.msra.mxu0 0
    %2224 = vmatprep.subr.bf16.mxu0 0
    %2225 = vmatpush2.bf16.msra.mxu0 0
    %2226 = vmatprep.subr.bf16.mxu0 0
    %2227 = vmatpush2.bf16.msra.mxu0 0
    %2228 = vmatprep.mubr.bf16.mxu0 0
    %2229 = vmatmul.mubr.bf16.gmra.mxu0 %v2194
    %v2230 = vpop.f32.mrf.mxu0
    %v2231 = vadd.f32 0.0, %v2230
    %v2232 = vpop.f32.mrf.mxu0
    %v2233 = vpop.f32.mrf.mxu0
    %v2234 = vadd.f32 0.0, %v2233
    %v2235 = vpop.f32.mrf.mxu0
    %2236 = vdwg.mxu0
    %v2237 = vsub.f32 %v2139, %v2185
    %v2238 = vsub.f32 %v2142, %v2188
    %v2239 = vsub.f32 %v2231, %v2139
    %v2240 = vsub.f32 %v2234, %v2142
    %v2241 = vsub.f32 %v2239, %v2185
    %v2242 = vsub.f32 %v2240, %v2188
    %2245 = vrot.lane.b32.xlu0 %v2237, 80
    %v2246 = vpop.permute.xlu0 %2245
    %2247 = vrot.lane.b32.xlu0 %v2238, 80
    %v2248 = vpop.permute.xlu0 %2247
    %v2251 = vsub.f32 %v211, %v2246
    %v2252 = vsub.f32 %v212, %v2248
    %v2253 = vmul.f32 %v2251, %v215
    %v2254 = vmul.f32 %v2252, %v216
    %2257 = vrot.lane.b32.xlu0 %v2253, 48
    %v2258 = vpop.permute.xlu0 %2257
    %2259 = vrot.lane.b32.xlu0 %v2254, 48
    %v2260 = vpop.permute.xlu0 %2259
    %v2263 = vadd.f32 %v2237, %v2258
    %v2264 = vadd.f32 %v2238, %v2260
    %2267 = vrot.lane.b32.xlu0 %v2241, 80
    %v2268 = vpop.permute.xlu0 %2267
    %2269 = vrot.lane.b32.xlu0 %v2242, 80
    %v2270 = vpop.permute.xlu0 %2269
    %v2273 = vsub.f32 %v213, %v2268
    %v2274 = vsub.f32 %v214, %v2270
    %v2275 = vmul.f32 %v2273, %v217
    %v2276 = vmul.f32 %v2274, %v218
    %2279 = vrot.lane.b32.xlu0 %v2275, 48
    %v2280 = vpop.permute.xlu0 %2279
    %2281 = vrot.lane.b32.xlu0 %v2276, 48
    %v2282 = vpop.permute.xlu0 %2281
    %v2285 = vadd.f32 %v2241, %v2280
    %v2286 = vadd.f32 %v2242, %v2282
    %v2287 = vpack.c.bf16 %v2264, %v2263
    %v2289 = vsel %vm225, %v2287, 0
    %2291 = vmatprep.subr.bf16.mxu0 0
    %2292 = vmatpush1.bf16.msra.mxu0 0
    %2293 = vmatprep.subr.bf16.mxu0 0
    %2294 = vmatpush1.bf16.msra.mxu0 0
    %2295 = vmatprep.subr.bf16.mxu0 0
    %2296 = vmatpush1.bf16.msra.mxu0 0
    %2297 = vmatprep.subr.bf16.mxu0 0
    %2298 = vmatpush1.bf16.msra.mxu0 0
    %2299 = vmatprep.subr.bf16.mxu0 0
    %2300 = vmatpush1.bf16.msra.mxu0 0
    %2301 = vmatprep.subr.bf16.mxu0 0
    %2302 = vmatpush1.bf16.msra.mxu0 0
    %2303 = vmatprep.subr.bf16.mxu0 0
    %2304 = vmatpush1.bf16.msra.mxu0 0
    %2305 = vmatprep.subr.bf16.mxu0 0
    %2306 = vmatpush1.bf16.msra.mxu0 %v383
    %2307 = vmatprep.subr.bf16.mxu0 0
    %2308 = vmatpush2.bf16.msra.mxu0 0
    %2309 = vmatprep.subr.bf16.mxu0 0
    %2310 = vmatpush2.bf16.msra.mxu0 0
    %2311 = vmatprep.subr.bf16.mxu0 0
    %2312 = vmatpush2.bf16.msra.mxu0 0
    %2313 = vmatprep.subr.bf16.mxu0 0
    %2314 = vmatpush2.bf16.msra.mxu0 0
    %2315 = vmatprep.subr.bf16.mxu0 0
    %2316 = vmatpush2.bf16.msra.mxu0 0
    %2317 = vmatprep.subr.bf16.mxu0 0
    %2318 = vmatpush2.bf16.msra.mxu0 0
    %2319 = vmatprep.subr.bf16.mxu0 0
    %2320 = vmatpush2.bf16.msra.mxu0 0
    %2321 = vmatprep.subr.bf16.mxu0 0
    %2322 = vmatpush2.bf16.msra.mxu0 0
    %2323 = vmatprep.mubr.bf16.mxu0 0
    %2324 = vmatmul.mubr.bf16.gmra.mxu0 %v2289
    %v2325 = vpop.f32.mrf.mxu0
    %v2326 = vadd.f32 0.0, %v2325
    %v2327 = vpop.f32.mrf.mxu0
    %v2328 = vpop.f32.mrf.mxu0
    %v2329 = vadd.f32 0.0, %v2328
    %v2330 = vpop.f32.mrf.mxu0
    %2331 = vdwg.mxu0
    %v2332 = vpack.c.bf16 %v2286, %v2285
    %v2334 = vsel %vm225, %v2332, 0
    %2336 = vmatprep.subr.bf16.mxu0 0
    %2337 = vmatpush1.bf16.msra.mxu0 0
    %2338 = vmatprep.subr.bf16.mxu0 0
    %2339 = vmatpush1.bf16.msra.mxu0 0
    %2340 = vmatprep.subr.bf16.mxu0 0
    %2341 = vmatpush1.bf16.msra.mxu0 0
    %2342 = vmatprep.subr.bf16.mxu0 0
    %2343 = vmatpush1.bf16.msra.mxu0 0
    %2344 = vmatprep.subr.bf16.mxu0 0
    %2345 = vmatpush1.bf16.msra.mxu0 0
    %2346 = vmatprep.subr.bf16.mxu0 0
    %2347 = vmatpush1.bf16.msra.mxu0 0
    %2348 = vmatprep.subr.bf16.mxu0 0
    %2349 = vmatpush1.bf16.msra.mxu0 0
    %2350 = vmatprep.subr.bf16.mxu0 0
    %2351 = vmatpush1.bf16.msra.mxu0 %v434
    %2352 = vmatprep.subr.bf16.mxu0 0
    %2353 = vmatpush2.bf16.msra.mxu0 0
    %2354 = vmatprep.subr.bf16.mxu0 0
    %2355 = vmatpush2.bf16.msra.mxu0 0
    %2356 = vmatprep.subr.bf16.mxu0 0
    %2357 = vmatpush2.bf16.msra.mxu0 0
    %2358 = vmatprep.subr.bf16.mxu0 0
    %2359 = vmatpush2.bf16.msra.mxu0 0
    %2360 = vmatprep.subr.bf16.mxu0 0
    %2361 = vmatpush2.bf16.msra.mxu0 0
    %2362 = vmatprep.subr.bf16.mxu0 0
    %2363 = vmatpush2.bf16.msra.mxu0 0
    %2364 = vmatprep.subr.bf16.mxu0 0
    %2365 = vmatpush2.bf16.msra.mxu0 0
    %2366 = vmatprep.subr.bf16.mxu0 0
    %2367 = vmatpush2.bf16.msra.mxu0 0
    %2368 = vmatprep.mubr.bf16.mxu0 0
    %2369 = vmatmul.mubr.bf16.gmra.mxu0 %v2334
    %v2370 = vpop.f32.mrf.mxu0
    %v2371 = vadd.f32 0.0, %v2370
    %v2372 = vpop.f32.mrf.mxu0
    %v2373 = vpop.f32.mrf.mxu0
    %v2374 = vadd.f32 0.0, %v2373
    %v2375 = vpop.f32.mrf.mxu0
    %2376 = vdwg.mxu0
    %v2377 = vsub.f32 %v2285, %v2263
    %v2378 = vsub.f32 %v2286, %v2264
    %v2379 = vpack.c.bf16 %v2378, %v2377
    %v2380 = vadd.f32 %v2326, %v2371
    %v2381 = vadd.f32 %v2329, %v2374
    %2384 = vrot.lane.b32.xlu0 %v2380, 80
    %v2385 = vpop.permute.xlu0 %2384
    %2386 = vrot.lane.b32.xlu0 %v2381, 80
    %v2387 = vpop.permute.xlu0 %2386
    %vm2390 = vcmask 786048
    %2391 = vst.msk [vmem:[#allocation2] sm:$0xff] %vm2390, %v2385
    %2392 = vst.msk [vmem:[#allocation2 + $0x8] sm:$0xff] %vm2390, %v2387
    %v2394 = vsel %vm225, %v2379, 0
    %2396 = vmatprep.subr.bf16.mxu0 0
    %2397 = vmatpush1.bf16.msra.mxu0 0
    %2398 = vmatprep.subr.bf16.mxu0 0
    %2399 = vmatpush1.bf16.msra.mxu0 0
    %2400 = vmatprep.subr.bf16.mxu0 0
    %2401 = vmatpush1.bf16.msra.mxu0 0
    %2402 = vmatprep.subr.bf16.mxu0 0
    %2403 = vmatpush1.bf16.msra.mxu0 0
    %2404 = vmatprep.subr.bf16.mxu0 0
    %2405 = vmatpush1.bf16.msra.mxu0 0
    %2406 = vmatprep.subr.bf16.mxu0 0
    %2407 = vmatpush1.bf16.msra.mxu0 0
    %2408 = vmatprep.subr.bf16.mxu0 0
    %2409 = vmatpush1.bf16.msra.mxu0 0
    %2410 = vmatprep.subr.bf16.mxu0 0
    %2411 = vmatpush1.bf16.msra.mxu0 %v487
    %2412 = vmatprep.subr.bf16.mxu0 0
    %2413 = vmatpush2.bf16.msra.mxu0 0
    %2414 = vmatprep.subr.bf16.mxu0 0
    %2415 = vmatpush2.bf16.msra.mxu0 0
    %2416 = vmatprep.subr.bf16.mxu0 0
    %2417 = vmatpush2.bf16.msra.mxu0 0
    %2418 = vmatprep.subr.bf16.mxu0 0
    %2419 = vmatpush2.bf16.msra.mxu0 0
    %2420 = vmatprep.subr.bf16.mxu0 0
    %2421 = vmatpush2.bf16.msra.mxu0 0
    %2422 = vmatprep.subr.bf16.mxu0 0
    %2423 = vmatpush2.bf16.msra.mxu0 0
    %2424 = vmatprep.subr.bf16.mxu0 0
    %2425 = vmatpush2.bf16.msra.mxu0 0
    %2426 = vmatprep.subr.bf16.mxu0 0
    %2427 = vmatpush2.bf16.msra.mxu0 0
    %2428 = vmatprep.mubr.bf16.mxu0 0
    %2429 = vmatmul.mubr.bf16.gmra.mxu0 %v2394
    %v2430 = vpop.f32.mrf.mxu0
    %v2431 = vadd.f32 %v2326, %v2430
    %v2432 = vpop.f32.mrf.mxu0
    %v2433 = vpop.f32.mrf.mxu0
    %v2434 = vadd.f32 %v2329, %v2433
    %v2435 = vpop.f32.mrf.mxu0
    %2436 = vdwg.mxu0
    %v2437 = vsub.f32 %v2431, %v2371
    %v2438 = vsub.f32 %v2434, %v2374
    %2441 = vrot.lane.b32.xlu0 %v2437, 80
    %v2442 = vpop.permute.xlu0 %2441
    %2443 = vrot.lane.b32.xlu0 %v2438, 80
    %v2444 = vpop.permute.xlu0 %2443
    %2447 = vst.msk [vmem:[#allocation3] sm:$0xff] %vm2390, %v2442
    %2448 = vst.msk [vmem:[#allocation3 + $0x8] sm:$0xff] %vm2390, %v2444
    %2449 = vrot.lane.b32.xlu0 %v378, 32
    %v2450 = vpop.permute.xlu0 %2449
    %v2452 = vsel %vm225, %v2450, 0
    %2454 = vmatprep.subr.bf16.mxu0 0
    %2455 = vmatpush1.bf16.msra.mxu0 0
    %2456 = vmatprep.subr.bf16.mxu0 0
    %2457 = vmatpush1.bf16.msra.mxu0 0
    %2458 = vmatprep.subr.bf16.mxu0 0
    %2459 = vmatpush1.bf16.msra.mxu0 0
    %2460 = vmatprep.subr.bf16.mxu0 0
    %2461 = vmatpush1.bf16.msra.mxu0 0
    %2462 = vmatprep.subr.bf16.mxu0 0
    %2463 = vmatpush1.bf16.msra.mxu0 0
    %2464 = vmatprep.subr.bf16.mxu0 0
    %2465 = vmatpush1.bf16.msra.mxu0 0
    %2466 = vmatprep.subr.bf16.mxu0 0
    %2467 = vmatpush1.bf16.msra.mxu0 0
    %2468 = vmatprep.subr.bf16.mxu0 0
    %2469 = vmatpush1.bf16.msra.mxu0 %v383
    %2470 = vmatprep.subr.bf16.mxu0 0
    %2471 = vmatpush2.bf16.msra.mxu0 0
    %2472 = vmatprep.subr.bf16.mxu0 0
    %2473 = vmatpush2.bf16.msra.mxu0 0
    %2474 = vmatprep.subr.bf16.mxu0 0
    %2475 = vmatpush2.bf16.msra.mxu0 0
    %2476 = vmatprep.subr.bf16.mxu0 0
    %2477 = vmatpush2.bf16.msra.mxu0 0
    %2478 = vmatprep.subr.bf16.mxu0 0
    %2479 = vmatpush2.bf16.msra.mxu0 0
    %2480 = vmatprep.subr.bf16.mxu0 0
    %2481 = vmatpush2.bf16.msra.mxu0 0
    %2482 = vmatprep.subr.bf16.mxu0 0
    %2483 = vmatpush2.bf16.msra.mxu0 0
    %2484 = vmatprep.subr.bf16.mxu0 0
    %2485 = vmatpush2.bf16.msra.mxu0 0
    %2486 = vmatprep.mubr.bf16.mxu0 0
    %2487 = vmatmul.mubr.bf16.gmra.mxu0 %v2452
    %v2488 = vpop.f32.mrf.mxu0
    %v2489 = vadd.f32 0.0, %v2488
    %v2490 = vpop.f32.mrf.mxu0
    %v2491 = vpop.f32.mrf.mxu0
    %v2492 = vadd.f32 0.0, %v2491
    %v2493 = vpop.f32.mrf.mxu0
    %2494 = vdwg.mxu0
    %2495 = vrot.lane.b32.xlu0 %v429, 32
    %v2496 = vpop.permute.xlu0 %2495
    %v2498 = vsel %vm225, %v2496, 0
    %2500 = vmatprep.subr.bf16.mxu0 0
    %2501 = vmatpush1.bf16.msra.mxu0 0
    %2502 = vmatprep.subr.bf16.mxu0 0
    %2503 = vmatpush1.bf16.msra.mxu0 0
    %2504 = vmatprep.subr.bf16.mxu0 0
    %2505 = vmatpush1.bf16.msra.mxu0 0
    %2506 = vmatprep.subr.bf16.mxu0 0
    %2507 = vmatpush1.bf16.msra.mxu0 0
    %2508 = vmatprep.subr.bf16.mxu0 0
    %2509 = vmatpush1.bf16.msra.mxu0 0
    %2510 = vmatprep.subr.bf16.mxu0 0
    %2511 = vmatpush1.bf16.msra.mxu0 0
    %2512 = vmatprep.subr.bf16.mxu0 0
    %2513 = vmatpush1.bf16.msra.mxu0 0
    %2514 = vmatprep.subr.bf16.mxu0 0
    %2515 = vmatpush1.bf16.msra.mxu0 %v434
    %2516 = vmatprep.subr.bf16.mxu0 0
    %2517 = vmatpush2.bf16.msra.mxu0 0
    %2518 = vmatprep.subr.bf16.mxu0 0
    %2519 = vmatpush2.bf16.msra.mxu0 0
    %2520 = vmatprep.subr.bf16.mxu0 0
    %2521 = vmatpush2.bf16.msra.mxu0 0
    %2522 = vmatprep.subr.bf16.mxu0 0
    %2523 = vmatpush2.bf16.msra.mxu0 0
    %2524 = vmatprep.subr.bf16.mxu0 0
    %2525 = vmatpush2.bf16.msra.mxu0 0
    %2526 = vmatprep.subr.bf16.mxu0 0
    %2527 = vmatpush2.bf16.msra.mxu0 0
    %2528 = vmatprep.subr.bf16.mxu0 0
    %2529 = vmatpush2.bf16.msra.mxu0 0
    %2530 = vmatprep.subr.bf16.mxu0 0
    %2531 = vmatpush2.bf16.msra.mxu0 0
    %2532 = vmatprep.mubr.bf16.mxu0 0
    %2533 = vmatmul.mubr.bf16.gmra.mxu0 %v2498
    %v2534 = vpop.f32.mrf.mxu0
    %v2535 = vadd.f32 0.0, %v2534
    %v2536 = vpop.f32.mrf.mxu0
    %v2537 = vpop.f32.mrf.mxu0
    %v2538 = vadd.f32 0.0, %v2537
    %v2539 = vpop.f32.mrf.mxu0
    %2540 = vdwg.mxu0
    %2541 = vrot.lane.b32.xlu0 %v482, 32
    %v2542 = vpop.permute.xlu0 %2541
    %v2544 = vsel %vm225, %v2542, 0
    %2546 = vmatprep.subr.bf16.mxu0 0
    %2547 = vmatpush1.bf16.msra.mxu0 0
    %2548 = vmatprep.subr.bf16.mxu0 0
    %2549 = vmatpush1.bf16.msra.mxu0 0
    %2550 = vmatprep.subr.bf16.mxu0 0
    %2551 = vmatpush1.bf16.msra.mxu0 0
    %2552 = vmatprep.subr.bf16.mxu0 0
    %2553 = vmatpush1.bf16.msra.mxu0 0
    %2554 = vmatprep.subr.bf16.mxu0 0
    %2555 = vmatpush1.bf16.msra.mxu0 0
    %2556 = vmatprep.subr.bf16.mxu0 0
    %2557 = vmatpush1.bf16.msra.mxu0 0
    %2558 = vmatprep.subr.bf16.mxu0 0
    %2559 = vmatpush1.bf16.msra.mxu0 0
    %2560 = vmatprep.subr.bf16.mxu0 0
    %2561 = vmatpush1.bf16.msra.mxu0 %v487
    %2562 = vmatprep.subr.bf16.mxu0 0
    %2563 = vmatpush2.bf16.msra.mxu0 0
    %2564 = vmatprep.subr.bf16.mxu0 0
    %2565 = vmatpush2.bf16.msra.mxu0 0
    %2566 = vmatprep.subr.bf16.mxu0 0
    %2567 = vmatpush2.bf16.msra.mxu0 0
    %2568 = vmatprep.subr.bf16.mxu0 0
    %2569 = vmatpush2.bf16.msra.mxu0 0
    %2570 = vmatprep.subr.bf16.mxu0 0
    %2571 = vmatpush2.bf16.msra.mxu0 0
    %2572 = vmatprep.subr.bf16.mxu0 0
    %2573 = vmatpush2.bf16.msra.mxu0 0
    %2574 = vmatprep.subr.bf16.mxu0 0
    %2575 = vmatpush2.bf16.msra.mxu0 0
    %2576 = vmatprep.subr.bf16.mxu0 0
    %2577 = vmatpush2.bf16.msra.mxu0 0
    %2578 = vmatprep.mubr.bf16.mxu0 0
    %2579 = vmatmul.mubr.bf16.gmra.mxu0 %v2544
    %v2580 = vpop.f32.mrf.mxu0
    %v2581 = vadd.f32 0.0, %v2580
    %v2582 = vpop.f32.mrf.mxu0
    %v2583 = vpop.f32.mrf.mxu0
    %v2584 = vadd.f32 0.0, %v2583
    %v2585 = vpop.f32.mrf.mxu0
    %2586 = vdwg.mxu0
    %v2587 = vsub.f32 %v2489, %v2535
    %v2588 = vsub.f32 %v2492, %v2538
    %v2589 = vsub.f32 %v2581, %v2489
    %v2590 = vsub.f32 %v2584, %v2492
    %v2591 = vsub.f32 %v2589, %v2535
    %v2592 = vsub.f32 %v2590, %v2538
    %2595 = vrot.lane.b32.xlu0 %v2587, 96
    %v2596 = vpop.permute.xlu0 %2595
    %2597 = vrot.lane.b32.xlu0 %v2588, 96
    %v2598 = vpop.permute.xlu0 %2597
    %v2601 = vsub.f32 %v211, %v2596
    %v2602 = vsub.f32 %v212, %v2598
    %v2603 = vmul.f32 %v2601, %v215
    %v2604 = vmul.f32 %v2602, %v216
    %2607 = vrot.lane.b32.xlu0 %v2603, 32
    %v2608 = vpop.permute.xlu0 %2607
    %2609 = vrot.lane.b32.xlu0 %v2604, 32
    %v2610 = vpop.permute.xlu0 %2609
    %v2613 = vadd.f32 %v2587, %v2608
    %v2614 = vadd.f32 %v2588, %v2610
    %2617 = vrot.lane.b32.xlu0 %v2591, 96
    %v2618 = vpop.permute.xlu0 %2617
    %2619 = vrot.lane.b32.xlu0 %v2592, 96
    %v2620 = vpop.permute.xlu0 %2619
    %v2623 = vsub.f32 %v213, %v2618
    %v2624 = vsub.f32 %v214, %v2620
    %v2625 = vmul.f32 %v2623, %v217
    %v2626 = vmul.f32 %v2624, %v218
    %2629 = vrot.lane.b32.xlu0 %v2625, 32
    %v2630 = vpop.permute.xlu0 %2629
    %2631 = vrot.lane.b32.xlu0 %v2626, 32
    %v2632 = vpop.permute.xlu0 %2631
    %v2635 = vadd.f32 %v2591, %v2630
    %v2636 = vadd.f32 %v2592, %v2632
    %v2637 = vpack.c.bf16 %v2614, %v2613
    %v2639 = vsel %vm225, %v2637, 0
    %2641 = vmatprep.subr.bf16.mxu0 0
    %2642 = vmatpush1.bf16.msra.mxu0 0
    %2643 = vmatprep.subr.bf16.mxu0 0
    %2644 = vmatpush1.bf16.msra.mxu0 0
    %2645 = vmatprep.subr.bf16.mxu0 0
    %2646 = vmatpush1.bf16.msra.mxu0 0
    %2647 = vmatprep.subr.bf16.mxu0 0
    %2648 = vmatpush1.bf16.msra.mxu0 0
    %2649 = vmatprep.subr.bf16.mxu0 0
    %2650 = vmatpush1.bf16.msra.mxu0 0
    %2651 = vmatprep.subr.bf16.mxu0 0
    %2652 = vmatpush1.bf16.msra.mxu0 0
    %2653 = vmatprep.subr.bf16.mxu0 0
    %2654 = vmatpush1.bf16.msra.mxu0 0
    %2655 = vmatprep.subr.bf16.mxu0 0
    %2656 = vmatpush1.bf16.msra.mxu0 %v383
    %2657 = vmatprep.subr.bf16.mxu0 0
    %2658 = vmatpush2.bf16.msra.mxu0 0
    %2659 = vmatprep.subr.bf16.mxu0 0
    %2660 = vmatpush2.bf16.msra.mxu0 0
    %2661 = vmatprep.subr.bf16.mxu0 0
    %2662 = vmatpush2.bf16.msra.mxu0 0
    %2663 = vmatprep.subr.bf16.mxu0 0
    %2664 = vmatpush2.bf16.msra.mxu0 0
    %2665 = vmatprep.subr.bf16.mxu0 0
    %2666 = vmatpush2.bf16.msra.mxu0 0
    %2667 = vmatprep.subr.bf16.mxu0 0
    %2668 = vmatpush2.bf16.msra.mxu0 0
    %2669 = vmatprep.subr.bf16.mxu0 0
    %2670 = vmatpush2.bf16.msra.mxu0 0
    %2671 = vmatprep.subr.bf16.mxu0 0
    %2672 = vmatpush2.bf16.msra.mxu0 0
    %2673 = vmatprep.mubr.bf16.mxu0 0
    %2674 = vmatmul.mubr.bf16.gmra.mxu0 %v2639
    %v2675 = vpop.f32.mrf.mxu0
    %v2676 = vadd.f32 0.0, %v2675
    %v2677 = vpop.f32.mrf.mxu0
    %v2678 = vpop.f32.mrf.mxu0
    %v2679 = vadd.f32 0.0, %v2678
    %v2680 = vpop.f32.mrf.mxu0
    %2681 = vdwg.mxu0
    %v2682 = vpack.c.bf16 %v2636, %v2635
    %v2684 = vsel %vm225, %v2682, 0
    %2686 = vmatprep.subr.bf16.mxu0 0
    %2687 = vmatpush1.bf16.msra.mxu0 0
    %2688 = vmatprep.subr.bf16.mxu0 0
    %2689 = vmatpush1.bf16.msra.mxu0 0
    %2690 = vmatprep.subr.bf16.mxu0 0
    %2691 = vmatpush1.bf16.msra.mxu0 0
    %2692 = vmatprep.subr.bf16.mxu0 0
    %2693 = vmatpush1.bf16.msra.mxu0 0
    %2694 = vmatprep.subr.bf16.mxu0 0
    %2695 = vmatpush1.bf16.msra.mxu0 0
    %2696 = vmatprep.subr.bf16.mxu0 0
    %2697 = vmatpush1.bf16.msra.mxu0 0
    %2698 = vmatprep.subr.bf16.mxu0 0
    %2699 = vmatpush1.bf16.msra.mxu0 0
    %2700 = vmatprep.subr.bf16.mxu0 0
    %2701 = vmatpush1.bf16.msra.mxu0 %v434
    %2702 = vmatprep.subr.bf16.mxu0 0
    %2703 = vmatpush2.bf16.msra.mxu0 0
    %2704 = vmatprep.subr.bf16.mxu0 0
    %2705 = vmatpush2.bf16.msra.mxu0 0
    %2706 = vmatprep.subr.bf16.mxu0 0
    %2707 = vmatpush2.bf16.msra.mxu0 0
    %2708 = vmatprep.subr.bf16.mxu0 0
    %2709 = vmatpush2.bf16.msra.mxu0 0
    %2710 = vmatprep.subr.bf16.mxu0 0
    %2711 = vmatpush2.bf16.msra.mxu0 0
    %2712 = vmatprep.subr.bf16.mxu0 0
    %2713 = vmatpush2.bf16.msra.mxu0 0
    %2714 = vmatprep.subr.bf16.mxu0 0
    %2715 = vmatpush2.bf16.msra.mxu0 0
    %2716 = vmatprep.subr.bf16.mxu0 0
    %2717 = vmatpush2.bf16.msra.mxu0 0
    %2718 = vmatprep.mubr.bf16.mxu0 0
    %2719 = vmatmul.mubr.bf16.gmra.mxu0 %v2684
    %v2720 = vpop.f32.mrf.mxu0
    %v2721 = vadd.f32 0.0, %v2720
    %v2722 = vpop.f32.mrf.mxu0
    %v2723 = vpop.f32.mrf.mxu0
    %v2724 = vadd.f32 0.0, %v2723
    %v2725 = vpop.f32.mrf.mxu0
    %2726 = vdwg.mxu0
    %v2727 = vsub.f32 %v2635, %v2613
    %v2728 = vsub.f32 %v2636, %v2614
    %v2729 = vpack.c.bf16 %v2728, %v2727
    %v2730 = vadd.f32 %v2676, %v2721
    %v2731 = vadd.f32 %v2679, %v2724
    %2734 = vrot.lane.b32.xlu0 %v2730, 96
    %v2735 = vpop.permute.xlu0 %2734
    %2736 = vrot.lane.b32.xlu0 %v2731, 96
    %v2737 = vpop.permute.xlu0 %2736
    %vm2740 = vcmask 917248
    %2741 = vst.msk [vmem:[#allocation2] sm:$0xff] %vm2740, %v2735
    %2742 = vst.msk [vmem:[#allocation2 + $0x8] sm:$0xff] %vm2740, %v2737
    %v2744 = vsel %vm225, %v2729, 0
    %2746 = vmatprep.subr.bf16.mxu0 0
    %2747 = vmatpush1.bf16.msra.mxu0 0
    %2748 = vmatprep.subr.bf16.mxu0 0
    %2749 = vmatpush1.bf16.msra.mxu0 0
    %2750 = vmatprep.subr.bf16.mxu0 0
    %2751 = vmatpush1.bf16.msra.mxu0 0
    %2752 = vmatprep.subr.bf16.mxu0 0
    %2753 = vmatpush1.bf16.msra.mxu0 0
    %2754 = vmatprep.subr.bf16.mxu0 0
    %2755 = vmatpush1.bf16.msra.mxu0 0
    %2756 = vmatprep.subr.bf16.mxu0 0
    %2757 = vmatpush1.bf16.msra.mxu0 0
    %2758 = vmatprep.subr.bf16.mxu0 0
    %2759 = vmatpush1.bf16.msra.mxu0 0
    %2760 = vmatprep.subr.bf16.mxu0 0
    %2761 = vmatpush1.bf16.msra.mxu0 %v487
    %2762 = vmatprep.subr.bf16.mxu0 0
    %2763 = vmatpush2.bf16.msra.mxu0 0
    %2764 = vmatprep.subr.bf16.mxu0 0
    %2765 = vmatpush2.bf16.msra.mxu0 0
    %2766 = vmatprep.subr.bf16.mxu0 0
    %2767 = vmatpush2.bf16.msra.mxu0 0
    %2768 = vmatprep.subr.bf16.mxu0 0
    %2769 = vmatpush2.bf16.msra.mxu0 0
    %2770 = vmatprep.subr.bf16.mxu0 0
    %2771 = vmatpush2.bf16.msra.mxu0 0
    %2772 = vmatprep.subr.bf16.mxu0 0
    %2773 = vmatpush2.bf16.msra.mxu0 0
    %2774 = vmatprep.subr.bf16.mxu0 0
    %2775 = vmatpush2.bf16.msra.mxu0 0
    %2776 = vmatprep.subr.bf16.mxu0 0
    %2777 = vmatpush2.bf16.msra.mxu0 0
    %2778 = vmatprep.mubr.bf16.mxu0 0
    %2779 = vmatmul.mubr.bf16.gmra.mxu0 %v2744
    %v2780 = vpop.f32.mrf.mxu0
    %v2781 = vadd.f32 %v2676, %v2780
    %v2782 = vpop.f32.mrf.mxu0
    %v2783 = vpop.f32.mrf.mxu0
    %v2784 = vadd.f32 %v2679, %v2783
    %v2785 = vpop.f32.mrf.mxu0
    %2786 = vdwg.mxu0
    %v2787 = vsub.f32 %v2781, %v2721
    %v2788 = vsub.f32 %v2784, %v2724
    %2791 = vrot.lane.b32.xlu0 %v2787, 96
    %v2792 = vpop.permute.xlu0 %2791
    %2793 = vrot.lane.b32.xlu0 %v2788, 96
    %v2794 = vpop.permute.xlu0 %2793
    %2797 = vst.msk [vmem:[#allocation3] sm:$0xff] %vm2740, %v2792
    %2798 = vst.msk [vmem:[#allocation3 + $0x8] sm:$0xff] %vm2740, %v2794
    %2799 = vrot.lane.b32.xlu0 %v378, 16
    %v2800 = vpop.permute.xlu0 %2799
    %v2802 = vsel %vm225, %v2800, 0
    %2804 = vmatprep.subr.bf16.mxu0 0
    %2805 = vmatpush1.bf16.msra.mxu0 0
    %2806 = vmatprep.subr.bf16.mxu0 0
    %2807 = vmatpush1.bf16.msra.mxu0 0
    %2808 = vmatprep.subr.bf16.mxu0 0
    %2809 = vmatpush1.bf16.msra.mxu0 0
    %2810 = vmatprep.subr.bf16.mxu0 0
    %2811 = vmatpush1.bf16.msra.mxu0 0
    %2812 = vmatprep.subr.bf16.mxu0 0
    %2813 = vmatpush1.bf16.msra.mxu0 0
    %2814 = vmatprep.subr.bf16.mxu0 0
    %2815 = vmatpush1.bf16.msra.mxu0 0
    %2816 = vmatprep.subr.bf16.mxu0 0
    %2817 = vmatpush1.bf16.msra.mxu0 0
    %2818 = vmatprep.subr.bf16.mxu0 0
    %2819 = vmatpush1.bf16.msra.mxu0 %v383
    %2820 = vmatprep.subr.bf16.mxu0 0
    %2821 = vmatpush2.bf16.msra.mxu0 0
    %2822 = vmatprep.subr.bf16.mxu0 0
    %2823 = vmatpush2.bf16.msra.mxu0 0
    %2824 = vmatprep.subr.bf16.mxu0 0
    %2825 = vmatpush2.bf16.msra.mxu0 0
    %2826 = vmatprep.subr.bf16.mxu0 0
    %2827 = vmatpush2.bf16.msra.mxu0 0
    %2828 = vmatprep.subr.bf16.mxu0 0
    %2829 = vmatpush2.bf16.msra.mxu0 0
    %2830 = vmatprep.subr.bf16.mxu0 0
    %2831 = vmatpush2.bf16.msra.mxu0 0
    %2832 = vmatprep.subr.bf16.mxu0 0
    %2833 = vmatpush2.bf16.msra.mxu0 0
    %2834 = vmatprep.subr.bf16.mxu0 0
    %2835 = vmatpush2.bf16.msra.mxu0 0
    %2836 = vmatprep.mubr.bf16.mxu0 0
    %2837 = vmatmul.mubr.bf16.gmra.mxu0 %v2802
    %v2838 = vpop.f32.mrf.mxu0
    %v2839 = vadd.f32 0.0, %v2838
    %v2840 = vpop.f32.mrf.mxu0
    %v2841 = vpop.f32.mrf.mxu0
    %v2842 = vadd.f32 0.0, %v2841
    %v2843 = vpop.f32.mrf.mxu0
    %2844 = vdwg.mxu0
    %2845 = vrot.lane.b32.xlu0 %v429, 16
    %v2846 = vpop.permute.xlu0 %2845
    %v2848 = vsel %vm225, %v2846, 0
    %2850 = vmatprep.subr.bf16.mxu0 0
    %2851 = vmatpush1.bf16.msra.mxu0 0
    %2852 = vmatprep.subr.bf16.mxu0 0
    %2853 = vmatpush1.bf16.msra.mxu0 0
    %2854 = vmatprep.subr.bf16.mxu0 0
    %2855 = vmatpush1.bf16.msra.mxu0 0
    %2856 = vmatprep.subr.bf16.mxu0 0
    %2857 = vmatpush1.bf16.msra.mxu0 0
    %2858 = vmatprep.subr.bf16.mxu0 0
    %2859 = vmatpush1.bf16.msra.mxu0 0
    %2860 = vmatprep.subr.bf16.mxu0 0
    %2861 = vmatpush1.bf16.msra.mxu0 0
    %2862 = vmatprep.subr.bf16.mxu0 0
    %2863 = vmatpush1.bf16.msra.mxu0 0
    %2864 = vmatprep.subr.bf16.mxu0 0
    %2865 = vmatpush1.bf16.msra.mxu0 %v434
    %2866 = vmatprep.subr.bf16.mxu0 0
    %2867 = vmatpush2.bf16.msra.mxu0 0
    %2868 = vmatprep.subr.bf16.mxu0 0
    %2869 = vmatpush2.bf16.msra.mxu0 0
    %2870 = vmatprep.subr.bf16.mxu0 0
    %2871 = vmatpush2.bf16.msra.mxu0 0
    %2872 = vmatprep.subr.bf16.mxu0 0
    %2873 = vmatpush2.bf16.msra.mxu0 0
    %2874 = vmatprep.subr.bf16.mxu0 0
    %2875 = vmatpush2.bf16.msra.mxu0 0
    %2876 = vmatprep.subr.bf16.mxu0 0
    %2877 = vmatpush2.bf16.msra.mxu0 0
    %2878 = vmatprep.subr.bf16.mxu0 0
    %2879 = vmatpush2.bf16.msra.mxu0 0
    %2880 = vmatprep.subr.bf16.mxu0 0
    %2881 = vmatpush2.bf16.msra.mxu0 0
    %2882 = vmatprep.mubr.bf16.mxu0 0
    %2883 = vmatmul.mubr.bf16.gmra.mxu0 %v2848
    %v2884 = vpop.f32.mrf.mxu0
    %v2885 = vadd.f32 0.0, %v2884
    %v2886 = vpop.f32.mrf.mxu0
    %v2887 = vpop.f32.mrf.mxu0
    %v2888 = vadd.f32 0.0, %v2887
    %v2889 = vpop.f32.mrf.mxu0
    %2890 = vdwg.mxu0
    %2891 = vrot.lane.b32.xlu0 %v482, 16
    %v2892 = vpop.permute.xlu0 %2891
    %v2894 = vsel %vm225, %v2892, 0
    %2896 = vmatprep.subr.bf16.mxu0 0
    %2897 = vmatpush1.bf16.msra.mxu0 0
    %2898 = vmatprep.subr.bf16.mxu0 0
    %2899 = vmatpush1.bf16.msra.mxu0 0
    %2900 = vmatprep.subr.bf16.mxu0 0
    %2901 = vmatpush1.bf16.msra.mxu0 0
    %2902 = vmatprep.subr.bf16.mxu0 0
    %2903 = vmatpush1.bf16.msra.mxu0 0
    %2904 = vmatprep.subr.bf16.mxu0 0
    %2905 = vmatpush1.bf16.msra.mxu0 0
    %2906 = vmatprep.subr.bf16.mxu0 0
    %2907 = vmatpush1.bf16.msra.mxu0 0
    %2908 = vmatprep.subr.bf16.mxu0 0
    %2909 = vmatpush1.bf16.msra.mxu0 0
    %2910 = vmatprep.subr.bf16.mxu0 0
    %2911 = vmatpush1.bf16.msra.mxu0 %v487
    %2912 = vmatprep.subr.bf16.mxu0 0
    %2913 = vmatpush2.bf16.msra.mxu0 0
    %2914 = vmatprep.subr.bf16.mxu0 0
    %2915 = vmatpush2.bf16.msra.mxu0 0
    %2916 = vmatprep.subr.bf16.mxu0 0
    %2917 = vmatpush2.bf16.msra.mxu0 0
    %2918 = vmatprep.subr.bf16.mxu0 0
    %2919 = vmatpush2.bf16.msra.mxu0 0
    %2920 = vmatprep.subr.bf16.mxu0 0
    %2921 = vmatpush2.bf16.msra.mxu0 0
    %2922 = vmatprep.subr.bf16.mxu0 0
    %2923 = vmatpush2.bf16.msra.mxu0 0
    %2924 = vmatprep.subr.bf16.mxu0 0
    %2925 = vmatpush2.bf16.msra.mxu0 0
    %2926 = vmatprep.subr.bf16.mxu0 0
    %2927 = vmatpush2.bf16.msra.mxu0 0
    %2928 = vmatprep.mubr.bf16.mxu0 0
    %2929 = vmatmul.mubr.bf16.gmra.mxu0 %v2894
    %v2930 = vpop.f32.mrf.mxu0
    %v2931 = vadd.f32 0.0, %v2930
    %v2932 = vpop.f32.mrf.mxu0
    %v2933 = vpop.f32.mrf.mxu0
    %v2934 = vadd.f32 0.0, %v2933
    %v2935 = vpop.f32.mrf.mxu0
    %2936 = vdwg.mxu0
    %v2937 = vsub.f32 %v2839, %v2885
    %v2938 = vsub.f32 %v2842, %v2888
    %v2939 = vsub.f32 %v2931, %v2839
    %v2940 = vsub.f32 %v2934, %v2842
    %v2941 = vsub.f32 %v2939, %v2885
    %v2942 = vsub.f32 %v2940, %v2888
    %2945 = vrot.lane.b32.xlu0 %v2937, 112
    %v2946 = vpop.permute.xlu0 %2945
    %2947 = vrot.lane.b32.xlu0 %v2938, 112
    %v2948 = vpop.permute.xlu0 %2947
    %v2951 = vsub.f32 %v211, %v2946
    %v2952 = vsub.f32 %v212, %v2948
    %v2953 = vmul.f32 %v2951, %v215
    %v2954 = vmul.f32 %v2952, %v216
    %2957 = vrot.lane.b32.xlu0 %v2953, 16
    %v2958 = vpop.permute.xlu0 %2957
    %2959 = vrot.lane.b32.xlu0 %v2954, 16
    %v2960 = vpop.permute.xlu0 %2959
    %v2963 = vadd.f32 %v2937, %v2958
    %v2964 = vadd.f32 %v2938, %v2960
    %2967 = vrot.lane.b32.xlu0 %v2941, 112
    %v2968 = vpop.permute.xlu0 %2967
    %2969 = vrot.lane.b32.xlu0 %v2942, 112
    %v2970 = vpop.permute.xlu0 %2969
    %v2973 = vsub.f32 %v213, %v2968
    %v2974 = vsub.f32 %v214, %v2970
    %v2975 = vmul.f32 %v2973, %v217
    %v2976 = vmul.f32 %v2974, %v218
    %2979 = vrot.lane.b32.xlu0 %v2975, 16
    %v2980 = vpop.permute.xlu0 %2979
    %2981 = vrot.lane.b32.xlu0 %v2976, 16
    %v2982 = vpop.permute.xlu0 %2981
    %v2985 = vadd.f32 %v2941, %v2980
    %v2986 = vadd.f32 %v2942, %v2982
    %v2987 = vpack.c.bf16 %v2964, %v2963
    %v2989 = vsel %vm225, %v2987, 0
    %2991 = vmatprep.subr.bf16.mxu0 0
    %2992 = vmatpush1.bf16.msra.mxu0 0
    %2993 = vmatprep.subr.bf16.mxu0 0
    %2994 = vmatpush1.bf16.msra.mxu0 0
    %2995 = vmatprep.subr.bf16.mxu0 0
    %2996 = vmatpush1.bf16.msra.mxu0 0
    %2997 = vmatprep.subr.bf16.mxu0 0
    %2998 = vmatpush1.bf16.msra.mxu0 0
    %2999 = vmatprep.subr.bf16.mxu0 0
    %3000 = vmatpush1.bf16.msra.mxu0 0
    %3001 = vmatprep.subr.bf16.mxu0 0
    %3002 = vmatpush1.bf16.msra.mxu0 0
    %3003 = vmatprep.subr.bf16.mxu0 0
    %3004 = vmatpush1.bf16.msra.mxu0 0
    %3005 = vmatprep.subr.bf16.mxu0 0
    %3006 = vmatpush1.bf16.msra.mxu0 %v383
    %3007 = vmatprep.subr.bf16.mxu0 0
    %3008 = vmatpush2.bf16.msra.mxu0 0
    %3009 = vmatprep.subr.bf16.mxu0 0
    %3010 = vmatpush2.bf16.msra.mxu0 0
    %3011 = vmatprep.subr.bf16.mxu0 0
    %3012 = vmatpush2.bf16.msra.mxu0 0
    %3013 = vmatprep.subr.bf16.mxu0 0
    %3014 = vmatpush2.bf16.msra.mxu0 0
    %3015 = vmatprep.subr.bf16.mxu0 0
    %3016 = vmatpush2.bf16.msra.mxu0 0
    %3017 = vmatprep.subr.bf16.mxu0 0
    %3018 = vmatpush2.bf16.msra.mxu0 0
    %3019 = vmatprep.subr.bf16.mxu0 0
    %3020 = vmatpush2.bf16.msra.mxu0 0
    %3021 = vmatprep.subr.bf16.mxu0 0
    %3022 = vmatpush2.bf16.msra.mxu0 0
    %3023 = vmatprep.mubr.bf16.mxu0 0
    %3024 = vmatmul.mubr.bf16.gmra.mxu0 %v2989
    %v3025 = vpop.f32.mrf.mxu0
    %v3026 = vadd.f32 0.0, %v3025
    %v3027 = vpop.f32.mrf.mxu0
    %v3028 = vpop.f32.mrf.mxu0
    %v3029 = vadd.f32 0.0, %v3028
    %v3030 = vpop.f32.mrf.mxu0
    %3031 = vdwg.mxu0
    %v3032 = vpack.c.bf16 %v2986, %v2985
    %v3034 = vsel %vm225, %v3032, 0
    %3036 = vmatprep.subr.bf16.mxu0 0
    %3037 = vmatpush1.bf16.msra.mxu0 0
    %3038 = vmatprep.subr.bf16.mxu0 0
    %3039 = vmatpush1.bf16.msra.mxu0 0
    %3040 = vmatprep.subr.bf16.mxu0 0
    %3041 = vmatpush1.bf16.msra.mxu0 0
    %3042 = vmatprep.subr.bf16.mxu0 0
    %3043 = vmatpush1.bf16.msra.mxu0 0
    %3044 = vmatprep.subr.bf16.mxu0 0
    %3045 = vmatpush1.bf16.msra.mxu0 0
    %3046 = vmatprep.subr.bf16.mxu0 0
    %3047 = vmatpush1.bf16.msra.mxu0 0
    %3048 = vmatprep.subr.bf16.mxu0 0
    %3049 = vmatpush1.bf16.msra.mxu0 0
    %3050 = vmatprep.subr.bf16.mxu0 0
    %3051 = vmatpush1.bf16.msra.mxu0 %v434
    %3052 = vmatprep.subr.bf16.mxu0 0
    %3053 = vmatpush2.bf16.msra.mxu0 0
    %3054 = vmatprep.subr.bf16.mxu0 0
    %3055 = vmatpush2.bf16.msra.mxu0 0
    %3056 = vmatprep.subr.bf16.mxu0 0
    %3057 = vmatpush2.bf16.msra.mxu0 0
    %3058 = vmatprep.subr.bf16.mxu0 0
    %3059 = vmatpush2.bf16.msra.mxu0 0
    %3060 = vmatprep.subr.bf16.mxu0 0
    %3061 = vmatpush2.bf16.msra.mxu0 0
    %3062 = vmatprep.subr.bf16.mxu0 0
    %3063 = vmatpush2.bf16.msra.mxu0 0
    %3064 = vmatprep.subr.bf16.mxu0 0
    %3065 = vmatpush2.bf16.msra.mxu0 0
    %3066 = vmatprep.subr.bf16.mxu0 0
    %3067 = vmatpush2.bf16.msra.mxu0 0
    %3068 = vmatprep.mubr.bf16.mxu0 0
    %3069 = vmatmul.mubr.bf16.gmra.mxu0 %v3034
    %v3070 = vpop.f32.mrf.mxu0
    %v3071 = vadd.f32 0.0, %v3070
    %v3072 = vpop.f32.mrf.mxu0
    %v3073 = vpop.f32.mrf.mxu0
    %v3074 = vadd.f32 0.0, %v3073
    %v3075 = vpop.f32.mrf.mxu0
    %3076 = vdwg.mxu0
    %v3077 = vsub.f32 %v2985, %v2963
    %v3078 = vsub.f32 %v2986, %v2964
    %v3079 = vpack.c.bf16 %v3078, %v3077
    %v3080 = vadd.f32 %v3026, %v3071
    %v3081 = vadd.f32 %v3029, %v3074
    %3084 = vrot.lane.b32.xlu0 %v3080, 112
    %v3085 = vpop.permute.xlu0 %3084
    %3086 = vrot.lane.b32.xlu0 %v3081, 112
    %v3087 = vpop.permute.xlu0 %3086
    %vm3090 = vcmask 1048448
    %3091 = vst.msk [vmem:[#allocation2] sm:$0xff] %vm3090, %v3085
    %3092 = vst.msk [vmem:[#allocation2 + $0x8] sm:$0xff] %vm3090, %v3087
    %v3094 = vsel %vm225, %v3079, 0
    %3096 = vmatprep.subr.bf16.mxu0 0
    %3097 = vmatpush1.bf16.msra.mxu0 0
    %3098 = vmatprep.subr.bf16.mxu0 0
    %3099 = vmatpush1.bf16.msra.mxu0 0
    %3100 = vmatprep.subr.bf16.mxu0 0
    %3101 = vmatpush1.bf16.msra.mxu0 0
    %3102 = vmatprep.subr.bf16.mxu0 0
    %3103 = vmatpush1.bf16.msra.mxu0 0
    %3104 = vmatprep.subr.bf16.mxu0 0
    %3105 = vmatpush1.bf16.msra.mxu0 0
    %3106 = vmatprep.subr.bf16.mxu0 0
    %3107 = vmatpush1.bf16.msra.mxu0 0
    %3108 = vmatprep.subr.bf16.mxu0 0
    %3109 = vmatpush1.bf16.msra.mxu0 0
    %3110 = vmatprep.subr.bf16.mxu0 0
    %3111 = vmatpush1.bf16.msra.mxu0 %v487
    %3112 = vmatprep.subr.bf16.mxu0 0
    %3113 = vmatpush2.bf16.msra.mxu0 0
    %3114 = vmatprep.subr.bf16.mxu0 0
    %3115 = vmatpush2.bf16.msra.mxu0 0
    %3116 = vmatprep.subr.bf16.mxu0 0
    %3117 = vmatpush2.bf16.msra.mxu0 0
    %3118 = vmatprep.subr.bf16.mxu0 0
    %3119 = vmatpush2.bf16.msra.mxu0 0
    %3120 = vmatprep.subr.bf16.mxu0 0
    %3121 = vmatpush2.bf16.msra.mxu0 0
    %3122 = vmatprep.subr.bf16.mxu0 0
    %3123 = vmatpush2.bf16.msra.mxu0 0
    %3124 = vmatprep.subr.bf16.mxu0 0
    %3125 = vmatpush2.bf16.msra.mxu0 0
    %3126 = vmatprep.subr.bf16.mxu0 0
    %3127 = vmatpush2.bf16.msra.mxu0 0
    %3128 = vmatprep.mubr.bf16.mxu0 0
    %3129 = vmatmul.mubr.bf16.gmra.mxu0 %v3094
    %v3130 = vpop.f32.mrf.mxu0
    %v3131 = vadd.f32 %v3026, %v3130
    %v3132 = vpop.f32.mrf.mxu0
    %v3133 = vpop.f32.mrf.mxu0
    %v3134 = vadd.f32 %v3029, %v3133
    %v3135 = vpop.f32.mrf.mxu0
    %3136 = vdwg.mxu0
    %v3137 = vsub.f32 %v3131, %v3071
    %v3138 = vsub.f32 %v3134, %v3074
    %3141 = vrot.lane.b32.xlu0 %v3137, 112
    %v3142 = vpop.permute.xlu0 %3141
    %3143 = vrot.lane.b32.xlu0 %v3138, 112
    %v3144 = vpop.permute.xlu0 %3143
    %3147 = vst.msk [vmem:[#allocation3] sm:$0xff] %vm3090, %v3142
    %3148 = vst.msk [vmem:[#allocation3 + $0x8] sm:$0xff] %vm3090, %v3144
    %v3149 = vld [vmem:[#allocation2] sm:$0xff]
    %v3150 = vld [vmem:[#allocation2 + $0x8] sm:$0xff]
    %v3151 = vld [vmem:[#allocation3] sm:$0xff]
    %v3152 = vld [vmem:[#allocation3 + $0x8] sm:$0xff]
    %v3153 = vpack.c.bf16 %v3150, %v3149
    %3154 = vmatprep.subr.bf16.mxu0 0
    %3155 = vmatpush1.bf16.msra.mxu0 0
    %3156 = vmatprep.subr.bf16.mxu0 0
    %3157 = vmatpush1.bf16.msra.mxu0 0
    %3158 = vmatprep.subr.bf16.mxu0 0
    %3159 = vmatpush1.bf16.msra.mxu0 0
    %3160 = vmatprep.subr.bf16.mxu0 0
    %3161 = vmatpush1.bf16.msra.mxu0 0
    %3162 = vmatprep.subr.bf16.mxu0 0
    %3163 = vmatpush1.bf16.msra.mxu0 0
    %3164 = vmatprep.subr.bf16.mxu0 0
    %3165 = vmatpush1.bf16.msra.mxu0 0
    %3166 = vmatprep.subr.bf16.mxu0 0
    %3167 = vmatpush1.bf16.msra.mxu0 0
    %3168 = vmatprep.subr.bf16.mxu0 0
    %3169 = vmatpush1.bf16.msra.mxu0 %v3153
    %3170 = vmatprep.subr.bf16.mxu0 0
    %3171 = vmatpush2.bf16.msra.mxu0 0
    %3172 = vmatprep.subr.bf16.mxu0 0
    %3173 = vmatpush2.bf16.msra.mxu0 0
    %3174 = vmatprep.subr.bf16.mxu0 0
    %3175 = vmatpush2.bf16.msra.mxu0 0
    %3176 = vmatprep.subr.bf16.mxu0 0
    %3177 = vmatpush2.bf16.msra.mxu0 0
    %3178 = vmatprep.subr.bf16.mxu0 0
    %3179 = vmatpush2.bf16.msra.mxu0 0
    %3180 = vmatprep.subr.bf16.mxu0 0
    %3181 = vmatpush2.bf16.msra.mxu0 0
    %3182 = vmatprep.subr.bf16.mxu0 0
    %3183 = vmatpush2.bf16.msra.mxu0 0
    %3184 = vmatprep.subr.bf16.mxu0 0
    %3185 = vmatpush2.bf16.msra.mxu0 0
    %3186 = vmatprep.mubr.bf16.mxu0 0
    %3187 = vmatmul.mubr.bf16.gmra.mxu0 %v227
    %v3188 = vpop.f32.mrf.mxu0
    %v3189 = vadd.f32 0.0, %v3188
    %v3190 = vpop.f32.mrf.mxu0
    %v3191 = vpop.f32.mrf.mxu0
    %v3192 = vadd.f32 0.0, %v3191
    %v3193 = vpop.f32.mrf.mxu0
    %3194 = vdwg.mxu0
    %v3195 = vpack.c.bf16 %v3152, %v3151
    %3196 = vmatprep.subr.bf16.mxu0 0
    %3197 = vmatpush1.bf16.msra.mxu0 0
    %3198 = vmatprep.subr.bf16.mxu0 0
    %3199 = vmatpush1.bf16.msra.mxu0 0
    %3200 = vmatprep.subr.bf16.mxu0 0
    %3201 = vmatpush1.bf16.msra.mxu0 0
    %3202 = vmatprep.subr.bf16.mxu0 0
    %3203 = vmatpush1.bf16.msra.mxu0 0
    %3204 = vmatprep.subr.bf16.mxu0 0
    %3205 = vmatpush1.bf16.msra.mxu0 0
    %3206 = vmatprep.subr.bf16.mxu0 0
    %3207 = vmatpush1.bf16.msra.mxu0 0
    %3208 = vmatprep.subr.bf16.mxu0 0
    %3209 = vmatpush1.bf16.msra.mxu0 0
    %3210 = vmatprep.subr.bf16.mxu0 0
    %3211 = vmatpush1.bf16.msra.mxu0 %v3195
    %3212 = vmatprep.subr.bf16.mxu0 0
    %3213 = vmatpush2.bf16.msra.mxu0 0
    %3214 = vmatprep.subr.bf16.mxu0 0
    %3215 = vmatpush2.bf16.msra.mxu0 0
    %3216 = vmatprep.subr.bf16.mxu0 0
    %3217 = vmatpush2.bf16.msra.mxu0 0
    %3218 = vmatprep.subr.bf16.mxu0 0
    %3219 = vmatpush2.bf16.msra.mxu0 0
    %3220 = vmatprep.subr.bf16.mxu0 0
    %3221 = vmatpush2.bf16.msra.mxu0 0
    %3222 = vmatprep.subr.bf16.mxu0 0
    %3223 = vmatpush2.bf16.msra.mxu0 0
    %3224 = vmatprep.subr.bf16.mxu0 0
    %3225 = vmatpush2.bf16.msra.mxu0 0
    %3226 = vmatprep.subr.bf16.mxu0 0
    %3227 = vmatpush2.bf16.msra.mxu0 0
    %3228 = vmatprep.mubr.bf16.mxu0 0
    %3229 = vmatmul.mubr.bf16.gmra.mxu0 %v277
    %v3230 = vpop.f32.mrf.mxu0
    %v3231 = vadd.f32 0.0, %v3230
    %v3232 = vpop.f32.mrf.mxu0
    %v3233 = vpop.f32.mrf.mxu0
    %v3234 = vadd.f32 0.0, %v3233
    %v3235 = vpop.f32.mrf.mxu0
    %3236 = vdwg.mxu0
    %v3237 = vsub.f32 %v3151, %v3149
    %v3238 = vsub.f32 %v3152, %v3150
    %v3239 = vpack.c.bf16 %v3238, %v3237
    %v3240 = vadd.f32 %v3189, %v3231
    %v3241 = vadd.f32 %v3192, %v3234
    %3242 = vst [vmem:[#allocation22] sm:$0xff] %v3240
    %3243 = vst [vmem:[#allocation22 + $0x8] sm:$0xff] %v3241
    %3244 = vmatprep.subr.bf16.mxu0 0
    %3245 = vmatpush1.bf16.msra.mxu0 0
    %3246 = vmatprep.subr.bf16.mxu0 0
    %3247 = vmatpush1.bf16.msra.mxu0 0
    %3248 = vmatprep.subr.bf16.mxu0 0
    %3249 = vmatpush1.bf16.msra.mxu0 0
    %3250 = vmatprep.subr.bf16.mxu0 0
    %3251 = vmatpush1.bf16.msra.mxu0 0
    %3252 = vmatprep.subr.bf16.mxu0 0
    %3253 = vmatpush1.bf16.msra.mxu0 0
    %3254 = vmatprep.subr.bf16.mxu0 0
    %3255 = vmatpush1.bf16.msra.mxu0 0
    %3256 = vmatprep.subr.bf16.mxu0 0
    %3257 = vmatpush1.bf16.msra.mxu0 0
    %3258 = vmatprep.subr.bf16.mxu0 0
    %3259 = vmatpush1.bf16.msra.mxu0 %v3239
    %3260 = vmatprep.subr.bf16.mxu0 0
    %3261 = vmatpush2.bf16.msra.mxu0 0
    %3262 = vmatprep.subr.bf16.mxu0 0
    %3263 = vmatpush2.bf16.msra.mxu0 0
    %3264 = vmatprep.subr.bf16.mxu0 0
    %3265 = vmatpush2.bf16.msra.mxu0 0
    %3266 = vmatprep.subr.bf16.mxu0 0
    %3267 = vmatpush2.bf16.msra.mxu0 0
    %3268 = vmatprep.subr.bf16.mxu0 0
    %3269 = vmatpush2.bf16.msra.mxu0 0
    %3270 = vmatprep.subr.bf16.mxu0 0
    %3271 = vmatpush2.bf16.msra.mxu0 0
    %3272 = vmatprep.subr.bf16.mxu0 0
    %3273 = vmatpush2.bf16.msra.mxu0 0
    %3274 = vmatprep.subr.bf16.mxu0 0
    %3275 = vmatpush2.bf16.msra.mxu0 0
    %3276 = vmatprep.mubr.bf16.mxu0 0
    %3277 = vmatmul.mubr.bf16.gmra.mxu0 %v329
    %v3278 = vpop.f32.mrf.mxu0
    %v3279 = vadd.f32 %v3189, %v3278
    %v3280 = vpop.f32.mrf.mxu0
    %v3281 = vpop.f32.mrf.mxu0
    %v3282 = vadd.f32 %v3192, %v3281
    %v3283 = vpop.f32.mrf.mxu0
    %3284 = vdwg.mxu0
    %v3285 = vsub.f32 %v3279, %v3231
    %v3286 = vsub.f32 %v3282, %v3234
    %3287 = vst [vmem:[#allocation23] sm:$0xff] %v3285
    %3288 = vst [vmem:[#allocation23 + $0x8] sm:$0xff] %v3286
    // Predicated region
    $region94: #{tpu_custom_call.1} parent=1 // pred_check
      _
    $region95: #{tpu_custom_call.1} parent=1 // pred_check_branch
      %3290 = sbr.rel (0) target = $region97
    $region96: #{tpu_custom_call.1} parent=1 // pred_region
      %s3292 = ssub.s32 256, 256
      %3293 = vsyncadd [#allocation6], %s3292
      %s3294 = sshll.u32 [#allocation22], 4
      %s3295 = int_to_ptr.vmem [resolvable:$true] %s3294
      %3300 = dma.vmem_to_hbm [thread:$0]  %s3295, 256, %s12, [#allocation6], 128, 128, 8
    $region97: #{tpu_custom_call.1} parent=1 // pred_fallthru
      _
    // Predicated region
    $region98: #{tpu_custom_call.1} parent=1 // pred_check
      _
    $region99: #{tpu_custom_call.1} parent=1 // pred_check_branch
      %3302 = sbr.rel (0) target = $region101
    $region100: #{tpu_custom_call.1} parent=1 // pred_region
      %s3304 = ssub.s32 256, 256
      %3305 = vsyncadd [#allocation24], %s3304
      %s3306 = sshll.u32 [#allocation23], 4
      %s3307 = int_to_ptr.vmem [resolvable:$true] %s3306
      %3312 = dma.vmem_to_hbm [thread:$0]  %s3307, 256, %s13, [#allocation24], 128, 128, 8
    $region101: #{tpu_custom_call.1} parent=1 // pred_fallthru
      _
    // Predicated region
    $region102: #{tpu_custom_call.1} parent=1 // pred_check
      _
    $region103: #{tpu_custom_call.1} parent=1 // pred_check_branch
      %3314 = sbr.rel (0) target = $region105
    $region104: #{tpu_custom_call.1} parent=1 // pred_region
      %3315 = dma.done [#allocation6], 256
    $region105: #{tpu_custom_call.1} parent=1 // pred_fallthru
      _
    // Predicated region
    $region106: #{tpu_custom_call.1} parent=1 // pred_check
      _
    $region107: #{tpu_custom_call.1} parent=1 // pred_check_branch
      %3317 = sbr.rel (0) target = $region109
    $region108: #{tpu_custom_call.1} parent=1 // pred_region
      %3318 = dma.done [#allocation24], 256
    $region109: #{tpu_custom_call.1} parent=1 // pred_fallthru
      _
    %3319 = vsyncpa [#allocation5], 1
    %3320 = vsyncpa [#allocation8], 1
    %3321 = vsyncpa [#allocation11], 1
    %3322 = vsyncpa [#allocation14], 1
    %3323 = vsyncpa [#allocation17], 1
    %3324 = vsyncpa [#allocation20], 1
    %3325 = vsyncpa [#allocation6], 1
    %3326 = vsyncpa [#allocation24], 1

</llo_original>
